<compile_context>
chip_gen: v7x
topology: tpu7x:2x2x1
jax: 0.10.0
libtpu: 0.0.40
codegen_flags: <defaults>
</compile_context>

<pallas_src>
import math
import jax
import jax.numpy as jnp
from jax.experimental import pallas as pl
from jax.experimental.pallas import tpu as pltpu

# ---------------- KAN constants (match KANLayer.__init__) ----------------
GRID_SIZE = 5
SPLINE_ORDER = 3
GRID_RANGE = (-1.0, 1.0)
_H_STEP = (GRID_RANGE[1] - GRID_RANGE[0]) / GRID_SIZE
# extended knot vector: grid_size + 2*spline_order + 1 = 12 points
GRID_PTS = tuple(GRID_RANGE[0] + (t - SPLINE_ORDER) * _H_STEP
                 for t in range(GRID_SIZE + 2 * SPLINE_ORDER + 1))
NUM_BASES = GRID_SIZE + SPLINE_ORDER          # 8 cubic bases
NUM_FEATS = NUM_BASES + 1                     # SiLU branch + 8 spline bases
BN_EPS = 1e-5
LANE = 128


def _round_up(v, m):
    return (v + m - 1) // m * m


def _vmem_limit(need_bytes):
    # explicit scoped-VMEM request; clamp at 40 MiB to keep headroom on v7x (64 MiB/TC).
    return int(min(40 * 1024 * 1024, max(need_bytes + (2 << 20), 16 << 20)))


# ======================= KANLinear Pallas kernel =========================
def _kan_linear_kernel(x_ref, wf_ref, o_ref, feat_ref):
    cp = x_ref.shape[1]
    x = x_ref[...].astype(jnp.float32)                     # (tm, Cp)

    # base branch: SiLU (sigmoid runs on the EUP slot) -> feat columns [0, Cp)
    feat_ref[:, 0:cp] = (x * jax.nn.sigmoid(x)).astype(jnp.bfloat16)

    # --- cubic B-spline bases: uniform-knot closed form ---------------------
    # knot-span coordinate: s0 in [j, j+1)  <=>  x in [g[j], g[j+1))
    s0 = (x - GRID_PTS[0]) * (1.0 / _H_STEP)
    j = jnp.floor(s0)
    u = s0 - j                                             # local coordinate in the span
    u2 = u * u
    u3 = u2 * u
    q0 = u3 * (1.0 / 6.0)                                  # basis value when j == t
    v = 1.0 - u
    q3 = (v * v * v) * (1.0 / 6.0)                         # when j == t + 3
    q2 = 0.5 * u3 - u2 + (2.0 / 3.0)                       # when j == t + 2
    q1 = 1.0 - q0 - q2 - q3                                # partition of unity in a span
    zero = jnp.zeros_like(u)                               # hoisted (no CSE of broadcasts)

    for t in range(NUM_BASES):
        # basis t is supported on spans j = t .. t+3; zero elsewhere (incl. off-grid x,
        # which matches the reference's half-open order-0 indicators).
        b = jnp.where(j == float(t), q0,
            jnp.where(j == float(t + 1), q1,
            jnp.where(j == float(t + 2), q2,
            jnp.where(j == float(t + 3), q3, zero))))
        feat_ref[:, (t + 1) * cp:(t + 2) * cp] = b.astype(jnp.bfloat16)

    # --- single fused MXU matmul: (tm, 9*Cp) @ (9*Cp, Cout_p), f32 acc ------
    o_ref[...] = jnp.dot(feat_ref[...], wf_ref[...],
                         preferred_element_type=jnp.float32).astype(o_ref.dtype)


def kan_linear(x, w_fused, *, tm=None):
    """x: (M, Cp) f32/bf16; w_fused: (NUM_FEATS*Cp, Cout_p) bf16. Returns (M, Cout_p) bf16."""
    M, c_in_p = x.shape
    kdim, c_out_p = w_fused.shape
    assert kdim == NUM_FEATS * c_in_p
    if tm is None:
        tm = 256 if c_in_p <= 256 else 128     # sweepable; 256 is reachable now
    tm = min(tm, _round_up(M, 16))
    grid_m = pl.cdiv(M, tm)

    vmem = _vmem_limit(
        2 * tm * c_in_p * x.dtype.itemsize     # input tile, double-buffered
        + 2 * tm * c_out_p * 2                 # bf16 output tile, double-buffered
        + 2 * kdim * c_out_p * 2               # bf16 fused weight (resident)
        + tm * kdim * 2                        # bf16 feat staging scratch
        + 8 * tm * c_in_p * 4)                 # basis temporaries

    # TODO(synk): single-buffer the resident weight (pipeline_mode=pl.Buffered(1)) and bf16 basis math on v6e/v7x once verified on the target build.
    return pl.pallas_call(
        _kan_linear_kernel,
        out_shape=jax.ShapeDtypeStruct((M, c_out_p), jnp.bfloat16),
        grid_spec=pltpu.PrefetchScalarGridSpec(
            num_scalar_prefetch=0,
            grid=(grid_m,),
            in_specs=[
                pl.BlockSpec((tm, c_in_p), lambda i: (i, 0)),
                pl.BlockSpec((kdim, c_out_p), lambda i: (0, 0)),
            ],
            out_specs=pl.BlockSpec((tm, c_out_p), lambda i: (i, 0)),
            scratch_shapes=[pltpu.VMEM((tm, NUM_FEATS * c_in_p), jnp.bfloat16)],
        ),
        compiler_params=pltpu.CompilerParams(
            dimension_semantics=("parallel",),
            vmem_limit_bytes=vmem),
    )(x, w_fused)


# ================ DW 3x3 depthwise conv + BN + ReLU kernel ================
def _dw_bn_relu_kernel(x_ref, w_ref, scale_ref, shift_ref, o_ref, xp_ref):
    hh, ww, ct = o_ref.shape[1], o_ref.shape[2], o_ref.shape[3]

    # Zero ONLY the 1-pixel border strips of the halo scratch (tiny stores) and
    # write the interior exactly once (saves a full store pass per block).
    xp_ref[0] = jnp.zeros((ww + 2, ct), jnp.float32)
    xp_ref[hh + 1] = jnp.zeros((ww + 2, ct), jnp.float32)
    xp_ref[1:hh + 1, 0:1, :] = jnp.zeros((hh, 1, ct), jnp.float32)
    xp_ref[1:hh + 1, ww + 1:ww + 2, :] = jnp.zeros((hh, 1, ct), jnp.float32)
    xp_ref[1:hh + 1, 1:ww + 1, :] = x_ref[0].astype(jnp.float32)

    acc = jnp.zeros((hh, ww, ct), jnp.float32)
    for dh in range(3):
        for dw in range(3):
            # static ref-sliced taps: offsets fold into the load addressing
            acc = acc + xp_ref[dh:dh + hh, dw:dw + ww, :] * w_ref[dh * 3 + dw]
    y = acc * scale_ref[0] + shift_ref[0]          # fused conv-bias + BN (eval)
    o_ref[0] = jnp.maximum(y, 0.0).astype(o_ref.dtype)


def dw_bn_relu(x_bhwc, dw_params):
    """x_bhwc: (B, H, W, Cp) f32/bf16. Returns (B, H, W, Cp) bf16."""
    w9c, scale, shift = dw_params
    B, H, W, c_p = x_bhwc.shape
    # channel tiling: conv/BN/ReLU are per-channel independent -> small per-step
    # VMEM footprint (v7x-safe) and a longer grid when B is small.
    ct = 256 if c_p % 256 == 0 else 128
    ct = min(ct, c_p)
    n_ct = c_p // ct

    vmem = _vmem_limit(
        2 * H * W * ct * x_bhwc.dtype.itemsize     # input tile, double-buffered
        + 2 * H * W * ct * 2                       # bf16 output tile, double-buffered
        + (H + 2) * (W + 2) * ct * 4               # halo scratch (f32)
        + H * W * ct * 4                           # f32 accumulator value
        + 32 * ct * 4)                             # weights / scale / shift
    return pl.pallas_call(
        _dw_bn_relu_kernel,
        out_shape=jax.ShapeDtypeStruct((B, H, W, c_p), jnp.bfloat16),
        grid_spec=pltpu.PrefetchScalarGridSpec(
            num_scalar_prefetch=0,
            grid=(B, n_ct),
            in_specs=[
                pl.BlockSpec((1, H, W, ct), lambda b, c: (b, 0, 0, c)),
                pl.BlockSpec((9, ct), lambda b, c: (0, c)),
                pl.BlockSpec((1, ct), lambda b, c: (0, c)),
                pl.BlockSpec((1, ct), lambda b, c: (0, c)),
            ],
            out_specs=pl.BlockSpec((1, H, W, ct), lambda b, c: (b, 0, 0, c)),
            scratch_shapes=[pltpu.VMEM((H + 2, W + 2, ct), jnp.float32)],
        ),
        compiler_params=pltpu.CompilerParams(
            dimension_semantics=("parallel", "parallel"),
            vmem_limit_bytes=vmem),
    )(x_bhwc, w9c, scale, shift)


# ========================= parameter construction =========================
def init_kan_linear_params(key, c_in, c_out, c_in_p, c_out_p):
    """Fused bf16 weight (NUM_FEATS*c_in_p, c_out_p):
    rows [0:Cp)           -> base branch   (SiLU(x) @ base_W.T)
    rows [(t+1)*Cp:...)   -> spline basis t (t = 0..7), pre-scaled by spline_scaler.
    Padded rows/cols are zero so padded lane channels contribute / receive nothing."""
    k1, k2, k3 = jax.random.split(key, 3)
    base_w = jax.random.normal(k1, (c_out, c_in), jnp.float32) / math.sqrt(c_in)
    spline_w = jax.random.normal(k2, (c_out, c_in, NUM_BASES), jnp.float32) * 0.1
    spline_scaler = 1.0 + 0.05 * jax.random.normal(k3, (c_out, c_in), jnp.float32)
    scaled = spline_w * spline_scaler[..., None]             # scaled_spline_weight

    blocks = [jnp.transpose(base_w)]                         # (c_in, c_out)
    blocks += [jnp.transpose(scaled[:, :, t]) for t in range(NUM_BASES)]
    pad_in, pad_out = c_in_p - c_in, c_out_p - c_out
    blocks = [jnp.pad(b, ((0, pad_in), (0, pad_out))) for b in blocks]
    w_fused = jnp.concatenate(blocks, axis=0).astype(jnp.bfloat16)
    return w_fused


def init_dw_params(key, c, c_p):
    k1, k2 = jax.random.split(key)
    # Conv2d(dim, dim, 3, groups=dim): weight (C,1,3,3) -> (9, C); fan_out init
    w = jax.random.normal(k1, (c, 3, 3), jnp.float32) * math.sqrt(2.0 / 9.0)
    w9c = jnp.transpose(w.reshape(c, 9))                     # (9, C)
    bias = 0.01 * jax.random.normal(k2, (c,), jnp.float32)
    gamma = jnp.ones((c,), jnp.float32)
    beta = jnp.zeros((c,), jnp.float32)
    run_mean = jnp.zeros((c,), jnp.float32)
    run_var = jnp.ones((c,), jnp.float32)
    scale = gamma / jnp.sqrt(run_var + BN_EPS)
    shift = (bias - run_mean) * scale + beta                 # fold conv bias into BN shift
    pad = c_p - c
    w9c = jnp.pad(w9c, ((0, 0), (0, pad)))
    scale = jnp.pad(scale, (0, pad)).reshape(1, c_p)
    shift = jnp.pad(shift, (0, pad)).reshape(1, c_p)
    return w9c, scale, shift


def init_kan_layer_params(key, dim):
    c_pad = _round_up(dim, LANE)                             # lane-dense channel dim
    ks = jax.random.split(key, 6)
    return {
        "c_pad": c_pad,
        "fc1": init_kan_linear_params(ks[0], dim, dim, c_pad, c_pad),
        "fc2": init_kan_linear_params(ks[1], dim, dim, c_pad, c_pad),
        "fc3": init_kan_linear_params(ks[2], dim, dim, c_pad, c_pad),
        "dw1": init_dw_params(ks[3], dim, c_pad),
        "dw2": init_dw_params(ks[4], dim, c_pad),
        "dw3": init_dw_params(ks[5], dim, c_pad),
    }


# ============================ KANLayer forward ============================
def kan_layer_forward(x, params, hs, ws):
    B, N, C = x.shape
    c_p = params["c_pad"]
    h = x if c_p == C else jnp.pad(x, ((0, 0), (0, 0), (0, c_p - C)))
    h = h.reshape(B * N, c_p)                                # f32 into the first stage
    for fc, dw in (("fc1", "dw1"), ("fc2", "dw2"), ("fc3", "dw3")):
        h = kan_linear(h, params[fc])                        # (B*N, Cp) bf16
        h = dw_bn_relu(h.reshape(B, hs, ws, c_p), params[dw]).reshape(B * N, c_p)
        # Dropout(p=0.0) is the identity.
    out = h.reshape(B, N, c_p).astype(jnp.float32)
    return out if c_p == C else out[:, :, :C]
    # TODO(synk): KANLinear.update_grid / regularization_loss are training-only and not implemented.


if __name__ == "__main__":
    B, Hs, Ws, C = 2, 8, 8, 32
    N = Hs * Ws
    key = jax.random.PRNGKey(0)
    kx, kp = jax.random.split(key)
    x = jax.random.normal(kx, (B, N, C), jnp.float32)
    params = init_kan_layer_params(kp, C)

    fwd = jax.jit(lambda inp: kan_layer_forward(inp, params, Hs, Ws))
    out = fwd(x)
    jax.block_until_ready(out)
    assert out.shape == (B, N, C)
    assert bool(jnp.isfinite(out).all())
    print("KERNEL_OK")
</pallas_src>

<mosaic_0001>
module attributes {stable_mosaic.version = 11 : i64} {
  func.func @_dw_bn_relu_kernel(%arg0: i32, %arg1: i32, %arg2: memref<1x8x8x128xbf16, #tpu.memory_space<vmem>>, %arg3: memref<9x128xf32, #tpu.memory_space<vmem>>, %arg4: memref<1x128xf32, #tpu.memory_space<vmem>>, %arg5: memref<1x128xf32, #tpu.memory_space<vmem>>, %arg6: memref<1x8x8x128xbf16, #tpu.memory_space<vmem>>, %arg7: memref<10x10x128xf32, #tpu.memory_space<vmem>>) attributes {dimension_semantics = [#tpu.dimension_semantics<parallel>, #tpu.dimension_semantics<parallel>], iteration_bounds = array<i64: 2, 1>, scalar_prefetch = 0 : i64, scratch_operands = 1 : i64, tpu.core_type = #tpu.core_type<tc>, window_params = [{transform_indices = @transform_0, window_bounds = array<i64: 1, 8, 8, 128>}, {transform_indices = @transform_1, window_bounds = array<i64: 9, 128>}, {transform_indices = @transform_2, window_bounds = array<i64: 1, 128>}, {transform_indices = @transform_3, window_bounds = array<i64: 1, 128>}, {transform_indices = @transform_4, window_bounds = array<i64: 1, 8, 8, 128>}]} {
    %cst = arith.constant 0.000000e+00 : f32
    %0 = vector.broadcast %cst : f32 to vector<10x128xf32>
    %c0 = arith.constant 0 : index
    %c0_0 = arith.constant 0 : index
    %c0_1 = arith.constant 0 : index
    %1 = vector.load %arg7[%c0, %c0_0, %c0_1] : memref<10x10x128xf32, #tpu.memory_space<vmem>>, vector<1x10x128xf32>
    %2 = vector.shape_cast %1 : vector<1x10x128xf32> to vector<10x128xf32>
    %3 = vector.shape_cast %0 : vector<10x128xf32> to vector<1x10x128xf32>
    tpu.vector_store %arg7[%c0, %c0_0, %c0_1], %3 {strides = array<i32>} : memref<10x10x128xf32, #tpu.memory_space<vmem>>, vector<1x10x128xf32>,
    %cst_2 = arith.constant 0.000000e+00 : f32
    %4 = vector.broadcast %cst_2 : f32 to vector<10x128xf32>
    %c9 = arith.constant 9 : index
    %c0_3 = arith.constant 0 : index
    %c0_4 = arith.constant 0 : index
    %5 = vector.load %arg7[%c9, %c0_3, %c0_4] : memref<10x10x128xf32, #tpu.memory_space<vmem>>, vector<1x10x128xf32>
    %6 = vector.shape_cast %5 : vector<1x10x128xf32> to vector<10x128xf32>
    %7 = vector.shape_cast %4 : vector<10x128xf32> to vector<1x10x128xf32>
    tpu.vector_store %arg7[%c9, %c0_3, %c0_4], %7 {strides = array<i32>} : memref<10x10x128xf32, #tpu.memory_space<vmem>>, vector<1x10x128xf32>,
    %cst_5 = arith.constant 0.000000e+00 : f32
    %8 = vector.broadcast %cst_5 : f32 to vector<8x1x128xf32>
    %c1 = arith.constant 1 : index
    %c0_6 = arith.constant 0 : index
    %c0_7 = arith.constant 0 : index
    %9 = vector.load %arg7[%c1, %c0_6, %c0_7] : memref<10x10x128xf32, #tpu.memory_space<vmem>>, vector<8x1x128xf32>
    tpu.vector_store %arg7[%c1, %c0_6, %c0_7], %8 {strides = array<i32>} : memref<10x10x128xf32, #tpu.memory_space<vmem>>, vector<8x1x128xf32>,
    %cst_8 = arith.constant 0.000000e+00 : f32
    %10 = vector.broadcast %cst_8 : f32 to vector<8x1x128xf32>
    %c1_9 = arith.constant 1 : index
    %c9_10 = arith.constant 9 : index
    %c0_11 = arith.constant 0 : index
    %11 = vector.load %arg7[%c1_9, %c9_10, %c0_11] : memref<10x10x128xf32, #tpu.memory_space<vmem>>, vector<8x1x128xf32>
    tpu.vector_store %arg7[%c1_9, %c9_10, %c0_11], %10 {strides = array<i32>} : memref<10x10x128xf32, #tpu.memory_space<vmem>>, vector<8x1x128xf32>,
    %c0_12 = arith.constant 0 : index
    %c0_13 = arith.constant 0 : index
    %c0_14 = arith.constant 0 : index
    %c0_15 = arith.constant 0 : index
    %12 = vector.load %arg2[%c0_12, %c0_13, %c0_14, %c0_15] : memref<1x8x8x128xbf16, #tpu.memory_space<vmem>>, vector<1x8x8x128xbf16>
    %13 = vector.shape_cast %12 : vector<1x8x8x128xbf16> to vector<8x8x128xbf16>
    %14 = arith.extf %13 : vector<8x8x128xbf16> to vector<8x8x128xf32>
    %c1_16 = arith.constant 1 : index
    %c1_17 = arith.constant 1 : index
    %c0_18 = arith.constant 0 : index
    %15 = vector.load %arg7[%c1_16, %c1_17, %c0_18] : memref<10x10x128xf32, #tpu.memory_space<vmem>>, vector<8x8x128xf32>
    tpu.vector_store %arg7[%c1_16, %c1_17, %c0_18], %14 {strides = array<i32>} : memref<10x10x128xf32, #tpu.memory_space<vmem>>, vector<8x8x128xf32>,
    %cst_19 = arith.constant 0.000000e+00 : f32
    %16 = vector.broadcast %cst_19 : f32 to vector<8x8x128xf32>
    %c0_20 = arith.constant 0 : index
    %c0_21 = arith.constant 0 : index
    %c0_22 = arith.constant 0 : index
    %17 = vector.load %arg7[%c0_20, %c0_21, %c0_22] : memref<10x10x128xf32, #tpu.memory_space<vmem>>, vector<8x8x128xf32>
    %c0_23 = arith.constant 0 : index
    %c0_24 = arith.constant 0 : index
    %18 = vector.load %arg3[%c0_23, %c0_24] : memref<9x128xf32, #tpu.memory_space<vmem>>, vector<1x128xf32>
    %19 = vector.shape_cast %18 : vector<1x128xf32> to vector<128xf32>
    %20 = vector.shape_cast %19 : vector<128xf32> to vector<1x1x128xf32>
    %21 = vector.broadcast %20 : vector<1x1x128xf32> to vector<8x8x128xf32>
    %22 = arith.mulf %17, %21 : vector<8x8x128xf32>
    %23 = arith.addf %16, %22 : vector<8x8x128xf32>
    %c0_25 = arith.constant 0 : index
    %c1_26 = arith.constant 1 : index
    %c0_27 = arith.constant 0 : index
    %24 = vector.load %arg7[%c0_25, %c1_26, %c0_27] : memref<10x10x128xf32, #tpu.memory_space<vmem>>, vector<8x8x128xf32>
    %c1_28 = arith.constant 1 : index
    %c0_29 = arith.constant 0 : index
    %25 = vector.load %arg3[%c1_28, %c0_29] : memref<9x128xf32, #tpu.memory_space<vmem>>, vector<1x128xf32>
    %26 = vector.shape_cast %25 : vector<1x128xf32> to vector<128xf32>
    %27 = vector.shape_cast %26 : vector<128xf32> to vector<1x1x128xf32>
    %28 = vector.broadcast %27 : vector<1x1x128xf32> to vector<8x8x128xf32>
    %29 = arith.mulf %24, %28 : vector<8x8x128xf32>
    %30 = arith.addf %23, %29 : vector<8x8x128xf32>
    %c0_30 = arith.constant 0 : index
    %c2 = arith.constant 2 : index
    %c0_31 = arith.constant 0 : index
    %31 = vector.load %arg7[%c0_30, %c2, %c0_31] : memref<10x10x128xf32, #tpu.memory_space<vmem>>, vector<8x8x128xf32>
    %c2_32 = arith.constant 2 : index
    %c0_33 = arith.constant 0 : index
    %32 = vector.load %arg3[%c2_32, %c0_33] : memref<9x128xf32, #tpu.memory_space<vmem>>, vector<1x128xf32>
    %33 = vector.shape_cast %32 : vector<1x128xf32> to vector<128xf32>
    %34 = vector.shape_cast %33 : vector<128xf32> to vector<1x1x128xf32>
    %35 = vector.broadcast %34 : vector<1x1x128xf32> to vector<8x8x128xf32>
    %36 = arith.mulf %31, %35 : vector<8x8x128xf32>
    %37 = arith.addf %30, %36 : vector<8x8x128xf32>
    %c1_34 = arith.constant 1 : index
    %c0_35 = arith.constant 0 : index
    %c0_36 = arith.constant 0 : index
    %38 = vector.load %arg7[%c1_34, %c0_35, %c0_36] : memref<10x10x128xf32, #tpu.memory_space<vmem>>, vector<8x8x128xf32>
    %c3 = arith.constant 3 : index
    %c0_37 = arith.constant 0 : index
    %39 = vector.load %arg3[%c3, %c0_37] : memref<9x128xf32, #tpu.memory_space<vmem>>, vector<1x128xf32>
    %40 = vector.shape_cast %39 : vector<1x128xf32> to vector<128xf32>
    %41 = vector.shape_cast %40 : vector<128xf32> to vector<1x1x128xf32>
    %42 = vector.broadcast %41 : vector<1x1x128xf32> to vector<8x8x128xf32>
    %43 = arith.mulf %38, %42 : vector<8x8x128xf32>
    %44 = arith.addf %37, %43 : vector<8x8x128xf32>
    %c1_38 = arith.constant 1 : index
    %c1_39 = arith.constant 1 : index
    %c0_40 = arith.constant 0 : index
    %45 = vector.load %arg7[%c1_38, %c1_39, %c0_40] : memref<10x10x128xf32, #tpu.memory_space<vmem>>, vector<8x8x128xf32>
    %c4 = arith.constant 4 : index
    %c0_41 = arith.constant 0 : index
    %46 = vector.load %arg3[%c4, %c0_41] : memref<9x128xf32, #tpu.memory_space<vmem>>, vector<1x128xf32>
    %47 = vector.shape_cast %46 : vector<1x128xf32> to vector<128xf32>
    %48 = vector.shape_cast %47 : vector<128xf32> to vector<1x1x128xf32>
    %49 = vector.broadcast %48 : vector<1x1x128xf32> to vector<8x8x128xf32>
    %50 = arith.mulf %45, %49 : vector<8x8x128xf32>
    %51 = arith.addf %44, %50 : vector<8x8x128xf32>
    %c1_42 = arith.constant 1 : index
    %c2_43 = arith.constant 2 : index
    %c0_44 = arith.constant 0 : index
    %52 = vector.load %arg7[%c1_42, %c2_43, %c0_44] : memref<10x10x128xf32, #tpu.memory_space<vmem>>, vector<8x8x128xf32>
    %c5 = arith.constant 5 : index
    %c0_45 = arith.constant 0 : index
    %53 = vector.load %arg3[%c5, %c0_45] : memref<9x128xf32, #tpu.memory_space<vmem>>, vector<1x128xf32>
    %54 = vector.shape_cast %53 : vector<1x128xf32> to vector<128xf32>
    %55 = vector.shape_cast %54 : vector<128xf32> to vector<1x1x128xf32>
    %56 = vector.broadcast %55 : vector<1x1x128xf32> to vector<8x8x128xf32>
    %57 = arith.mulf %52, %56 : vector<8x8x128xf32>
    %58 = arith.addf %51, %57 : vector<8x8x128xf32>
    %c2_46 = arith.constant 2 : index
    %c0_47 = arith.constant 0 : index
    %c0_48 = arith.constant 0 : index
    %59 = vector.load %arg7[%c2_46, %c0_47, %c0_48] : memref<10x10x128xf32, #tpu.memory_space<vmem>>, vector<8x8x128xf32>
    %c6 = arith.constant 6 : index
    %c0_49 = arith.constant 0 : index
    %60 = vector.load %arg3[%c6, %c0_49] : memref<9x128xf32, #tpu.memory_space<vmem>>, vector<1x128xf32>
    %61 = vector.shape_cast %60 : vector<1x128xf32> to vector<128xf32>
    %62 = vector.shape_cast %61 : vector<128xf32> to vector<1x1x128xf32>
    %63 = vector.broadcast %62 : vector<1x1x128xf32> to vector<8x8x128xf32>
    %64 = arith.mulf %59, %63 : vector<8x8x128xf32>
    %65 = arith.addf %58, %64 : vector<8x8x128xf32>
    %c2_50 = arith.constant 2 : index
    %c1_51 = arith.constant 1 : index
    %c0_52 = arith.constant 0 : index
    %66 = vector.load %arg7[%c2_50, %c1_51, %c0_52] : memref<10x10x128xf32, #tpu.memory_space<vmem>>, vector<8x8x128xf32>
    %c7 = arith.constant 7 : index
    %c0_53 = arith.constant 0 : index
    %67 = vector.load %arg3[%c7, %c0_53] : memref<9x128xf32, #tpu.memory_space<vmem>>, vector<1x128xf32>
    %68 = vector.shape_cast %67 : vector<1x128xf32> to vector<128xf32>
    %69 = vector.shape_cast %68 : vector<128xf32> to vector<1x1x128xf32>
    %70 = vector.broadcast %69 : vector<1x1x128xf32> to vector<8x8x128xf32>
    %71 = arith.mulf %66, %70 : vector<8x8x128xf32>
    %72 = arith.addf %65, %71 : vector<8x8x128xf32>
    %c2_54 = arith.constant 2 : index
    %c2_55 = arith.constant 2 : index
    %c0_56 = arith.constant 0 : index
    %73 = vector.load %arg7[%c2_54, %c2_55, %c0_56] : memref<10x10x128xf32, #tpu.memory_space<vmem>>, vector<8x8x128xf32>
    %c8 = arith.constant 8 : index
    %c0_57 = arith.constant 0 : index
    %74 = vector.load %arg3[%c8, %c0_57] : memref<9x128xf32, #tpu.memory_space<vmem>>, vector<1x128xf32>
    %75 = vector.shape_cast %74 : vector<1x128xf32> to vector<128xf32>
    %76 = vector.shape_cast %75 : vector<128xf32> to vector<1x1x128xf32>
    %77 = vector.broadcast %76 : vector<1x1x128xf32> to vector<8x8x128xf32>
    %78 = arith.mulf %73, %77 : vector<8x8x128xf32>
    %79 = arith.addf %72, %78 : vector<8x8x128xf32>
    %c0_58 = arith.constant 0 : index
    %c0_59 = arith.constant 0 : index
    %80 = vector.load %arg4[%c0_58, %c0_59] : memref<1x128xf32, #tpu.memory_space<vmem>>, vector<1x128xf32>
    %81 = vector.shape_cast %80 : vector<1x128xf32> to vector<128xf32>
    %82 = vector.shape_cast %81 : vector<128xf32> to vector<1x1x128xf32>
    %83 = vector.broadcast %82 : vector<1x1x128xf32> to vector<8x8x128xf32>
    %84 = arith.mulf %79, %83 : vector<8x8x128xf32>
    %c0_60 = arith.constant 0 : index
    %c0_61 = arith.constant 0 : index
    %85 = vector.load %arg5[%c0_60, %c0_61] : memref<1x128xf32, #tpu.memory_space<vmem>>, vector<1x128xf32>
    %86 = vector.shape_cast %85 : vector<1x128xf32> to vector<128xf32>
    %87 = vector.shape_cast %86 : vector<128xf32> to vector<1x1x128xf32>
    %88 = vector.broadcast %87 : vector<1x1x128xf32> to vector<8x8x128xf32>
    %89 = arith.addf %84, %88 : vector<8x8x128xf32>
    %cst_62 = arith.constant 0.000000e+00 : f32
    %90 = vector.broadcast %cst_62 : f32 to vector<8x8x128xf32>
    %91 = arith.maximumf %89, %90 : vector<8x8x128xf32>
    %92 = arith.truncf %91 : vector<8x8x128xf32> to vector<8x8x128xbf16>
    %c0_63 = arith.constant 0 : index
    %c0_64 = arith.constant 0 : index
    %c0_65 = arith.constant 0 : index
    %c0_66 = arith.constant 0 : index
    %93 = vector.load %arg6[%c0_63, %c0_64, %c0_65, %c0_66] : memref<1x8x8x128xbf16, #tpu.memory_space<vmem>>, vector<1x8x8x128xbf16>
    %94 = vector.shape_cast %93 : vector<1x8x8x128xbf16> to vector<8x8x128xbf16>
    %95 = vector.shape_cast %92 : vector<8x8x128xbf16> to vector<1x8x8x128xbf16>
    tpu.vector_store %arg6[%c0_63, %c0_64, %c0_65, %c0_66], %95 {strides = array<i32>} : memref<1x8x8x128xbf16, #tpu.memory_space<vmem>>, vector<1x8x8x128xbf16>,
    return
  }
  func.func @transform_0(%arg0: i32, %arg1: i32) -> (i32, i32, i32, i32) {
    %c0_i32 = arith.constant 0 : i32
    %c0_i32_0 = arith.constant 0 : i32
    %c0_i32_1 = arith.constant 0 : i32
    return %arg0, %c0_i32, %c0_i32_0, %arg1 : i32, i32, i32, i32
  }
  func.func @transform_1(%arg0: i32, %arg1: i32) -> (i32, i32) {
    %c0_i32 = arith.constant 0 : i32
    %c0_i32_0 = arith.constant 0 : i32
    return %c0_i32, %arg1 : i32, i32
  }
  func.func @transform_2(%arg0: i32, %arg1: i32) -> (i32, i32) {
    %c0_i32 = arith.constant 0 : i32
    %c0_i32_0 = arith.constant 0 : i32
    return %c0_i32, %arg1 : i32, i32
  }
  func.func @transform_3(%arg0: i32, %arg1: i32) -> (i32, i32) {
    %c0_i32 = arith.constant 0 : i32
    %c0_i32_0 = arith.constant 0 : i32
    return %c0_i32, %arg1 : i32, i32
  }
  func.func @transform_4(%arg0: i32, %arg1: i32) -> (i32, i32, i32, i32) {
    %c0_i32 = arith.constant 0 : i32
    %c0_i32_0 = arith.constant 0 : i32
    %c0_i32_1 = arith.constant 0 : i32
    return %arg0, %c0_i32, %c0_i32_0, %arg1 : i32, i32, i32, i32
  }
}

module attributes {stable_mosaic.version = 11 : i64} {
  func.func @_kan_linear_kernel(%arg0: i32, %arg1: memref<128x128xf32, #tpu.memory_space<vmem>>, %arg2: memref<1152x128xbf16, #tpu.memory_space<vmem>>, %arg3: memref<128x128xbf16, #tpu.memory_space<vmem>>, %arg4: memref<128x1152xbf16, #tpu.memory_space<vmem>>) attributes {dimension_semantics = [#tpu.dimension_semantics<parallel>], iteration_bounds = array<i64: 1>, scalar_prefetch = 0 : i64, scratch_operands = 1 : i64, tpu.core_type = #tpu.core_type<tc>, window_params = [{transform_indices = @transform_0, window_bounds = array<i64: 128, 128>}, {pipeline_mode = #tpu.pipeline_mode<synchronous>, transform_indices = @transform_1, window_bounds = array<i64: 1152, 128>}, {transform_indices = @transform_2, window_bounds = array<i64: 128, 128>}]} {
    %c0 = arith.constant 0 : index
    %c0_0 = arith.constant 0 : index
    %0 = vector.load %arg1[%c0, %c0_0] : memref<128x128xf32, #tpu.memory_space<vmem>>, vector<128x128xf32>
    %1 = arith.negf %0 : vector<128x128xf32>
    %2 = math.exp %1 : vector<128x128xf32>
    %cst = arith.constant 1.000000e+00 : f32
    %3 = vector.broadcast %cst : f32 to vector<128x128xf32>
    %4 = arith.addf %3, %2 : vector<128x128xf32>
    %5 = arith.divf %3, %4 : vector<128x128xf32>
    %6 = arith.mulf %0, %5 : vector<128x128xf32>
    %7 = arith.truncf %6 : vector<128x128xf32> to vector<128x128xbf16>
    %c0_1 = arith.constant 0 : index
    %c0_2 = arith.constant 0 : index
    %8 = vector.load %arg4[%c0_1, %c0_2] : memref<128x1152xbf16, #tpu.memory_space<vmem>>, vector<128x128xbf16>
    tpu.vector_store %arg4[%c0_1, %c0_2], %7 {strides = array<i32>} : memref<128x1152xbf16, #tpu.memory_space<vmem>>, vector<128x128xbf16>,
    %cst_3 = arith.constant -2.200000e+00 : f32
    %9 = vector.broadcast %cst_3 : f32 to vector<128x128xf32>
    %10 = arith.subf %0, %9 : vector<128x128xf32>
    %cst_4 = arith.constant 2.500000e+00 : f32
    %11 = vector.broadcast %cst_4 : f32 to vector<128x128xf32>
    %12 = arith.mulf %10, %11 : vector<128x128xf32>
    %13 = math.floor %12 : vector<128x128xf32>
    %14 = arith.subf %12, %13 : vector<128x128xf32>
    %15 = arith.mulf %14, %14 : vector<128x128xf32>
    %16 = arith.mulf %15, %14 : vector<128x128xf32>
    %cst_5 = arith.constant 0.166666672 : f32
    %17 = vector.broadcast %cst_5 : f32 to vector<128x128xf32>
    %18 = arith.mulf %16, %17 : vector<128x128xf32>
    %cst_6 = arith.constant 1.000000e+00 : f32
    %19 = vector.broadcast %cst_6 : f32 to vector<128x128xf32>
    %20 = arith.subf %19, %14 : vector<128x128xf32>
    %21 = arith.mulf %20, %20 : vector<128x128xf32>
    %22 = arith.mulf %21, %20 : vector<128x128xf32>
    %cst_7 = arith.constant 0.166666672 : f32
    %23 = vector.broadcast %cst_7 : f32 to vector<128x128xf32>
    %24 = arith.mulf %22, %23 : vector<128x128xf32>
    %cst_8 = arith.constant 5.000000e-01 : f32
    %25 = vector.broadcast %cst_8 : f32 to vector<128x128xf32>
    %26 = arith.mulf %25, %16 : vector<128x128xf32>
    %27 = arith.subf %26, %15 : vector<128x128xf32>
    %cst_9 = arith.constant 0.666666686 : f32
    %28 = vector.broadcast %cst_9 : f32 to vector<128x128xf32>
    %29 = arith.addf %27, %28 : vector<128x128xf32>
    %cst_10 = arith.constant 1.000000e+00 : f32
    %30 = vector.broadcast %cst_10 : f32 to vector<128x128xf32>
    %31 = arith.subf %30, %18 : vector<128x128xf32>
    %32 = arith.subf %31, %29 : vector<128x128xf32>
    %33 = arith.subf %32, %24 : vector<128x128xf32>
    %cst_11 = arith.constant 0.000000e+00 : f32
    %34 = vector.broadcast %cst_11 : f32 to vector<128x128xf32>
    %cst_12 = arith.constant 0.000000e+00 : f32
    %35 = vector.broadcast %cst_12 : f32 to vector<128x128xf32>
    %36 = arith.cmpf oeq, %13, %35 : vector<128x128xf32>
    %cst_13 = arith.constant 1.000000e+00 : f32
    %37 = vector.broadcast %cst_13 : f32 to vector<128x128xf32>
    %38 = arith.cmpf oeq, %13, %37 : vector<128x128xf32>
    %cst_14 = arith.constant 2.000000e+00 : f32
    %39 = vector.broadcast %cst_14 : f32 to vector<128x128xf32>
    %40 = arith.cmpf oeq, %13, %39 : vector<128x128xf32>
    %cst_15 = arith.constant 3.000000e+00 : f32
    %41 = vector.broadcast %cst_15 : f32 to vector<128x128xf32>
    %42 = arith.cmpf oeq, %13, %41 : vector<128x128xf32>
    %43 = arith.select %42, %24, %34 : vector<128x128xi1>, vector<128x128xf32>
    %44 = arith.select %40, %29, %43 : vector<128x128xi1>, vector<128x128xf32>
    %45 = arith.select %38, %33, %44 : vector<128x128xi1>, vector<128x128xf32>
    %46 = arith.select %36, %18, %45 : vector<128x128xi1>, vector<128x128xf32>
    %47 = arith.truncf %46 : vector<128x128xf32> to vector<128x128xbf16>
    %c0_16 = arith.constant 0 : index
    %c128 = arith.constant 128 : index
    %48 = vector.load %arg4[%c0_16, %c128] : memref<128x1152xbf16, #tpu.memory_space<vmem>>, vector<128x128xbf16>
    tpu.vector_store %arg4[%c0_16, %c128], %47 {strides = array<i32>} : memref<128x1152xbf16, #tpu.memory_space<vmem>>, vector<128x128xbf16>,
    %cst_17 = arith.constant 1.000000e+00 : f32
    %49 = vector.broadcast %cst_17 : f32 to vector<128x128xf32>
    %50 = arith.cmpf oeq, %13, %49 : vector<128x128xf32>
    %cst_18 = arith.constant 2.000000e+00 : f32
    %51 = vector.broadcast %cst_18 : f32 to vector<128x128xf32>
    %52 = arith.cmpf oeq, %13, %51 : vector<128x128xf32>
    %cst_19 = arith.constant 3.000000e+00 : f32
    %53 = vector.broadcast %cst_19 : f32 to vector<128x128xf32>
    %54 = arith.cmpf oeq, %13, %53 : vector<128x128xf32>
    %cst_20 = arith.constant 4.000000e+00 : f32
    %55 = vector.broadcast %cst_20 : f32 to vector<128x128xf32>
    %56 = arith.cmpf oeq, %13, %55 : vector<128x128xf32>
    %57 = arith.select %56, %24, %34 : vector<128x128xi1>, vector<128x128xf32>
    %58 = arith.select %54, %29, %57 : vector<128x128xi1>, vector<128x128xf32>
    %59 = arith.select %52, %33, %58 : vector<128x128xi1>, vector<128x128xf32>
    %60 = arith.select %50, %18, %59 : vector<128x128xi1>, vector<128x128xf32>
    %61 = arith.truncf %60 : vector<128x128xf32> to vector<128x128xbf16>
    %c0_21 = arith.constant 0 : index
    %c256 = arith.constant 256 : index
    %62 = vector.load %arg4[%c0_21, %c256] : memref<128x1152xbf16, #tpu.memory_space<vmem>>, vector<128x128xbf16>
    tpu.vector_store %arg4[%c0_21, %c256], %61 {strides = array<i32>} : memref<128x1152xbf16, #tpu.memory_space<vmem>>, vector<128x128xbf16>,
    %cst_22 = arith.constant 2.000000e+00 : f32
    %63 = vector.broadcast %cst_22 : f32 to vector<128x128xf32>
    %64 = arith.cmpf oeq, %13, %63 : vector<128x128xf32>
    %cst_23 = arith.constant 3.000000e+00 : f32
    %65 = vector.broadcast %cst_23 : f32 to vector<128x128xf32>
    %66 = arith.cmpf oeq, %13, %65 : vector<128x128xf32>
    %cst_24 = arith.constant 4.000000e+00 : f32
    %67 = vector.broadcast %cst_24 : f32 to vector<128x128xf32>
    %68 = arith.cmpf oeq, %13, %67 : vector<128x128xf32>
    %cst_25 = arith.constant 5.000000e+00 : f32
    %69 = vector.broadcast %cst_25 : f32 to vector<128x128xf32>
    %70 = arith.cmpf oeq, %13, %69 : vector<128x128xf32>
    %71 = arith.select %70, %24, %34 : vector<128x128xi1>, vector<128x128xf32>
    %72 = arith.select %68, %29, %71 : vector<128x128xi1>, vector<128x128xf32>
    %73 = arith.select %66, %33, %72 : vector<128x128xi1>, vector<128x128xf32>
    %74 = arith.select %64, %18, %73 : vector<128x128xi1>, vector<128x128xf32>
    %75 = arith.truncf %74 : vector<128x128xf32> to vector<128x128xbf16>
    %c0_26 = arith.constant 0 : index
    %c384 = arith.constant 384 : index
    %76 = vector.load %arg4[%c0_26, %c384] : memref<128x1152xbf16, #tpu.memory_space<vmem>>, vector<128x128xbf16>
    tpu.vector_store %arg4[%c0_26, %c384], %75 {strides = array<i32>} : memref<128x1152xbf16, #tpu.memory_space<vmem>>, vector<128x128xbf16>,
    %cst_27 = arith.constant 3.000000e+00 : f32
    %77 = vector.broadcast %cst_27 : f32 to vector<128x128xf32>
    %78 = arith.cmpf oeq, %13, %77 : vector<128x128xf32>
    %cst_28 = arith.constant 4.000000e+00 : f32
    %79 = vector.broadcast %cst_28 : f32 to vector<128x128xf32>
    %80 = arith.cmpf oeq, %13, %79 : vector<128x128xf32>
    %cst_29 = arith.constant 5.000000e+00 : f32
    %81 = vector.broadcast %cst_29 : f32 to vector<128x128xf32>
    %82 = arith.cmpf oeq, %13, %81 : vector<128x128xf32>
    %cst_30 = arith.constant 6.000000e+00 : f32
    %83 = vector.broadcast %cst_30 : f32 to vector<128x128xf32>
    %84 = arith.cmpf oeq, %13, %83 : vector<128x128xf32>
    %85 = arith.select %84, %24, %34 : vector<128x128xi1>, vector<128x128xf32>
    %86 = arith.select %82, %29, %85 : vector<128x128xi1>, vector<128x128xf32>
    %87 = arith.select %80, %33, %86 : vector<128x128xi1>, vector<128x128xf32>
    %88 = arith.select %78, %18, %87 : vector<128x128xi1>, vector<128x128xf32>
    %89 = arith.truncf %88 : vector<128x128xf32> to vector<128x128xbf16>
    %c0_31 = arith.constant 0 : index
    %c512 = arith.constant 512 : index
    %90 = vector.load %arg4[%c0_31, %c512] : memref<128x1152xbf16, #tpu.memory_space<vmem>>, vector<128x128xbf16>
    tpu.vector_store %arg4[%c0_31, %c512], %89 {strides = array<i32>} : memref<128x1152xbf16, #tpu.memory_space<vmem>>, vector<128x128xbf16>,
    %cst_32 = arith.constant 4.000000e+00 : f32
    %91 = vector.broadcast %cst_32 : f32 to vector<128x128xf32>
    %92 = arith.cmpf oeq, %13, %91 : vector<128x128xf32>
    %cst_33 = arith.constant 5.000000e+00 : f32
    %93 = vector.broadcast %cst_33 : f32 to vector<128x128xf32>
    %94 = arith.cmpf oeq, %13, %93 : vector<128x128xf32>
    %cst_34 = arith.constant 6.000000e+00 : f32
    %95 = vector.broadcast %cst_34 : f32 to vector<128x128xf32>
    %96 = arith.cmpf oeq, %13, %95 : vector<128x128xf32>
    %cst_35 = arith.constant 7.000000e+00 : f32
    %97 = vector.broadcast %cst_35 : f32 to vector<128x128xf32>
    %98 = arith.cmpf oeq, %13, %97 : vector<128x128xf32>
    %99 = arith.select %98, %24, %34 : vector<128x128xi1>, vector<128x128xf32>
    %100 = arith.select %96, %29, %99 : vector<128x128xi1>, vector<128x128xf32>
    %101 = arith.select %94, %33, %100 : vector<128x128xi1>, vector<128x128xf32>
    %102 = arith.select %92, %18, %101 : vector<128x128xi1>, vector<128x128xf32>
    %103 = arith.truncf %102 : vector<128x128xf32> to vector<128x128xbf16>
    %c0_36 = arith.constant 0 : index
    %c640 = arith.constant 640 : index
    %104 = vector.load %arg4[%c0_36, %c640] : memref<128x1152xbf16, #tpu.memory_space<vmem>>, vector<128x128xbf16>
    tpu.vector_store %arg4[%c0_36, %c640], %103 {strides = array<i32>} : memref<128x1152xbf16, #tpu.memory_space<vmem>>, vector<128x128xbf16>,
    %cst_37 = arith.constant 5.000000e+00 : f32
    %105 = vector.broadcast %cst_37 : f32 to vector<128x128xf32>
    %106 = arith.cmpf oeq, %13, %105 : vector<128x128xf32>
    %cst_38 = arith.constant 6.000000e+00 : f32
    %107 = vector.broadcast %cst_38 : f32 to vector<128x128xf32>
    %108 = arith.cmpf oeq, %13, %107 : vector<128x128xf32>
    %cst_39 = arith.constant 7.000000e+00 : f32
    %109 = vector.broadcast %cst_39 : f32 to vector<128x128xf32>
    %110 = arith.cmpf oeq, %13, %109 : vector<128x128xf32>
    %cst_40 = arith.constant 8.000000e+00 : f32
    %111 = vector.broadcast %cst_40 : f32 to vector<128x128xf32>
    %112 = arith.cmpf oeq, %13, %111 : vector<128x128xf32>
    %113 = arith.select %112, %24, %34 : vector<128x128xi1>, vector<128x128xf32>
    %114 = arith.select %110, %29, %113 : vector<128x128xi1>, vector<128x128xf32>
    %115 = arith.select %108, %33, %114 : vector<128x128xi1>, vector<128x128xf32>
    %116 = arith.select %106, %18, %115 : vector<128x128xi1>, vector<128x128xf32>
    %117 = arith.truncf %116 : vector<128x128xf32> to vector<128x128xbf16>
    %c0_41 = arith.constant 0 : index
    %c768 = arith.constant 768 : index
    %118 = vector.load %arg4[%c0_41, %c768] : memref<128x1152xbf16, #tpu.memory_space<vmem>>, vector<128x128xbf16>
    tpu.vector_store %arg4[%c0_41, %c768], %117 {strides = array<i32>} : memref<128x1152xbf16, #tpu.memory_space<vmem>>, vector<128x128xbf16>,
    %cst_42 = arith.constant 6.000000e+00 : f32
    %119 = vector.broadcast %cst_42 : f32 to vector<128x128xf32>
    %120 = arith.cmpf oeq, %13, %119 : vector<128x128xf32>
    %cst_43 = arith.constant 7.000000e+00 : f32
    %121 = vector.broadcast %cst_43 : f32 to vector<128x128xf32>
    %122 = arith.cmpf oeq, %13, %121 : vector<128x128xf32>
    %cst_44 = arith.constant 8.000000e+00 : f32
    %123 = vector.broadcast %cst_44 : f32 to vector<128x128xf32>
    %124 = arith.cmpf oeq, %13, %123 : vector<128x128xf32>
    %cst_45 = arith.constant 9.000000e+00 : f32
    %125 = vector.broadcast %cst_45 : f32 to vector<128x128xf32>
    %126 = arith.cmpf oeq, %13, %125 : vector<128x128xf32>
    %127 = arith.select %126, %24, %34 : vector<128x128xi1>, vector<128x128xf32>
    %128 = arith.select %124, %29, %127 : vector<128x128xi1>, vector<128x128xf32>
    %129 = arith.select %122, %33, %128 : vector<128x128xi1>, vector<128x128xf32>
    %130 = arith.select %120, %18, %129 : vector<128x128xi1>, vector<128x128xf32>
    %131 = arith.truncf %130 : vector<128x128xf32> to vector<128x128xbf16>
    %c0_46 = arith.constant 0 : index
    %c896 = arith.constant 896 : index
    %132 = vector.load %arg4[%c0_46, %c896] : memref<128x1152xbf16, #tpu.memory_space<vmem>>, vector<128x128xbf16>
    tpu.vector_store %arg4[%c0_46, %c896], %131 {strides = array<i32>} : memref<128x1152xbf16, #tpu.memory_space<vmem>>, vector<128x128xbf16>,
    %cst_47 = arith.constant 7.000000e+00 : f32
    %133 = vector.broadcast %cst_47 : f32 to vector<128x128xf32>
    %134 = arith.cmpf oeq, %13, %133 : vector<128x128xf32>
    %cst_48 = arith.constant 8.000000e+00 : f32
    %135 = vector.broadcast %cst_48 : f32 to vector<128x128xf32>
    %136 = arith.cmpf oeq, %13, %135 : vector<128x128xf32>
    %cst_49 = arith.constant 9.000000e+00 : f32
    %137 = vector.broadcast %cst_49 : f32 to vector<128x128xf32>
    %138 = arith.cmpf oeq, %13, %137 : vector<128x128xf32>
    %cst_50 = arith.constant 1.000000e+01 : f32
    %139 = vector.broadcast %cst_50 : f32 to vector<128x128xf32>
    %140 = arith.cmpf oeq, %13, %139 : vector<128x128xf32>
    %141 = arith.select %140, %24, %34 : vector<128x128xi1>, vector<128x128xf32>
    %142 = arith.select %138, %29, %141 : vector<128x128xi1>, vector<128x128xf32>
    %143 = arith.select %136, %33, %142 : vector<128x128xi1>, vector<128x128xf32>
    %144 = arith.select %134, %18, %143 : vector<128x128xi1>, vector<128x128xf32>
    %145 = arith.truncf %144 : vector<128x128xf32> to vector<128x128xbf16>
    %c0_51 = arith.constant 0 : index
    %c1024 = arith.constant 1024 : index
    %146 = vector.load %arg4[%c0_51, %c1024] : memref<128x1152xbf16, #tpu.memory_space<vmem>>, vector<128x128xbf16>
    tpu.vector_store %arg4[%c0_51, %c1024], %145 {strides = array<i32>} : memref<128x1152xbf16, #tpu.memory_space<vmem>>, vector<128x128xbf16>,
    %c0_52 = arith.constant 0 : index
    %c0_53 = arith.constant 0 : index
    %147 = vector.load %arg4[%c0_52, %c0_53] : memref<128x1152xbf16, #tpu.memory_space<vmem>>, vector<128x1152xbf16>
    %c0_54 = arith.constant 0 : index
    %c0_55 = arith.constant 0 : index
    %148 = vector.load %arg2[%c0_54, %c0_55] : memref<1152x128xbf16, #tpu.memory_space<vmem>>, vector<1152x128xbf16>
    %cst_56 = arith.constant dense<0.000000e+00> : vector<128x128xf32>
    %149 = tpu.matmul %147, %148, %cst_56 {dimension_numbers = #tpu.dot_dimension_numbers<[1], [0], [0], [1], [0, 0, 1, 1], [], []>} : vector<128x1152xbf16>, vector<1152x128xbf16>, vector<128x128xf32> -> vector<128x128xf32>
    %150 = arith.truncf %149 : vector<128x128xf32> to vector<128x128xbf16>
    %c0_57 = arith.constant 0 : index
    %c0_58 = arith.constant 0 : index
    %151 = vector.load %arg3[%c0_57, %c0_58] : memref<128x128xbf16, #tpu.memory_space<vmem>>, vector<128x128xbf16>
    tpu.vector_store %arg3[%c0_57, %c0_58], %150 {strides = array<i32>} : memref<128x128xbf16, #tpu.memory_space<vmem>>, vector<128x128xbf16>,
    return
  }
  func.func @transform_0(%arg0: i32) -> (i32, i32) {
    %c0_i32 = arith.constant 0 : i32
    %c0_i32_0 = arith.constant 0 : i32
    return %arg0, %c0_i32 : i32, i32
  }
  func.func @transform_1(%arg0: i32) -> (i32, i32) {
    %c0_i32 = arith.constant 0 : i32
    %c0_i32_0 = arith.constant 0 : i32
    %c0_i32_1 = arith.constant 0 : i32
    return %c0_i32, %c0_i32_0 : i32, i32
  }
  func.func @transform_2(%arg0: i32) -> (i32, i32) {
    %c0_i32 = arith.constant 0 : i32
    %c0_i32_0 = arith.constant 0 : i32
    return %arg0, %c0_i32 : i32, i32
  }
}

module attributes {stable_mosaic.version = 11 : i64} {
  func.func @_kan_linear_kernel(%arg0: i32, %arg1: memref<128x128xbf16, #tpu.memory_space<vmem>>, %arg2: memref<1152x128xbf16, #tpu.memory_space<vmem>>, %arg3: memref<128x128xbf16, #tpu.memory_space<vmem>>, %arg4: memref<128x1152xbf16, #tpu.memory_space<vmem>>) attributes {dimension_semantics = [#tpu.dimension_semantics<parallel>], iteration_bounds = array<i64: 1>, scalar_prefetch = 0 : i64, scratch_operands = 1 : i64, tpu.core_type = #tpu.core_type<tc>, window_params = [{transform_indices = @transform_0, window_bounds = array<i64: 128, 128>}, {pipeline_mode = #tpu.pipeline_mode<synchronous>, transform_indices = @transform_1, window_bounds = array<i64: 1152, 128>}, {transform_indices = @transform_2, window_bounds = array<i64: 128, 128>}]} {
    %c0 = arith.constant 0 : index
    %c0_0 = arith.constant 0 : index
    %0 = vector.load %arg1[%c0, %c0_0] : memref<128x128xbf16, #tpu.memory_space<vmem>>, vector<128x128xbf16>
    %1 = arith.extf %0 : vector<128x128xbf16> to vector<128x128xf32>
    %2 = arith.negf %1 : vector<128x128xf32>
    %3 = math.exp %2 : vector<128x128xf32>
    %cst = arith.constant 1.000000e+00 : f32
    %4 = vector.broadcast %cst : f32 to vector<128x128xf32>
    %5 = arith.addf %4, %3 : vector<128x128xf32>
    %6 = arith.divf %4, %5 : vector<128x128xf32>
    %7 = arith.mulf %1, %6 : vector<128x128xf32>
    %8 = arith.truncf %7 : vector<128x128xf32> to vector<128x128xbf16>
    %c0_1 = arith.constant 0 : index
    %c0_2 = arith.constant 0 : index
    %9 = vector.load %arg4[%c0_1, %c0_2] : memref<128x1152xbf16, #tpu.memory_space<vmem>>, vector<128x128xbf16>
    tpu.vector_store %arg4[%c0_1, %c0_2], %8 {strides = array<i32>} : memref<128x1152xbf16, #tpu.memory_space<vmem>>, vector<128x128xbf16>,
    %cst_3 = arith.constant -2.200000e+00 : f32
    %10 = vector.broadcast %cst_3 : f32 to vector<128x128xf32>
    %11 = arith.subf %1, %10 : vector<128x128xf32>
    %cst_4 = arith.constant 2.500000e+00 : f32
    %12 = vector.broadcast %cst_4 : f32 to vector<128x128xf32>
    %13 = arith.mulf %11, %12 : vector<128x128xf32>
    %14 = math.floor %13 : vector<128x128xf32>
    %15 = arith.subf %13, %14 : vector<128x128xf32>
    %16 = arith.mulf %15, %15 : vector<128x128xf32>
    %17 = arith.mulf %16, %15 : vector<128x128xf32>
    %cst_5 = arith.constant 0.166666672 : f32
    %18 = vector.broadcast %cst_5 : f32 to vector<128x128xf32>
    %19 = arith.mulf %17, %18 : vector<128x128xf32>
    %cst_6 = arith.constant 1.000000e+00 : f32
    %20 = vector.broadcast %cst_6 : f32 to vector<128x128xf32>
    %21 = arith.subf %20, %15 : vector<128x128xf32>
    %22 = arith.mulf %21, %21 : vector<128x128xf32>
    %23 = arith.mulf %22, %21 : vector<128x128xf32>
    %cst_7 = arith.constant 0.166666672 : f32
    %24 = vector.broadcast %cst_7 : f32 to vector<128x128xf32>
    %25 = arith.mulf %23, %24 : vector<128x128xf32>
    %cst_8 = arith.constant 5.000000e-01 : f32
    %26 = vector.broadcast %cst_8 : f32 to vector<128x128xf32>
    %27 = arith.mulf %26, %17 : vector<128x128xf32>
    %28 = arith.subf %27, %16 : vector<128x128xf32>
    %cst_9 = arith.constant 0.666666686 : f32
    %29 = vector.broadcast %cst_9 : f32 to vector<128x128xf32>
    %30 = arith.addf %28, %29 : vector<128x128xf32>
    %cst_10 = arith.constant 1.000000e+00 : f32
    %31 = vector.broadcast %cst_10 : f32 to vector<128x128xf32>
    %32 = arith.subf %31, %19 : vector<128x128xf32>
    %33 = arith.subf %32, %30 : vector<128x128xf32>
    %34 = arith.subf %33, %25 : vector<128x128xf32>
    %cst_11 = arith.constant 0.000000e+00 : f32
    %35 = vector.broadcast %cst_11 : f32 to vector<128x128xf32>
    %cst_12 = arith.constant 0.000000e+00 : f32
    %36 = vector.broadcast %cst_12 : f32 to vector<128x128xf32>
    %37 = arith.cmpf oeq, %14, %36 : vector<128x128xf32>
    %cst_13 = arith.constant 1.000000e+00 : f32
    %38 = vector.broadcast %cst_13 : f32 to vector<128x128xf32>
    %39 = arith.cmpf oeq, %14, %38 : vector<128x128xf32>
    %cst_14 = arith.constant 2.000000e+00 : f32
    %40 = vector.broadcast %cst_14 : f32 to vector<128x128xf32>
    %41 = arith.cmpf oeq, %14, %40 : vector<128x128xf32>
    %cst_15 = arith.constant 3.000000e+00 : f32
    %42 = vector.broadcast %cst_15 : f32 to vector<128x128xf32>
    %43 = arith.cmpf oeq, %14, %42 : vector<128x128xf32>
    %44 = arith.select %43, %25, %35 : vector<128x128xi1>, vector<128x128xf32>
    %45 = arith.select %41, %30, %44 : vector<128x128xi1>, vector<128x128xf32>
    %46 = arith.select %39, %34, %45 : vector<128x128xi1>, vector<128x128xf32>
    %47 = arith.select %37, %19, %46 : vector<128x128xi1>, vector<128x128xf32>
    %48 = arith.truncf %47 : vector<128x128xf32> to vector<128x128xbf16>
    %c0_16 = arith.constant 0 : index
    %c128 = arith.constant 128 : index
    %49 = vector.load %arg4[%c0_16, %c128] : memref<128x1152xbf16, #tpu.memory_space<vmem>>, vector<128x128xbf16>
    tpu.vector_store %arg4[%c0_16, %c128], %48 {strides = array<i32>} : memref<128x1152xbf16, #tpu.memory_space<vmem>>, vector<128x128xbf16>,
    %cst_17 = arith.constant 1.000000e+00 : f32
    %50 = vector.broadcast %cst_17 : f32 to vector<128x128xf32>
    %51 = arith.cmpf oeq, %14, %50 : vector<128x128xf32>
    %cst_18 = arith.constant 2.000000e+00 : f32
    %52 = vector.broadcast %cst_18 : f32 to vector<128x128xf32>
    %53 = arith.cmpf oeq, %14, %52 : vector<128x128xf32>
    %cst_19 = arith.constant 3.000000e+00 : f32
    %54 = vector.broadcast %cst_19 : f32 to vector<128x128xf32>
    %55 = arith.cmpf oeq, %14, %54 : vector<128x128xf32>
    %cst_20 = arith.constant 4.000000e+00 : f32
    %56 = vector.broadcast %cst_20 : f32 to vector<128x128xf32>
    %57 = arith.cmpf oeq, %14, %56 : vector<128x128xf32>
    %58 = arith.select %57, %25, %35 : vector<128x128xi1>, vector<128x128xf32>
    %59 = arith.select %55, %30, %58 : vector<128x128xi1>, vector<128x128xf32>
    %60 = arith.select %53, %34, %59 : vector<128x128xi1>, vector<128x128xf32>
    %61 = arith.select %51, %19, %60 : vector<128x128xi1>, vector<128x128xf32>
    %62 = arith.truncf %61 : vector<128x128xf32> to vector<128x128xbf16>
    %c0_21 = arith.constant 0 : index
    %c256 = arith.constant 256 : index
    %63 = vector.load %arg4[%c0_21, %c256] : memref<128x1152xbf16, #tpu.memory_space<vmem>>, vector<128x128xbf16>
    tpu.vector_store %arg4[%c0_21, %c256], %62 {strides = array<i32>} : memref<128x1152xbf16, #tpu.memory_space<vmem>>, vector<128x128xbf16>,
    %cst_22 = arith.constant 2.000000e+00 : f32
    %64 = vector.broadcast %cst_22 : f32 to vector<128x128xf32>
    %65 = arith.cmpf oeq, %14, %64 : vector<128x128xf32>
    %cst_23 = arith.constant 3.000000e+00 : f32
    %66 = vector.broadcast %cst_23 : f32 to vector<128x128xf32>
    %67 = arith.cmpf oeq, %14, %66 : vector<128x128xf32>
    %cst_24 = arith.constant 4.000000e+00 : f32
    %68 = vector.broadcast %cst_24 : f32 to vector<128x128xf32>
    %69 = arith.cmpf oeq, %14, %68 : vector<128x128xf32>
    %cst_25 = arith.constant 5.000000e+00 : f32
    %70 = vector.broadcast %cst_25 : f32 to vector<128x128xf32>
    %71 = arith.cmpf oeq, %14, %70 : vector<128x128xf32>
    %72 = arith.select %71, %25, %35 : vector<128x128xi1>, vector<128x128xf32>
    %73 = arith.select %69, %30, %72 : vector<128x128xi1>, vector<128x128xf32>
    %74 = arith.select %67, %34, %73 : vector<128x128xi1>, vector<128x128xf32>
    %75 = arith.select %65, %19, %74 : vector<128x128xi1>, vector<128x128xf32>
    %76 = arith.truncf %75 : vector<128x128xf32> to vector<128x128xbf16>
    %c0_26 = arith.constant 0 : index
    %c384 = arith.constant 384 : index
    %77 = vector.load %arg4[%c0_26, %c384] : memref<128x1152xbf16, #tpu.memory_space<vmem>>, vector<128x128xbf16>
    tpu.vector_store %arg4[%c0_26, %c384], %76 {strides = array<i32>} : memref<128x1152xbf16, #tpu.memory_space<vmem>>, vector<128x128xbf16>,
    %cst_27 = arith.constant 3.000000e+00 : f32
    %78 = vector.broadcast %cst_27 : f32 to vector<128x128xf32>
    %79 = arith.cmpf oeq, %14, %78 : vector<128x128xf32>
    %cst_28 = arith.constant 4.000000e+00 : f32
    %80 = vector.broadcast %cst_28 : f32 to vector<128x128xf32>
    %81 = arith.cmpf oeq, %14, %80 : vector<128x128xf32>
    %cst_29 = arith.constant 5.000000e+00 : f32
    %82 = vector.broadcast %cst_29 : f32 to vector<128x128xf32>
    %83 = arith.cmpf oeq, %14, %82 : vector<128x128xf32>
    %cst_30 = arith.constant 6.000000e+00 : f32
    %84 = vector.broadcast %cst_30 : f32 to vector<128x128xf32>
    %85 = arith.cmpf oeq, %14, %84 : vector<128x128xf32>
    %86 = arith.select %85, %25, %35 : vector<128x128xi1>, vector<128x128xf32>
    %87 = arith.select %83, %30, %86 : vector<128x128xi1>, vector<128x128xf32>
    %88 = arith.select %81, %34, %87 : vector<128x128xi1>, vector<128x128xf32>
    %89 = arith.select %79, %19, %88 : vector<128x128xi1>, vector<128x128xf32>
    %90 = arith.truncf %89 : vector<128x128xf32> to vector<128x128xbf16>
    %c0_31 = arith.constant 0 : index
    %c512 = arith.constant 512 : index
    %91 = vector.load %arg4[%c0_31, %c512] : memref<128x1152xbf16, #tpu.memory_space<vmem>>, vector<128x128xbf16>
    tpu.vector_store %arg4[%c0_31, %c512], %90 {strides = array<i32>} : memref<128x1152xbf16, #tpu.memory_space<vmem>>, vector<128x128xbf16>,
    %cst_32 = arith.constant 4.000000e+00 : f32
    %92 = vector.broadcast %cst_32 : f32 to vector<128x128xf32>
    %93 = arith.cmpf oeq, %14, %92 : vector<128x128xf32>
    %cst_33 = arith.constant 5.000000e+00 : f32
    %94 = vector.broadcast %cst_33 : f32 to vector<128x128xf32>
    %95 = arith.cmpf oeq, %14, %94 : vector<128x128xf32>
    %cst_34 = arith.constant 6.000000e+00 : f32
    %96 = vector.broadcast %cst_34 : f32 to vector<128x128xf32>
    %97 = arith.cmpf oeq, %14, %96 : vector<128x128xf32>
    %cst_35 = arith.constant 7.000000e+00 : f32
    %98 = vector.broadcast %cst_35 : f32 to vector<128x128xf32>
    %99 = arith.cmpf oeq, %14, %98 : vector<128x128xf32>
    %100 = arith.select %99, %25, %35 : vector<128x128xi1>, vector<128x128xf32>
    %101 = arith.select %97, %30, %100 : vector<128x128xi1>, vector<128x128xf32>
    %102 = arith.select %95, %34, %101 : vector<128x128xi1>, vector<128x128xf32>
    %103 = arith.select %93, %19, %102 : vector<128x128xi1>, vector<128x128xf32>
    %104 = arith.truncf %103 : vector<128x128xf32> to vector<128x128xbf16>
    %c0_36 = arith.constant 0 : index
    %c640 = arith.constant 640 : index
    %105 = vector.load %arg4[%c0_36, %c640] : memref<128x1152xbf16, #tpu.memory_space<vmem>>, vector<128x128xbf16>
    tpu.vector_store %arg4[%c0_36, %c640], %104 {strides = array<i32>} : memref<128x1152xbf16, #tpu.memory_space<vmem>>, vector<128x128xbf16>,
    %cst_37 = arith.constant 5.000000e+00 : f32
    %106 = vector.broadcast %cst_37 : f32 to vector<128x128xf32>
    %107 = arith.cmpf oeq, %14, %106 : vector<128x128xf32>
    %cst_38 = arith.constant 6.000000e+00 : f32
    %108 = vector.broadcast %cst_38 : f32 to vector<128x128xf32>
    %109 = arith.cmpf oeq, %14, %108 : vector<128x128xf32>
    %cst_39 = arith.constant 7.000000e+00 : f32
    %110 = vector.broadcast %cst_39 : f32 to vector<128x128xf32>
    %111 = arith.cmpf oeq, %14, %110 : vector<128x128xf32>
    %cst_40 = arith.constant 8.000000e+00 : f32
    %112 = vector.broadcast %cst_40 : f32 to vector<128x128xf32>
    %113 = arith.cmpf oeq, %14, %112 : vector<128x128xf32>
    %114 = arith.select %113, %25, %35 : vector<128x128xi1>, vector<128x128xf32>
    %115 = arith.select %111, %30, %114 : vector<128x128xi1>, vector<128x128xf32>
    %116 = arith.select %109, %34, %115 : vector<128x128xi1>, vector<128x128xf32>
    %117 = arith.select %107, %19, %116 : vector<128x128xi1>, vector<128x128xf32>
    %118 = arith.truncf %117 : vector<128x128xf32> to vector<128x128xbf16>
    %c0_41 = arith.constant 0 : index
    %c768 = arith.constant 768 : index
    %119 = vector.load %arg4[%c0_41, %c768] : memref<128x1152xbf16, #tpu.memory_space<vmem>>, vector<128x128xbf16>
    tpu.vector_store %arg4[%c0_41, %c768], %118 {strides = array<i32>} : memref<128x1152xbf16, #tpu.memory_space<vmem>>, vector<128x128xbf16>,
    %cst_42 = arith.constant 6.000000e+00 : f32
    %120 = vector.broadcast %cst_42 : f32 to vector<128x128xf32>
    %121 = arith.cmpf oeq, %14, %120 : vector<128x128xf32>
    %cst_43 = arith.constant 7.000000e+00 : f32
    %122 = vector.broadcast %cst_43 : f32 to vector<128x128xf32>
    %123 = arith.cmpf oeq, %14, %122 : vector<128x128xf32>
    %cst_44 = arith.constant 8.000000e+00 : f32
    %124 = vector.broadcast %cst_44 : f32 to vector<128x128xf32>
    %125 = arith.cmpf oeq, %14, %124 : vector<128x128xf32>
    %cst_45 = arith.constant 9.000000e+00 : f32
    %126 = vector.broadcast %cst_45 : f32 to vector<128x128xf32>
    %127 = arith.cmpf oeq, %14, %126 : vector<128x128xf32>
    %128 = arith.select %127, %25, %35 : vector<128x128xi1>, vector<128x128xf32>
    %129 = arith.select %125, %30, %128 : vector<128x128xi1>, vector<128x128xf32>
    %130 = arith.select %123, %34, %129 : vector<128x128xi1>, vector<128x128xf32>
    %131 = arith.select %121, %19, %130 : vector<128x128xi1>, vector<128x128xf32>
    %132 = arith.truncf %131 : vector<128x128xf32> to vector<128x128xbf16>
    %c0_46 = arith.constant 0 : index
    %c896 = arith.constant 896 : index
    %133 = vector.load %arg4[%c0_46, %c896] : memref<128x1152xbf16, #tpu.memory_space<vmem>>, vector<128x128xbf16>
    tpu.vector_store %arg4[%c0_46, %c896], %132 {strides = array<i32>} : memref<128x1152xbf16, #tpu.memory_space<vmem>>, vector<128x128xbf16>,
    %cst_47 = arith.constant 7.000000e+00 : f32
    %134 = vector.broadcast %cst_47 : f32 to vector<128x128xf32>
    %135 = arith.cmpf oeq, %14, %134 : vector<128x128xf32>
    %cst_48 = arith.constant 8.000000e+00 : f32
    %136 = vector.broadcast %cst_48 : f32 to vector<128x128xf32>
    %137 = arith.cmpf oeq, %14, %136 : vector<128x128xf32>
    %cst_49 = arith.constant 9.000000e+00 : f32
    %138 = vector.broadcast %cst_49 : f32 to vector<128x128xf32>
    %139 = arith.cmpf oeq, %14, %138 : vector<128x128xf32>
    %cst_50 = arith.constant 1.000000e+01 : f32
    %140 = vector.broadcast %cst_50 : f32 to vector<128x128xf32>
    %141 = arith.cmpf oeq, %14, %140 : vector<128x128xf32>
    %142 = arith.select %141, %25, %35 : vector<128x128xi1>, vector<128x128xf32>
    %143 = arith.select %139, %30, %142 : vector<128x128xi1>, vector<128x128xf32>
    %144 = arith.select %137, %34, %143 : vector<128x128xi1>, vector<128x128xf32>
    %145 = arith.select %135, %19, %144 : vector<128x128xi1>, vector<128x128xf32>
    %146 = arith.truncf %145 : vector<128x128xf32> to vector<128x128xbf16>
    %c0_51 = arith.constant 0 : index
    %c1024 = arith.constant 1024 : index
    %147 = vector.load %arg4[%c0_51, %c1024] : memref<128x1152xbf16, #tpu.memory_space<vmem>>, vector<128x128xbf16>
    tpu.vector_store %arg4[%c0_51, %c1024], %146 {strides = array<i32>} : memref<128x1152xbf16, #tpu.memory_space<vmem>>, vector<128x128xbf16>,
    %c0_52 = arith.constant 0 : index
    %c0_53 = arith.constant 0 : index
    %148 = vector.load %arg4[%c0_52, %c0_53] : memref<128x1152xbf16, #tpu.memory_space<vmem>>, vector<128x1152xbf16>
    %c0_54 = arith.constant 0 : index
    %c0_55 = arith.constant 0 : index
    %149 = vector.load %arg2[%c0_54, %c0_55] : memref<1152x128xbf16, #tpu.memory_space<vmem>>, vector<1152x128xbf16>
    %cst_56 = arith.constant dense<0.000000e+00> : vector<128x128xf32>
    %150 = tpu.matmul %148, %149, %cst_56 {dimension_numbers = #tpu.dot_dimension_numbers<[1], [0], [0], [1], [0, 0, 1, 1], [], []>} : vector<128x1152xbf16>, vector<1152x128xbf16>, vector<128x128xf32> -> vector<128x128xf32>
    %151 = arith.truncf %150 : vector<128x128xf32> to vector<128x128xbf16>
    %c0_57 = arith.constant 0 : index
    %c0_58 = arith.constant 0 : index
    %152 = vector.load %arg3[%c0_57, %c0_58] : memref<128x128xbf16, #tpu.memory_space<vmem>>, vector<128x128xbf16>
    tpu.vector_store %arg3[%c0_57, %c0_58], %151 {strides = array<i32>} : memref<128x128xbf16, #tpu.memory_space<vmem>>, vector<128x128xbf16>,
    return
  }
  func.func @transform_0(%arg0: i32) -> (i32, i32) {
    %c0_i32 = arith.constant 0 : i32
    %c0_i32_0 = arith.constant 0 : i32
    return %arg0, %c0_i32 : i32, i32
  }
  func.func @transform_1(%arg0: i32) -> (i32, i32) {
    %c0_i32 = arith.constant 0 : i32
    %c0_i32_0 = arith.constant 0 : i32
    %c0_i32_1 = arith.constant 0 : i32
    return %c0_i32, %c0_i32_0 : i32, i32
  }
  func.func @transform_2(%arg0: i32) -> (i32, i32) {
    %c0_i32 = arith.constant 0 : i32
    %c0_i32_0 = arith.constant 0 : i32
    return %arg0, %c0_i32 : i32, i32
  }
}

</mosaic_0001>

<llo_original>
// kernel: _lambda_.7
$region0: #{_lambda_.7}
  #allocation0 [shape = 'u32[]', space=smem, size = 0x4, offset = 0x4, fixed_abs, tag = 'smem constant byte address 0x4 - core index']
  #allocation1 [shape = 'u32[144,128]{1,0:T(1,128)}', space=vmem, size = 0x12000, scoped, tag = 'internal scratch']
  #allocation2 [shape = 'f32[10,10,128]{2,1,0:T(8,128)}', space=vmem, size = 0x14000, scoped, tag = 'scratch operand']
  %s0 = inlined_call_operand.vmem [shape: bf16[2,8,8,128], index: 0, kind: input, shape index: {}]
  %s1 = inlined_call_operand.vmem [shape: f32[9,128], index: 1, kind: input, shape index: {}]
  %s2 = inlined_call_operand.vmem [shape: f32[1,128], index: 2, kind: input, shape index: {}]
  %s3 = inlined_call_operand.vmem [shape: f32[1,128], index: 3, kind: input, shape index: {}]
  %s4 = inlined_call_operand.vmem [shape: bf16[2,8,8,128], index: 4, kind: output, shape index: {}]
  %s5 = sld [smem:[#allocation0]]
  $region49: #{_lambda_.7} parent=0
    _
  %s7 = ssub.s32 1, %s5
  %s8 = scalar_select 0, %s7, %s5
  loop: start=0, step=1, limit=4
  $region2: #{_lambda_.7} parent=0 // loop_pre_header
    _
  $region3: #{_lambda_.7} parent=0 // loop_header
    %s10 = sphi 0, %s14
    %p11 = scmp.ge.s32.totalorder %s10, 4
    %s17 = sphi 0, %s29
    %s18 = sphi 0, %s25
    %s19 = sphi 0, %s17
    %s20 = sphi 0, %s18
    %s21 = sphi 0, %s19
    %s22 = sphi 0, %s20
    %s34 = sphi 0, %s36
    %s37 = sphi 0, %s34
    %s38 = sphi 0, %s37
    %s54 = sphi 0, %s38
    %s60 = sphi 0, %s62
    %s63 = sphi 0, %s60
    %s64 = sphi 0, %s63
    %s80 = sphi 0, %s64
    %s86 = sphi 0, %s88
    %s89 = sphi 0, %s86
    %s90 = sphi 0, %s89
    %s106 = sphi 0, %s90
    %s112 = sphi 0, %s114
    %s115 = sphi 0, %s112
    %s116 = sphi 0, %s115
    %s132 = sphi 0, %s116
    %s140 = sphi 0, %s142
    %s143 = sphi 0, %s140
    %s144 = sphi 0, %s143
    %s160 = sphi 0, %s144
  $region4: #{_lambda_.7} parent=0 // loop_header_branch
    %13 = sbr.rel (%p11) target = $region8
  $region5: #{_lambda_.7} parent=0 // loop_body
    %s15 = ssub.s32 %s10, 1
    %s16 = ssub.s32 %s10, 2
    %s23 = sadd.s32 1, %s18
    %p24 = scmp.ge.s32.totalorder %s23, 1
    %s25 = scalar_select %p24, 0, %s23
    %s26 = sadd.s32 1, %s17
    %s27 = scalar_select %p24, %s26, %s17
    %p28 = scmp.ge.s32.totalorder %s27, 2
    %s29 = scalar_select %p28, 0, %s27
    %s30 = ssub.s32 %s17, %s29
    %s31 = ssub.s32 %s18, %s25
    %s32 = sor.u32 %s30, %s31
    %p33 = scmp.eq.s32.totalorder %s32, 0
    %s35 = sadd.s32 %s34, 1
    %s36 = scalar_select %p33, %s34, %s35
    %p39 = pneg %p33
    %p40 = scmp.eq.s32.totalorder %s10, 1
    %p41 = por %p39, %p40
    %p42 = scmp.ne.s32.totalorder %s34, %s37
    %p43 = scmp.eq.s32.totalorder %s10, 0
    %p44 = por %p42, %p43
    %p45 = scmp.ne.s32.totalorder %s34, %s37
    %p46 = scmp.eq.s32.totalorder %s15, 1
    %p47 = por %p45, %p46
    %p48 = scmp.ne.s32.totalorder %s37, %s38
    %p49 = scmp.eq.s32.totalorder %s15, 0
    %p50 = por %p48, %p49
    %p51 = scmp.ne.s32.totalorder %s37, %s38
    %p52 = scmp.eq.s32.totalorder %s16, 1
    %p53 = por %p51, %p52
    %p55 = scmp.ne.s32.totalorder %s38, %s54
    %p56 = scmp.eq.s32.totalorder %s16, 0
    %p57 = por %p55, %p56
    %s58 = ssub.s32 %s18, %s25
    %p59 = scmp.eq.s32.totalorder %s58, 0
    %s61 = sadd.s32 %s60, 1
    %s62 = scalar_select %p59, %s60, %s61
    %p65 = pneg %p59
    %p66 = scmp.eq.s32.totalorder %s10, 1
    %p67 = por %p65, %p66
    %p68 = scmp.ne.s32.totalorder %s60, %s63
    %p69 = scmp.eq.s32.totalorder %s10, 0
    %p70 = por %p68, %p69
    %p71 = scmp.ne.s32.totalorder %s60, %s63
    %p72 = scmp.eq.s32.totalorder %s15, 1
    %p73 = por %p71, %p72
    %p74 = scmp.ne.s32.totalorder %s63, %s64
    %p75 = scmp.eq.s32.totalorder %s15, 0
    %p76 = por %p74, %p75
    %p77 = scmp.ne.s32.totalorder %s63, %s64
    %p78 = scmp.eq.s32.totalorder %s16, 1
    %p79 = por %p77, %p78
    %p81 = scmp.ne.s32.totalorder %s64, %s80
    %p82 = scmp.eq.s32.totalorder %s16, 0
    %p83 = por %p81, %p82
    %s84 = ssub.s32 %s18, %s25
    %p85 = scmp.eq.s32.totalorder %s84, 0
    %s87 = sadd.s32 %s86, 1
    %s88 = scalar_select %p85, %s86, %s87
    %p91 = pneg %p85
    %p92 = scmp.eq.s32.totalorder %s10, 1
    %p93 = por %p91, %p92
    %p94 = scmp.ne.s32.totalorder %s86, %s89
    %p95 = scmp.eq.s32.totalorder %s10, 0
    %p96 = por %p94, %p95
    %p97 = scmp.ne.s32.totalorder %s86, %s89
    %p98 = scmp.eq.s32.totalorder %s15, 1
    %p99 = por %p97, %p98
    %p100 = scmp.ne.s32.totalorder %s89, %s90
    %p101 = scmp.eq.s32.totalorder %s15, 0
    %p102 = por %p100, %p101
    %p103 = scmp.ne.s32.totalorder %s89, %s90
    %p104 = scmp.eq.s32.totalorder %s16, 1
    %p105 = por %p103, %p104
    %p107 = scmp.ne.s32.totalorder %s90, %s106
    %p108 = scmp.eq.s32.totalorder %s16, 0
    %p109 = por %p107, %p108
    %s110 = ssub.s32 %s18, %s25
    %p111 = scmp.eq.s32.totalorder %s110, 0
    %s113 = sadd.s32 %s112, 1
    %s114 = scalar_select %p111, %s112, %s113
    %p117 = pneg %p111
    %p118 = scmp.eq.s32.totalorder %s10, 1
    %p119 = por %p117, %p118
    %p120 = scmp.ne.s32.totalorder %s112, %s115
    %p121 = scmp.eq.s32.totalorder %s10, 0
    %p122 = por %p120, %p121
    %p123 = scmp.ne.s32.totalorder %s112, %s115
    %p124 = scmp.eq.s32.totalorder %s15, 1
    %p125 = por %p123, %p124
    %p126 = scmp.ne.s32.totalorder %s115, %s116
    %p127 = scmp.eq.s32.totalorder %s15, 0
    %p128 = por %p126, %p127
    %p129 = scmp.ne.s32.totalorder %s115, %s116
    %p130 = scmp.eq.s32.totalorder %s16, 1
    %p131 = por %p129, %p130
    %p133 = scmp.ne.s32.totalorder %s116, %s132
    %p134 = scmp.eq.s32.totalorder %s16, 0
    %p135 = por %p133, %p134
    %s136 = ssub.s32 %s17, %s29
    %s137 = ssub.s32 %s18, %s25
    %s138 = sor.u32 %s136, %s137
    %p139 = scmp.eq.s32.totalorder %s138, 0
    %s141 = sadd.s32 %s140, 1
    %s142 = scalar_select %p139, %s140, %s141
    %p145 = pneg %p139
    %p146 = scmp.eq.s32.totalorder %s10, 1
    %p147 = por %p145, %p146
    %p148 = scmp.ne.s32.totalorder %s140, %s143
    %p149 = scmp.eq.s32.totalorder %s10, 0
    %p150 = por %p148, %p149
    %p151 = scmp.ne.s32.totalorder %s140, %s143
    %p152 = scmp.eq.s32.totalorder %s15, 1
    %p153 = por %p151, %p152
    %p154 = scmp.ne.s32.totalorder %s143, %s144
    %p155 = scmp.eq.s32.totalorder %s15, 0
    %p156 = por %p154, %p155
    %p157 = scmp.ne.s32.totalorder %s143, %s144
    %p158 = scmp.eq.s32.totalorder %s16, 1
    %p159 = por %p157, %p158
    %p161 = scmp.ne.s32.totalorder %s144, %s160
    %p162 = scmp.eq.s32.totalorder %s16, 0
    %p163 = por %p161, %p162
    %p164 = scmp.le.s32.totalorder 1, %s10
    %p165 = scmp.lt.s32.totalorder %s10, 3
    %p166 = pnand %p164, %p165
    %p167 = pneg %p166
    // Predicated region
    $region9: #{_lambda_.7} parent=5 // pred_check
      _
    $region10: #{_lambda_.7} parent=5 // pred_check_branch
      %169 = sbr.rel (%p166) target = $region12
    $region11: #{_lambda_.7} parent=5 // pred_region
      %s170 = ssub.s32 %s10, 1
      // Predicated region
      $region13: #{_lambda_.7} parent=11 // pred_check
        %p171 = pneg %p76
      $region14: #{_lambda_.7} parent=11 // pred_check_branch
        %173 = sbr.rel (%p171) target = $region16
      $region15: #{_lambda_.7} parent=11 // pred_region
        %p174 = scmp.lt.s32.totalorder %s20, 0
        %s175 = scalar_select %p174, %s20, 0
        %s176 = smul.addr %s175, 8
        %s177 = scalar_lea.vmem %s1, %s176
      $region16: #{_lambda_.7} parent=11 // pred_fallthru
        _
      // Predicated region
      $region17: #{_lambda_.7} parent=11 // pred_check
        %p178 = pneg %p102
      $region18: #{_lambda_.7} parent=11 // pred_check_branch
        %180 = sbr.rel (%p178) target = $region20
      $region19: #{_lambda_.7} parent=11 // pred_region
        %p181 = scmp.lt.s32.totalorder %s20, 0
        %s182 = scalar_select %p181, %s20, 0
        %s183 = scalar_lea.vmem %s2, %s182
      $region20: #{_lambda_.7} parent=11 // pred_fallthru
        _
      // Predicated region
      $region21: #{_lambda_.7} parent=11 // pred_check
        %p184 = pneg %p128
      $region22: #{_lambda_.7} parent=11 // pred_check_branch
        %186 = sbr.rel (%p184) target = $region24
      $region23: #{_lambda_.7} parent=11 // pred_region
        %p187 = scmp.lt.s32.totalorder %s20, 0
        %s188 = scalar_select %p187, %s20, 0
        %s189 = scalar_lea.vmem %s3, %s188
      $region24: #{_lambda_.7} parent=11 // pred_fallthru
        _
    $region12: #{_lambda_.7} parent=5 // pred_fallthru
      _
    %p190 = scmp.lt.s32.totalorder %s10, 2
    // Predicated region
    $region25: #{_lambda_.7} parent=5 // pred_check
      %p191 = pneg %p190
    $region26: #{_lambda_.7} parent=5 // pred_check_branch
      %193 = sbr.rel (%p191) target = $region28
    $region27: #{_lambda_.7} parent=5 // pred_region
      // Predicated region
      $region29: #{_lambda_.7} parent=27 // pred_check
        %p194 = pneg %p44
      $region30: #{_lambda_.7} parent=27 // pred_check_branch
        %196 = sbr.rel (%p194) target = $region32
      $region31: #{_lambda_.7} parent=27 // pred_region
        %p197 = scmp.lt.s32.totalorder %s17, 1
        %s198 = scalar_select %p197, %s17, 1
        %p199 = scmp.lt.s32.totalorder %s18, 0
        %s200 = scalar_select %p199, %s18, 0
        %s201 = smul.addr %s198, 8
        %s202 = sadd.s32 %s200, %s201
        %s203 = smul.addr %s202, 4
        %s204 = scalar_lea.vmem %s0, %s203
      $region32: #{_lambda_.7} parent=27 // pred_fallthru
        _
    $region28: #{_lambda_.7} parent=5 // pred_fallthru
      _
    %p205 = scmp.le.s32.totalorder 1, %s10
    %p206 = scmp.lt.s32.totalorder %s10, 3
    %p207 = pnand %p205, %p206
    %p208 = pneg %p207
    // Predicated region
    $region33: #{_lambda_.7} parent=5 // pred_check
      _
    $region34: #{_lambda_.7} parent=5 // pred_check_branch
      %210 = sbr.rel (%p207) target = $region36
    $region35: #{_lambda_.7} parent=5 // pred_region
      %s211 = ssub.s32 %s10, 1
      %p212 = scmp.lt.s32.totalorder %s19, 1
      %s213 = scalar_select %p212, %s19, 1
      %p214 = scmp.lt.s32.totalorder %s20, 0
      %s215 = scalar_select %p214, %s20, 0
      %s216 = smul.addr %s213, 8
      %s217 = sadd.s32 %s215, %s216
      %s218 = smul.addr %s217, 4
      %s219 = scalar_lea.vmem %s0, %s218
      %p220 = pneg %p50
      %p221 = pneg %p47
      %p222 = scmp.lt.s32.totalorder %s20, 0
      %s223 = scalar_select %p222, %s20, 0
      %s224 = smul.addr %s223, 8
      %s225 = scalar_lea.vmem %s1, %s224
      %p226 = pneg %p76
      %p227 = pneg %p73
      %p228 = scmp.lt.s32.totalorder %s20, 0
      %s229 = scalar_select %p228, %s20, 0
      %s230 = scalar_lea.vmem %s2, %s229
      %p231 = pneg %p102
      %p232 = pneg %p99
      %p233 = scmp.lt.s32.totalorder %s20, 0
      %s234 = scalar_select %p233, %s20, 0
      %s235 = scalar_lea.vmem %s3, %s234
      %p236 = pneg %p128
      %p237 = pneg %p125
      %p238 = pneg %p156
      %p239 = pneg %p153
      %p240 = scmp.lt.s32.totalorder %s19, 1
      %s241 = scalar_select %p240, %s19, 1
      %p242 = scmp.lt.s32.totalorder %s20, 0
      %s243 = scalar_select %p242, %s20, 0
      %s244 = smul.addr %s241, 8
      %s245 = sadd.s32 %s243, %s244
      %s246 = smul.addr %s245, 4
      %s247 = scalar_lea.vmem %s4, %s246
      %p248 = scmp.lt.s32.totalorder %s19, 1
      %s249 = scalar_select %p248, %s19, 1
      %p250 = scmp.lt.s32.totalorder %s20, 0
      %s251 = scalar_select %p250, %s20, 0
      %s252 = smul.addr %s249, 8
      %s253 = sadd.s32 %s251, %s252
      %s254 = smul.addr %s253, 4
      %s255 = scalar_lea.vmem %s0, %s254
      %p256 = scmp.lt.s32.totalorder %s20, 0
      %s257 = scalar_select %p256, %s20, 0
      %s258 = smul.addr %s257, 8
      %s259 = scalar_lea.vmem %s1, %s258
      %p260 = scmp.lt.s32.totalorder %s20, 0
      %s261 = scalar_select %p260, %s20, 0
      %s262 = scalar_lea.vmem %s2, %s261
      %p263 = scmp.lt.s32.totalorder %s20, 0
      %s264 = scalar_select %p263, %s20, 0
      %s265 = scalar_lea.vmem %s3, %s264
      %p266 = scmp.lt.s32.totalorder %s19, 1
      %s267 = scalar_select %p266, %s19, 1
      %p268 = scmp.lt.s32.totalorder %s20, 0
      %s269 = scalar_select %p268, %s20, 0
      %s270 = smul.addr %s267, 8
      %s271 = sadd.s32 %s269, %s270
      %s272 = smul.addr %s271, 4
      %s273 = scalar_lea.vmem %s4, %s272
      %274 = vst [vmem:[#allocation2] sm:$0xff] 0.0
      %275 = vst [vmem:[#allocation2 + $0x8] sm:$0x3] 0.0
      %s276 = scalar_lea.vmem [#allocation2], 144
      %277 = vst [vmem:[%s276] sm:$0xff] 0.0
      %278 = vst [vmem:[%s276 + $0x8] sm:$0x3] 0.0
      %s279 = scalar_lea.vmem [#allocation2], 16
      %280 = vst [vmem:[%s279] sm:$0x1] 0.0
      %281 = vst [vmem:[%s279 + $0x10] sm:$0x1] 0.0
      %282 = vst [vmem:[%s279 + $0x20] sm:$0x1] 0.0
      %283 = vst [vmem:[%s279 + $0x30] sm:$0x1] 0.0
      %284 = vst [vmem:[%s279 + $0x40] sm:$0x1] 0.0
      %285 = vst [vmem:[%s279 + $0x50] sm:$0x1] 0.0
      %286 = vst [vmem:[%s279 + $0x60] sm:$0x1] 0.0
      %287 = vst [vmem:[%s279 + $0x70] sm:$0x1] 0.0
      %288 = vst [vmem:[%s279 + $0x9] sm:$0x1] 0.0
      %289 = vst [vmem:[%s279 + $0x19] sm:$0x1] 0.0
      %290 = vst [vmem:[%s279 + $0x29] sm:$0x1] 0.0
      %291 = vst [vmem:[%s279 + $0x39] sm:$0x1] 0.0
      %292 = vst [vmem:[%s279 + $0x49] sm:$0x1] 0.0
      %293 = vst [vmem:[%s279 + $0x59] sm:$0x1] 0.0
      %294 = vst [vmem:[%s279 + $0x69] sm:$0x1] 0.0
      %295 = vst [vmem:[%s279 + $0x79] sm:$0x1] 0.0
      %v296 = vld [vmem:[%s255] sm:$0xf]
      %v297 = vld [vmem:[%s255 + $0x4] sm:$0xf]
      %v298 = vld [vmem:[%s255 + $0x8] sm:$0xf]
      %v299 = vld [vmem:[%s255 + $0xc] sm:$0xf]
      %v300 = vld [vmem:[%s255 + $0x10] sm:$0xf]
      %v301 = vld [vmem:[%s255 + $0x14] sm:$0xf]
      %v302 = vld [vmem:[%s255 + $0x18] sm:$0xf]
      %v303 = vld [vmem:[%s255 + $0x1c] sm:$0xf]
      %v304 = vunpack.c.l.bf16 %v296
      %v305 = vunpack.c.l.bf16 %v297
      %v306 = vunpack.c.l.bf16 %v298
      %v307 = vunpack.c.l.bf16 %v299
      %v308 = vunpack.c.l.bf16 %v300
      %v309 = vunpack.c.l.bf16 %v301
      %v310 = vunpack.c.l.bf16 %v302
      %v311 = vunpack.c.l.bf16 %v303
      %312 = vst [vmem:[%s279 + $0x1] sm:$0xff] %v304
      %313 = vst [vmem:[%s279 + $0x11] sm:$0xff] %v305
      %314 = vst [vmem:[%s279 + $0x21] sm:$0xff] %v306
      %315 = vst [vmem:[%s279 + $0x31] sm:$0xff] %v307
      %316 = vst [vmem:[%s279 + $0x41] sm:$0xff] %v308
      %317 = vst [vmem:[%s279 + $0x51] sm:$0xff] %v309
      %318 = vst [vmem:[%s279 + $0x61] sm:$0xff] %v310
      %319 = vst [vmem:[%s279 + $0x71] sm:$0xff] %v311
      %v320 = vld [vmem:[#allocation2] sm:$0xff]
      %v321 = vld [vmem:[#allocation2 + $0x10] sm:$0xff]
      %v322 = vld [vmem:[#allocation2 + $0x20] sm:$0xff]
      %v323 = vld [vmem:[#allocation2 + $0x30] sm:$0xff]
      %v324 = vld [vmem:[#allocation2 + $0x40] sm:$0xff]
      %v325 = vld [vmem:[#allocation2 + $0x50] sm:$0xff]
      %v326 = vld [vmem:[#allocation2 + $0x60] sm:$0xff]
      %v327 = vld [vmem:[#allocation2 + $0x70] sm:$0xff]
      %v328 = vld [vmem:[%s259] sm:$0x1]
      %v329 = vlaneseq
      %v330 = vshrl.u32 %v329, 7
      %v331 = vsub.s32 0, %v330
      %v332 = vrot.slane %v328, %v331
      %v333 = vmul.f32 %v320, %v332
      %v334 = vmul.f32 %v321, %v332
      %v335 = vmul.f32 %v322, %v332
      %v336 = vmul.f32 %v323, %v332
      %v337 = vmul.f32 %v324, %v332
      %v338 = vmul.f32 %v325, %v332
      %v339 = vmul.f32 %v326, %v332
      %v340 = vmul.f32 %v327, %v332
      %v341 = vadd.f32 %v333, 0.0
      %v342 = vadd.f32 %v334, 0.0
      %v343 = vadd.f32 %v335, 0.0
      %v344 = vadd.f32 %v336, 0.0
      %v345 = vadd.f32 %v337, 0.0
      %v346 = vadd.f32 %v338, 0.0
      %v347 = vadd.f32 %v339, 0.0
      %v348 = vadd.f32 %v340, 0.0
      %v349 = vld [vmem:[#allocation2 + $0x1] sm:$0xff]
      %v350 = vld [vmem:[#allocation2 + $0x11] sm:$0xff]
      %v351 = vld [vmem:[#allocation2 + $0x21] sm:$0xff]
      %v352 = vld [vmem:[#allocation2 + $0x31] sm:$0xff]
      %v353 = vld [vmem:[#allocation2 + $0x41] sm:$0xff]
      %v354 = vld [vmem:[#allocation2 + $0x51] sm:$0xff]
      %v355 = vld [vmem:[#allocation2 + $0x61] sm:$0xff]
      %v356 = vld [vmem:[#allocation2 + $0x71] sm:$0xff]
      %v357 = vld [vmem:[%s259 + $0x1] sm:$0x1]
      %v358 = vlaneseq
      %v359 = vshrl.u32 %v358, 7
      %v360 = vsub.s32 0, %v359
      %v361 = vrot.slane %v357, %v360
      %v362 = vmul.f32 %v349, %v361
      %v363 = vmul.f32 %v350, %v361
      %v364 = vmul.f32 %v351, %v361
      %v365 = vmul.f32 %v352, %v361
      %v366 = vmul.f32 %v353, %v361
      %v367 = vmul.f32 %v354, %v361
      %v368 = vmul.f32 %v355, %v361
      %v369 = vmul.f32 %v356, %v361
      %v370 = vadd.f32 %v341, %v362
      %v371 = vadd.f32 %v342, %v363
      %v372 = vadd.f32 %v343, %v364
      %v373 = vadd.f32 %v344, %v365
      %v374 = vadd.f32 %v345, %v366
      %v375 = vadd.f32 %v346, %v367
      %v376 = vadd.f32 %v347, %v368
      %v377 = vadd.f32 %v348, %v369
      %v378 = vld [vmem:[#allocation2 + $0x2] sm:$0xff]
      %v379 = vld [vmem:[#allocation2 + $0x12] sm:$0xff]
      %v380 = vld [vmem:[#allocation2 + $0x22] sm:$0xff]
      %v381 = vld [vmem:[#allocation2 + $0x32] sm:$0xff]
      %v382 = vld [vmem:[#allocation2 + $0x42] sm:$0xff]
      %v383 = vld [vmem:[#allocation2 + $0x52] sm:$0xff]
      %v384 = vld [vmem:[#allocation2 + $0x62] sm:$0xff]
      %v385 = vld [vmem:[#allocation2 + $0x72] sm:$0xff]
      %v386 = vld [vmem:[%s259 + $0x2] sm:$0x1]
      %v387 = vlaneseq
      %v388 = vshrl.u32 %v387, 7
      %v389 = vsub.s32 0, %v388
      %v390 = vrot.slane %v386, %v389
      %v391 = vmul.f32 %v378, %v390
      %v392 = vmul.f32 %v379, %v390
      %v393 = vmul.f32 %v380, %v390
      %v394 = vmul.f32 %v381, %v390
      %v395 = vmul.f32 %v382, %v390
      %v396 = vmul.f32 %v383, %v390
      %v397 = vmul.f32 %v384, %v390
      %v398 = vmul.f32 %v385, %v390
      %v399 = vadd.f32 %v370, %v391
      %v400 = vadd.f32 %v371, %v392
      %v401 = vadd.f32 %v372, %v393
      %v402 = vadd.f32 %v373, %v394
      %v403 = vadd.f32 %v374, %v395
      %v404 = vadd.f32 %v375, %v396
      %v405 = vadd.f32 %v376, %v397
      %v406 = vadd.f32 %v377, %v398
      %v407 = vld [vmem:[%s279] sm:$0xff]
      %v408 = vld [vmem:[%s279 + $0x10] sm:$0xff]
      %v409 = vld [vmem:[%s279 + $0x20] sm:$0xff]
      %v410 = vld [vmem:[%s279 + $0x30] sm:$0xff]
      %v411 = vld [vmem:[%s279 + $0x40] sm:$0xff]
      %v412 = vld [vmem:[%s279 + $0x50] sm:$0xff]
      %v413 = vld [vmem:[%s279 + $0x60] sm:$0xff]
      %v414 = vld [vmem:[%s279 + $0x70] sm:$0xff]
      %v415 = vld [vmem:[%s259 + $0x3] sm:$0x1]
      %v416 = vlaneseq
      %v417 = vshrl.u32 %v416, 7
      %v418 = vsub.s32 0, %v417
      %v419 = vrot.slane %v415, %v418
      %v420 = vmul.f32 %v407, %v419
      %v421 = vmul.f32 %v408, %v419
      %v422 = vmul.f32 %v409, %v419
      %v423 = vmul.f32 %v410, %v419
      %v424 = vmul.f32 %v411, %v419
      %v425 = vmul.f32 %v412, %v419
      %v426 = vmul.f32 %v413, %v419
      %v427 = vmul.f32 %v414, %v419
      %v428 = vadd.f32 %v399, %v420
      %v429 = vadd.f32 %v400, %v421
      %v430 = vadd.f32 %v401, %v422
      %v431 = vadd.f32 %v402, %v423
      %v432 = vadd.f32 %v403, %v424
      %v433 = vadd.f32 %v404, %v425
      %v434 = vadd.f32 %v405, %v426
      %v435 = vadd.f32 %v406, %v427
      %v436 = vld [vmem:[%s279 + $0x1] sm:$0xff]
      %v437 = vld [vmem:[%s279 + $0x11] sm:$0xff]
      %v438 = vld [vmem:[%s279 + $0x21] sm:$0xff]
      %v439 = vld [vmem:[%s279 + $0x31] sm:$0xff]
      %v440 = vld [vmem:[%s279 + $0x41] sm:$0xff]
      %v441 = vld [vmem:[%s279 + $0x51] sm:$0xff]
      %v442 = vld [vmem:[%s279 + $0x61] sm:$0xff]
      %v443 = vld [vmem:[%s279 + $0x71] sm:$0xff]
      %v444 = vld [vmem:[%s259 + $0x4] sm:$0x1]
      %v445 = vlaneseq
      %v446 = vshrl.u32 %v445, 7
      %v447 = vsub.s32 0, %v446
      %v448 = vrot.slane %v444, %v447
      %v449 = vmul.f32 %v436, %v448
      %v450 = vmul.f32 %v437, %v448
      %v451 = vmul.f32 %v438, %v448
      %v452 = vmul.f32 %v439, %v448
      %v453 = vmul.f32 %v440, %v448
      %v454 = vmul.f32 %v441, %v448
      %v455 = vmul.f32 %v442, %v448
      %v456 = vmul.f32 %v443, %v448
      %v457 = vadd.f32 %v428, %v449
      %v458 = vadd.f32 %v429, %v450
      %v459 = vadd.f32 %v430, %v451
      %v460 = vadd.f32 %v431, %v452
      %v461 = vadd.f32 %v432, %v453
      %v462 = vadd.f32 %v433, %v454
      %v463 = vadd.f32 %v434, %v455
      %v464 = vadd.f32 %v435, %v456
      %v465 = vld [vmem:[%s279 + $0x2] sm:$0xff]
      %v466 = vld [vmem:[%s279 + $0x12] sm:$0xff]
      %v467 = vld [vmem:[%s279 + $0x22] sm:$0xff]
      %v468 = vld [vmem:[%s279 + $0x32] sm:$0xff]
      %v469 = vld [vmem:[%s279 + $0x42] sm:$0xff]
      %v470 = vld [vmem:[%s279 + $0x52] sm:$0xff]
      %v471 = vld [vmem:[%s279 + $0x62] sm:$0xff]
      %v472 = vld [vmem:[%s279 + $0x72] sm:$0xff]
      %v473 = vld [vmem:[%s259 + $0x5] sm:$0x1]
      %v474 = vlaneseq
      %v475 = vshrl.u32 %v474, 7
      %v476 = vsub.s32 0, %v475
      %v477 = vrot.slane %v473, %v476
      %v478 = vmul.f32 %v465, %v477
      %v479 = vmul.f32 %v466, %v477
      %v480 = vmul.f32 %v467, %v477
      %v481 = vmul.f32 %v468, %v477
      %v482 = vmul.f32 %v469, %v477
      %v483 = vmul.f32 %v470, %v477
      %v484 = vmul.f32 %v471, %v477
      %v485 = vmul.f32 %v472, %v477
      %v486 = vadd.f32 %v457, %v478
      %v487 = vadd.f32 %v458, %v479
      %v488 = vadd.f32 %v459, %v480
      %v489 = vadd.f32 %v460, %v481
      %v490 = vadd.f32 %v461, %v482
      %v491 = vadd.f32 %v462, %v483
      %v492 = vadd.f32 %v463, %v484
      %v493 = vadd.f32 %v464, %v485
      %s494 = scalar_lea.vmem [#allocation2], 32
      %v495 = vld [vmem:[%s494] sm:$0xff]
      %v496 = vld [vmem:[%s494 + $0x10] sm:$0xff]
      %v497 = vld [vmem:[%s494 + $0x20] sm:$0xff]
      %v498 = vld [vmem:[%s494 + $0x30] sm:$0xff]
      %v499 = vld [vmem:[%s494 + $0x40] sm:$0xff]
      %v500 = vld [vmem:[%s494 + $0x50] sm:$0xff]
      %v501 = vld [vmem:[%s494 + $0x60] sm:$0xff]
      %v502 = vld [vmem:[%s494 + $0x70] sm:$0xff]
      %v503 = vld [vmem:[%s259 + $0x6] sm:$0x1]
      %v504 = vlaneseq
      %v505 = vshrl.u32 %v504, 7
      %v506 = vsub.s32 0, %v505
      %v507 = vrot.slane %v503, %v506
      %v508 = vmul.f32 %v495, %v507
      %v509 = vmul.f32 %v496, %v507
      %v510 = vmul.f32 %v497, %v507
      %v511 = vmul.f32 %v498, %v507
      %v512 = vmul.f32 %v499, %v507
      %v513 = vmul.f32 %v500, %v507
      %v514 = vmul.f32 %v501, %v507
      %v515 = vmul.f32 %v502, %v507
      %v516 = vadd.f32 %v486, %v508
      %v517 = vadd.f32 %v487, %v509
      %v518 = vadd.f32 %v488, %v510
      %v519 = vadd.f32 %v489, %v511
      %v520 = vadd.f32 %v490, %v512
      %v521 = vadd.f32 %v491, %v513
      %v522 = vadd.f32 %v492, %v514
      %v523 = vadd.f32 %v493, %v515
      %v524 = vld [vmem:[%s494 + $0x1] sm:$0xff]
      %v525 = vld [vmem:[%s494 + $0x11] sm:$0xff]
      %v526 = vld [vmem:[%s494 + $0x21] sm:$0xff]
      %v527 = vld [vmem:[%s494 + $0x31] sm:$0xff]
      %v528 = vld [vmem:[%s494 + $0x41] sm:$0xff]
      %v529 = vld [vmem:[%s494 + $0x51] sm:$0xff]
      %v530 = vld [vmem:[%s494 + $0x61] sm:$0xff]
      %v531 = vld [vmem:[%s494 + $0x71] sm:$0xff]
      %v532 = vld [vmem:[%s259 + $0x7] sm:$0x1]
      %v533 = vlaneseq
      %v534 = vshrl.u32 %v533, 7
      %v535 = vsub.s32 0, %v534
      %v536 = vrot.slane %v532, %v535
      %v537 = vmul.f32 %v524, %v536
      %v538 = vmul.f32 %v525, %v536
      %v539 = vmul.f32 %v526, %v536
      %v540 = vmul.f32 %v527, %v536
      %v541 = vmul.f32 %v528, %v536
      %v542 = vmul.f32 %v529, %v536
      %v543 = vmul.f32 %v530, %v536
      %v544 = vmul.f32 %v531, %v536
      %v545 = vadd.f32 %v516, %v537
      %v546 = vadd.f32 %v517, %v538
      %v547 = vadd.f32 %v518, %v539
      %v548 = vadd.f32 %v519, %v540
      %v549 = vadd.f32 %v520, %v541
      %v550 = vadd.f32 %v521, %v542
      %v551 = vadd.f32 %v522, %v543
      %v552 = vadd.f32 %v523, %v544
      %v553 = vld [vmem:[%s494 + $0x2] sm:$0xff]
      %v554 = vld [vmem:[%s494 + $0x12] sm:$0xff]
      %v555 = vld [vmem:[%s494 + $0x22] sm:$0xff]
      %v556 = vld [vmem:[%s494 + $0x32] sm:$0xff]
      %v557 = vld [vmem:[%s494 + $0x42] sm:$0xff]
      %v558 = vld [vmem:[%s494 + $0x52] sm:$0xff]
      %v559 = vld [vmem:[%s494 + $0x62] sm:$0xff]
      %v560 = vld [vmem:[%s494 + $0x72] sm:$0xff]
      %v561 = vld [vmem:[%s259 + $0x8] sm:$0x1]
      %v562 = vlaneseq
      %v563 = vshrl.u32 %v562, 7
      %v564 = vsub.s32 0, %v563
      %v565 = vrot.slane %v561, %v564
      %v566 = vmul.f32 %v553, %v565
      %v567 = vmul.f32 %v554, %v565
      %v568 = vmul.f32 %v555, %v565
      %v569 = vmul.f32 %v556, %v565
      %v570 = vmul.f32 %v557, %v565
      %v571 = vmul.f32 %v558, %v565
      %v572 = vmul.f32 %v559, %v565
      %v573 = vmul.f32 %v560, %v565
      %v574 = vadd.f32 %v545, %v566
      %v575 = vadd.f32 %v546, %v567
      %v576 = vadd.f32 %v547, %v568
      %v577 = vadd.f32 %v548, %v569
      %v578 = vadd.f32 %v549, %v570
      %v579 = vadd.f32 %v550, %v571
      %v580 = vadd.f32 %v551, %v572
      %v581 = vadd.f32 %v552, %v573
      %v582 = vld [vmem:[%s262] sm:$0x1]
      %v584 = vlaneseq
      %v585 = vshrl.u32 %v584, 7
      %v586 = vsub.s32 0, %v585
      %v587 = vrot.slane %v582, %v586
      %v589 = vmul.f32 %v574, %v587
      %v590 = vmul.f32 %v575, %v587
      %v591 = vmul.f32 %v576, %v587
      %v592 = vmul.f32 %v577, %v587
      %v593 = vmul.f32 %v578, %v587
      %v594 = vmul.f32 %v579, %v587
      %v595 = vmul.f32 %v580, %v587
      %v596 = vmul.f32 %v581, %v587
      %v597 = vld [vmem:[%s265] sm:$0x1]
      %v599 = vlaneseq
      %v600 = vshrl.u32 %v599, 7
      %v601 = vsub.s32 0, %v600
      %v602 = vrot.slane %v597, %v601
      %v604 = vadd.f32 %v589, %v602
      %v605 = vadd.f32 %v590, %v602
      %v606 = vadd.f32 %v591, %v602
      %v607 = vadd.f32 %v592, %v602
      %v608 = vadd.f32 %v593, %v602
      %v609 = vadd.f32 %v594, %v602
      %v610 = vadd.f32 %v595, %v602
      %v611 = vadd.f32 %v596, %v602
      %v612 = vmax.f32 %v604, 0.0
      %v613 = vmax.f32 %v605, 0.0
      %v614 = vmax.f32 %v606, 0.0
      %v615 = vmax.f32 %v607, 0.0
      %v616 = vmax.f32 %v608, 0.0
      %v617 = vmax.f32 %v609, 0.0
      %v618 = vmax.f32 %v610, 0.0
      %v619 = vmax.f32 %v611, 0.0
      %v620 = vpack.c.bf16 %v612, %v612
      %v621 = vpack.c.bf16 %v613, %v613
      %v622 = vpack.c.bf16 %v614, %v614
      %v623 = vpack.c.bf16 %v615, %v615
      %v624 = vpack.c.bf16 %v616, %v616
      %v625 = vpack.c.bf16 %v617, %v617
      %v626 = vpack.c.bf16 %v618, %v618
      %v627 = vpack.c.bf16 %v619, %v619
      %628 = vst [vmem:[%s273] sm:$0xf] %v620
      %629 = vst [vmem:[%s273 + $0x4] sm:$0xf] %v621
      %630 = vst [vmem:[%s273 + $0x8] sm:$0xf] %v622
      %631 = vst [vmem:[%s273 + $0xc] sm:$0xf] %v623
      %632 = vst [vmem:[%s273 + $0x10] sm:$0xf] %v624
      %633 = vst [vmem:[%s273 + $0x14] sm:$0xf] %v625
      %634 = vst [vmem:[%s273 + $0x18] sm:$0xf] %v626
      %635 = vst [vmem:[%s273 + $0x1c] sm:$0xf] %v627
      %p636 = scmp.lt.s32.totalorder %s19, 1
      %s637 = scalar_select %p636, %s19, 1
      %p638 = scmp.lt.s32.totalorder %s20, 0
      %s639 = scalar_select %p638, %s20, 0
      %s640 = smul.addr %s637, 8
      %s641 = sadd.s32 %s639, %s640
      %s642 = smul.addr %s641, 4
      %s643 = scalar_lea.vmem %s4, %s642
      // Predicated region
      $region37: #{_lambda_.7} parent=35 // pred_check
        %p644 = pneg %p153
      $region38: #{_lambda_.7} parent=35 // pred_check_branch
        %646 = sbr.rel (%p644) target = $region40
      $region39: #{_lambda_.7} parent=35 // pred_region
        _
      $region40: #{_lambda_.7} parent=35 // pred_fallthru
        _
    $region36: #{_lambda_.7} parent=5 // pred_fallthru
      _
    %p647 = scmp.le.s32.totalorder 2, %s10
    // Predicated region
    $region41: #{_lambda_.7} parent=5 // pred_check
      %p648 = pneg %p647
    $region42: #{_lambda_.7} parent=5 // pred_check_branch
      %650 = sbr.rel (%p648) target = $region44
    $region43: #{_lambda_.7} parent=5 // pred_region
      %s651 = ssub.s32 %s10, 2
      // Predicated region
      $region45: #{_lambda_.7} parent=43 // pred_check
        %p652 = pneg %p159
      $region46: #{_lambda_.7} parent=43 // pred_check_branch
        %654 = sbr.rel (%p652) target = $region48
      $region47: #{_lambda_.7} parent=43 // pred_region
        %p655 = scmp.lt.s32.totalorder %s21, 1
        %s656 = scalar_select %p655, %s21, 1
        %p657 = scmp.lt.s32.totalorder %s22, 0
        %s658 = scalar_select %p657, %s22, 0
        %s659 = smul.addr %s656, 8
        %s660 = sadd.s32 %s658, %s659
        %s661 = smul.addr %s660, 4
        %s662 = scalar_lea.vmem %s4, %s661
      $region48: #{_lambda_.7} parent=43 // pred_fallthru
        _
    $region44: #{_lambda_.7} parent=5 // pred_fallthru
      _
  $region6: #{_lambda_.7} parent=0 // loop_footer
    %s14 = sadd.s32 1, %s10
  $region7: #{_lambda_.7} parent=0 // loop_footer_branch
    %9 = sbr.rel target = $region3
  $region8: #{_lambda_.7} parent=0 // loop_exit
    _

// kernel: _lambda_.6
$region0: #{_lambda_.6}
  #allocation0 [shape = 'u32[]', space=smem, size = 0x4, offset = 0x4, fixed_abs, tag = 'smem constant byte address 0x4 - core index']
  #allocation1 [shape = 'u32[144,128]{1,0:T(1,128)}', space=vmem, size = 0x12000, scoped, tag = 'internal scratch']
  #allocation2 [shape = 'bf16[128,1152]{1,0:T(16,128)(2,1)}', space=vmem, size = 0x48000, scoped, tag = 'scratch operand']
  %s0 = inlined_call_operand.vmem [shape: f32[128,128], index: 0, kind: input, shape index: {}]
  %s1 = inlined_call_operand.hbm [shape: bf16[1152,128], index: 1, kind: input, shape index: {}]
  %s2 = inlined_call_operand.vmem [shape: bf16[128,128], index: 2, kind: output, shape index: {}]
  %s3 = sld [smem:[#allocation0]]
  $region22: #{_lambda_.6} parent=0
    _
  %s5 = ssub.s32 1, %s3
  %s6 = scalar_select 0, %s5, %s3
  $region1: #{_lambda_.6} parent=0
    #allocation3 [shape = 'u8[294912]{0}', space=vmem, size = 0x48000, scoped, tag = 'input window, operand 1, single buffered']
    #allocation4 [shape = 's32[1]{0}', space=sflag, size = 0x4, scoped, tag = 'scoped memory for _lambda_.6']
    %7 = vsyncpa [#allocation4], 0
    // Predicated region
    $region2: #{_lambda_.6} parent=1 // pred_check
      _
    $region3: #{_lambda_.6} parent=1 // pred_check_branch
      %9 = sbr.rel (0) target = $region5
    $region4: #{_lambda_.6} parent=1 // pred_region
      _
    $region5: #{_lambda_.6} parent=1 // pred_fallthru
      _
    // Predicated region
    $region6: #{_lambda_.6} parent=1 // pred_check
      _
    $region7: #{_lambda_.6} parent=1 // pred_check_branch
      %11 = sbr.rel (0) target = $region9
    $region8: #{_lambda_.6} parent=1 // pred_region
      %s13 = ssub.s32 9216, 9216
      %14 = vsyncadd [#allocation4], %s13
      %s15 = sshll.u32 [#allocation3], 4
      %s16 = int_to_ptr.vmem [resolvable:$true] %s15
      %21 = dma.hbm_to_vmem [thread:$0]  %s1, 9216, %s16, [#allocation4], 64, 64, 4
    $region9: #{_lambda_.6} parent=1 // pred_fallthru
      _
    // Predicated region
    $region10: #{_lambda_.6} parent=1 // pred_check
      _
    $region11: #{_lambda_.6} parent=1 // pred_check_branch
      %23 = sbr.rel (0) target = $region13
    $region12: #{_lambda_.6} parent=1 // pred_region
      %24 = dma.done [#allocation4], 9216
    $region13: #{_lambda_.6} parent=1 // pred_fallthru
      _
    %v26 = vld [vmem:[%s0] sm:$0xff]
    %v27 = vld [vmem:[%s0 + $0x8] sm:$0xff]
    %v28 = vld [vmem:[%s0 + $0x10] sm:$0xff]
    %v29 = vld [vmem:[%s0 + $0x18] sm:$0xff]
    %v30 = vld [vmem:[%s0 + $0x20] sm:$0xff]
    %v31 = vld [vmem:[%s0 + $0x28] sm:$0xff]
    %v32 = vld [vmem:[%s0 + $0x30] sm:$0xff]
    %v33 = vld [vmem:[%s0 + $0x38] sm:$0xff]
    %v34 = vld [vmem:[%s0 + $0x40] sm:$0xff]
    %v35 = vld [vmem:[%s0 + $0x48] sm:$0xff]
    %v36 = vld [vmem:[%s0 + $0x50] sm:$0xff]
    %v37 = vld [vmem:[%s0 + $0x58] sm:$0xff]
    %v38 = vld [vmem:[%s0 + $0x60] sm:$0xff]
    %v39 = vld [vmem:[%s0 + $0x68] sm:$0xff]
    %v40 = vld [vmem:[%s0 + $0x70] sm:$0xff]
    %v41 = vld [vmem:[%s0 + $0x78] sm:$0xff]
    %v42 = vxor.u32 %v26, 2147483648
    %v43 = vxor.u32 %v27, 2147483648
    %v44 = vxor.u32 %v28, 2147483648
    %v45 = vxor.u32 %v29, 2147483648
    %v46 = vxor.u32 %v30, 2147483648
    %v47 = vxor.u32 %v31, 2147483648
    %v48 = vxor.u32 %v32, 2147483648
    %v49 = vxor.u32 %v33, 2147483648
    %v50 = vxor.u32 %v34, 2147483648
    %v51 = vxor.u32 %v35, 2147483648
    %v52 = vxor.u32 %v36, 2147483648
    %v53 = vxor.u32 %v37, 2147483648
    %v54 = vxor.u32 %v38, 2147483648
    %v55 = vxor.u32 %v39, 2147483648
    %v56 = vxor.u32 %v40, 2147483648
    %v57 = vxor.u32 %v41, 2147483648
    %v58 = vmul.f32 %v42, 1.442695
    %v59 = vpow.pop %v58
    %v60 = vmul.f32 %v43, 1.442695
    %v61 = vpow.pop %v60
    %v62 = vmul.f32 %v44, 1.442695
    %v63 = vpow.pop %v62
    %v64 = vmul.f32 %v45, 1.442695
    %v65 = vpow.pop %v64
    %v66 = vmul.f32 %v46, 1.442695
    %v67 = vpow.pop %v66
    %v68 = vmul.f32 %v47, 1.442695
    %v69 = vpow.pop %v68
    %v70 = vmul.f32 %v48, 1.442695
    %v71 = vpow.pop %v70
    %v72 = vmul.f32 %v49, 1.442695
    %v73 = vpow.pop %v72
    %v74 = vmul.f32 %v50, 1.442695
    %v75 = vpow.pop %v74
    %v76 = vmul.f32 %v51, 1.442695
    %v77 = vpow.pop %v76
    %v78 = vmul.f32 %v52, 1.442695
    %v79 = vpow.pop %v78
    %v80 = vmul.f32 %v53, 1.442695
    %v81 = vpow.pop %v80
    %v82 = vmul.f32 %v54, 1.442695
    %v83 = vpow.pop %v82
    %v84 = vmul.f32 %v55, 1.442695
    %v85 = vpow.pop %v84
    %v86 = vmul.f32 %v56, 1.442695
    %v87 = vpow.pop %v86
    %v88 = vmul.f32 %v57, 1.442695
    %v89 = vpow.pop %v88
    %v90 = vadd.f32 %v59, 1.0
    %v91 = vadd.f32 %v61, 1.0
    %v92 = vadd.f32 %v63, 1.0
    %v93 = vadd.f32 %v65, 1.0
    %v94 = vadd.f32 %v67, 1.0
    %v95 = vadd.f32 %v69, 1.0
    %v96 = vadd.f32 %v71, 1.0
    %v97 = vadd.f32 %v73, 1.0
    %v98 = vadd.f32 %v75, 1.0
    %v99 = vadd.f32 %v77, 1.0
    %v100 = vadd.f32 %v79, 1.0
    %v101 = vadd.f32 %v81, 1.0
    %v102 = vadd.f32 %v83, 1.0
    %v103 = vadd.f32 %v85, 1.0
    %v104 = vadd.f32 %v87, 1.0
    %v105 = vadd.f32 %v89, 1.0
    %v106 = vrcp.pop %v90
    %v107 = vmul.f32 1.0, %v106
    %v108 = vrcp.pop %v91
    %v109 = vmul.f32 1.0, %v108
    %v110 = vrcp.pop %v92
    %v111 = vmul.f32 1.0, %v110
    %v112 = vrcp.pop %v93
    %v113 = vmul.f32 1.0, %v112
    %v114 = vrcp.pop %v94
    %v115 = vmul.f32 1.0, %v114
    %v116 = vrcp.pop %v95
    %v117 = vmul.f32 1.0, %v116
    %v118 = vrcp.pop %v96
    %v119 = vmul.f32 1.0, %v118
    %v120 = vrcp.pop %v97
    %v121 = vmul.f32 1.0, %v120
    %v122 = vrcp.pop %v98
    %v123 = vmul.f32 1.0, %v122
    %v124 = vrcp.pop %v99
    %v125 = vmul.f32 1.0, %v124
    %v126 = vrcp.pop %v100
    %v127 = vmul.f32 1.0, %v126
    %v128 = vrcp.pop %v101
    %v129 = vmul.f32 1.0, %v128
    %v130 = vrcp.pop %v102
    %v131 = vmul.f32 1.0, %v130
    %v132 = vrcp.pop %v103
    %v133 = vmul.f32 1.0, %v132
    %v134 = vrcp.pop %v104
    %v135 = vmul.f32 1.0, %v134
    %v136 = vrcp.pop %v105
    %v137 = vmul.f32 1.0, %v136
    %v138 = vmul.f32 %v26, %v107
    %v139 = vmul.f32 %v27, %v109
    %v140 = vmul.f32 %v28, %v111
    %v141 = vmul.f32 %v29, %v113
    %v142 = vmul.f32 %v30, %v115
    %v143 = vmul.f32 %v31, %v117
    %v144 = vmul.f32 %v32, %v119
    %v145 = vmul.f32 %v33, %v121
    %v146 = vmul.f32 %v34, %v123
    %v147 = vmul.f32 %v35, %v125
    %v148 = vmul.f32 %v36, %v127
    %v149 = vmul.f32 %v37, %v129
    %v150 = vmul.f32 %v38, %v131
    %v151 = vmul.f32 %v39, %v133
    %v152 = vmul.f32 %v40, %v135
    %v153 = vmul.f32 %v41, %v137
    %v154 = vpack.c.bf16 %v139, %v138
    %v155 = vpack.c.bf16 %v141, %v140
    %v156 = vpack.c.bf16 %v143, %v142
    %v157 = vpack.c.bf16 %v145, %v144
    %v158 = vpack.c.bf16 %v147, %v146
    %v159 = vpack.c.bf16 %v149, %v148
    %v160 = vpack.c.bf16 %v151, %v150
    %v161 = vpack.c.bf16 %v153, %v152
    %162 = vst [vmem:[#allocation2] sm:$0xff] %v154
    %163 = vst [vmem:[#allocation2 + $0x48] sm:$0xff] %v155
    %164 = vst [vmem:[#allocation2 + $0x90] sm:$0xff] %v156
    %165 = vst [vmem:[#allocation2 + $0xd8] sm:$0xff] %v157
    %166 = vst [vmem:[#allocation2 + $0x120] sm:$0xff] %v158
    %167 = vst [vmem:[#allocation2 + $0x168] sm:$0xff] %v159
    %168 = vst [vmem:[#allocation2 + $0x1b0] sm:$0xff] %v160
    %169 = vst [vmem:[#allocation2 + $0x1f8] sm:$0xff] %v161
    %v170 = vsub.f32 %v26, -2.2
    %v171 = vsub.f32 %v27, -2.2
    %v172 = vsub.f32 %v28, -2.2
    %v173 = vsub.f32 %v29, -2.2
    %v174 = vsub.f32 %v30, -2.2
    %v175 = vsub.f32 %v31, -2.2
    %v176 = vsub.f32 %v32, -2.2
    %v177 = vsub.f32 %v33, -2.2
    %v178 = vsub.f32 %v34, -2.2
    %v179 = vsub.f32 %v35, -2.2
    %v180 = vsub.f32 %v36, -2.2
    %v181 = vsub.f32 %v37, -2.2
    %v182 = vsub.f32 %v38, -2.2
    %v183 = vsub.f32 %v39, -2.2
    %v184 = vsub.f32 %v40, -2.2
    %v185 = vsub.f32 %v41, -2.2
    %v186 = vmul.f32 %v170, 2.5
    %v187 = vmul.f32 %v171, 2.5
    %v188 = vmul.f32 %v172, 2.5
    %v189 = vmul.f32 %v173, 2.5
    %v190 = vmul.f32 %v174, 2.5
    %v191 = vmul.f32 %v175, 2.5
    %v192 = vmul.f32 %v176, 2.5
    %v193 = vmul.f32 %v177, 2.5
    %v194 = vmul.f32 %v178, 2.5
    %v195 = vmul.f32 %v179, 2.5
    %v196 = vmul.f32 %v180, 2.5
    %v197 = vmul.f32 %v181, 2.5
    %v198 = vmul.f32 %v182, 2.5
    %v199 = vmul.f32 %v183, 2.5
    %v200 = vmul.f32 %v184, 2.5
    %v201 = vmul.f32 %v185, 2.5
    %v202 = vfloor.f32 %v186
    %v203 = vfloor.f32 %v187
    %v204 = vfloor.f32 %v188
    %v205 = vfloor.f32 %v189
    %v206 = vfloor.f32 %v190
    %v207 = vfloor.f32 %v191
    %v208 = vfloor.f32 %v192
    %v209 = vfloor.f32 %v193
    %v210 = vfloor.f32 %v194
    %v211 = vfloor.f32 %v195
    %v212 = vfloor.f32 %v196
    %v213 = vfloor.f32 %v197
    %v214 = vfloor.f32 %v198
    %v215 = vfloor.f32 %v199
    %v216 = vfloor.f32 %v200
    %v217 = vfloor.f32 %v201
    %v218 = vsub.f32 %v186, %v202
    %v219 = vsub.f32 %v187, %v203
    %v220 = vsub.f32 %v188, %v204
    %v221 = vsub.f32 %v189, %v205
    %v222 = vsub.f32 %v190, %v206
    %v223 = vsub.f32 %v191, %v207
    %v224 = vsub.f32 %v192, %v208
    %v225 = vsub.f32 %v193, %v209
    %v226 = vsub.f32 %v194, %v210
    %v227 = vsub.f32 %v195, %v211
    %v228 = vsub.f32 %v196, %v212
    %v229 = vsub.f32 %v197, %v213
    %v230 = vsub.f32 %v198, %v214
    %v231 = vsub.f32 %v199, %v215
    %v232 = vsub.f32 %v200, %v216
    %v233 = vsub.f32 %v201, %v217
    %v234 = vmul.f32 %v218, %v218
    %v235 = vmul.f32 %v219, %v219
    %v236 = vmul.f32 %v220, %v220
    %v237 = vmul.f32 %v221, %v221
    %v238 = vmul.f32 %v222, %v222
    %v239 = vmul.f32 %v223, %v223
    %v240 = vmul.f32 %v224, %v224
    %v241 = vmul.f32 %v225, %v225
    %v242 = vmul.f32 %v226, %v226
    %v243 = vmul.f32 %v227, %v227
    %v244 = vmul.f32 %v228, %v228
    %v245 = vmul.f32 %v229, %v229
    %v246 = vmul.f32 %v230, %v230
    %v247 = vmul.f32 %v231, %v231
    %v248 = vmul.f32 %v232, %v232
    %v249 = vmul.f32 %v233, %v233
    %v250 = vmul.f32 %v234, %v218
    %v251 = vmul.f32 %v235, %v219
    %v252 = vmul.f32 %v236, %v220
    %v253 = vmul.f32 %v237, %v221
    %v254 = vmul.f32 %v238, %v222
    %v255 = vmul.f32 %v239, %v223
    %v256 = vmul.f32 %v240, %v224
    %v257 = vmul.f32 %v241, %v225
    %v258 = vmul.f32 %v242, %v226
    %v259 = vmul.f32 %v243, %v227
    %v260 = vmul.f32 %v244, %v228
    %v261 = vmul.f32 %v245, %v229
    %v262 = vmul.f32 %v246, %v230
    %v263 = vmul.f32 %v247, %v231
    %v264 = vmul.f32 %v248, %v232
    %v265 = vmul.f32 %v249, %v233
    %v266 = vmul.f32 %v250, 0.16666667
    %v267 = vmul.f32 %v251, 0.16666667
    %v268 = vmul.f32 %v252, 0.16666667
    %v269 = vmul.f32 %v253, 0.16666667
    %v270 = vmul.f32 %v254, 0.16666667
    %v271 = vmul.f32 %v255, 0.16666667
    %v272 = vmul.f32 %v256, 0.16666667
    %v273 = vmul.f32 %v257, 0.16666667
    %v274 = vmul.f32 %v258, 0.16666667
    %v275 = vmul.f32 %v259, 0.16666667
    %v276 = vmul.f32 %v260, 0.16666667
    %v277 = vmul.f32 %v261, 0.16666667
    %v278 = vmul.f32 %v262, 0.16666667
    %v279 = vmul.f32 %v263, 0.16666667
    %v280 = vmul.f32 %v264, 0.16666667
    %v281 = vmul.f32 %v265, 0.16666667
    %v282 = vsub.f32 1.0, %v218
    %v283 = vsub.f32 1.0, %v219
    %v284 = vsub.f32 1.0, %v220
    %v285 = vsub.f32 1.0, %v221
    %v286 = vsub.f32 1.0, %v222
    %v287 = vsub.f32 1.0, %v223
    %v288 = vsub.f32 1.0, %v224
    %v289 = vsub.f32 1.0, %v225
    %v290 = vsub.f32 1.0, %v226
    %v291 = vsub.f32 1.0, %v227
    %v292 = vsub.f32 1.0, %v228
    %v293 = vsub.f32 1.0, %v229
    %v294 = vsub.f32 1.0, %v230
    %v295 = vsub.f32 1.0, %v231
    %v296 = vsub.f32 1.0, %v232
    %v297 = vsub.f32 1.0, %v233
    %v298 = vmul.f32 %v282, %v282
    %v299 = vmul.f32 %v283, %v283
    %v300 = vmul.f32 %v284, %v284
    %v301 = vmul.f32 %v285, %v285
    %v302 = vmul.f32 %v286, %v286
    %v303 = vmul.f32 %v287, %v287
    %v304 = vmul.f32 %v288, %v288
    %v305 = vmul.f32 %v289, %v289
    %v306 = vmul.f32 %v290, %v290
    %v307 = vmul.f32 %v291, %v291
    %v308 = vmul.f32 %v292, %v292
    %v309 = vmul.f32 %v293, %v293
    %v310 = vmul.f32 %v294, %v294
    %v311 = vmul.f32 %v295, %v295
    %v312 = vmul.f32 %v296, %v296
    %v313 = vmul.f32 %v297, %v297
    %v314 = vmul.f32 %v298, %v282
    %v315 = vmul.f32 %v299, %v283
    %v316 = vmul.f32 %v300, %v284
    %v317 = vmul.f32 %v301, %v285
    %v318 = vmul.f32 %v302, %v286
    %v319 = vmul.f32 %v303, %v287
    %v320 = vmul.f32 %v304, %v288
    %v321 = vmul.f32 %v305, %v289
    %v322 = vmul.f32 %v306, %v290
    %v323 = vmul.f32 %v307, %v291
    %v324 = vmul.f32 %v308, %v292
    %v325 = vmul.f32 %v309, %v293
    %v326 = vmul.f32 %v310, %v294
    %v327 = vmul.f32 %v311, %v295
    %v328 = vmul.f32 %v312, %v296
    %v329 = vmul.f32 %v313, %v297
    %v330 = vmul.f32 %v314, 0.16666667
    %v331 = vmul.f32 %v315, 0.16666667
    %v332 = vmul.f32 %v316, 0.16666667
    %v333 = vmul.f32 %v317, 0.16666667
    %v334 = vmul.f32 %v318, 0.16666667
    %v335 = vmul.f32 %v319, 0.16666667
    %v336 = vmul.f32 %v320, 0.16666667
    %v337 = vmul.f32 %v321, 0.16666667
    %v338 = vmul.f32 %v322, 0.16666667
    %v339 = vmul.f32 %v323, 0.16666667
    %v340 = vmul.f32 %v324, 0.16666667
    %v341 = vmul.f32 %v325, 0.16666667
    %v342 = vmul.f32 %v326, 0.16666667
    %v343 = vmul.f32 %v327, 0.16666667
    %v344 = vmul.f32 %v328, 0.16666667
    %v345 = vmul.f32 %v329, 0.16666667
    %v346 = vmul.f32 %v250, 0.5
    %v347 = vmul.f32 %v251, 0.5
    %v348 = vmul.f32 %v252, 0.5
    %v349 = vmul.f32 %v253, 0.5
    %v350 = vmul.f32 %v254, 0.5
    %v351 = vmul.f32 %v255, 0.5
    %v352 = vmul.f32 %v256, 0.5
    %v353 = vmul.f32 %v257, 0.5
    %v354 = vmul.f32 %v258, 0.5
    %v355 = vmul.f32 %v259, 0.5
    %v356 = vmul.f32 %v260, 0.5
    %v357 = vmul.f32 %v261, 0.5
    %v358 = vmul.f32 %v262, 0.5
    %v359 = vmul.f32 %v263, 0.5
    %v360 = vmul.f32 %v264, 0.5
    %v361 = vmul.f32 %v265, 0.5
    %v362 = vsub.f32 %v346, %v234
    %v363 = vsub.f32 %v347, %v235
    %v364 = vsub.f32 %v348, %v236
    %v365 = vsub.f32 %v349, %v237
    %v366 = vsub.f32 %v350, %v238
    %v367 = vsub.f32 %v351, %v239
    %v368 = vsub.f32 %v352, %v240
    %v369 = vsub.f32 %v353, %v241
    %v370 = vsub.f32 %v354, %v242
    %v371 = vsub.f32 %v355, %v243
    %v372 = vsub.f32 %v356, %v244
    %v373 = vsub.f32 %v357, %v245
    %v374 = vsub.f32 %v358, %v246
    %v375 = vsub.f32 %v359, %v247
    %v376 = vsub.f32 %v360, %v248
    %v377 = vsub.f32 %v361, %v249
    %v378 = vadd.f32 %v362, 0.6666667
    %v379 = vadd.f32 %v363, 0.6666667
    %v380 = vadd.f32 %v364, 0.6666667
    %v381 = vadd.f32 %v365, 0.6666667
    %v382 = vadd.f32 %v366, 0.6666667
    %v383 = vadd.f32 %v367, 0.6666667
    %v384 = vadd.f32 %v368, 0.6666667
    %v385 = vadd.f32 %v369, 0.6666667
    %v386 = vadd.f32 %v370, 0.6666667
    %v387 = vadd.f32 %v371, 0.6666667
    %v388 = vadd.f32 %v372, 0.6666667
    %v389 = vadd.f32 %v373, 0.6666667
    %v390 = vadd.f32 %v374, 0.6666667
    %v391 = vadd.f32 %v375, 0.6666667
    %v392 = vadd.f32 %v376, 0.6666667
    %v393 = vadd.f32 %v377, 0.6666667
    %v394 = vsub.f32 1.0, %v266
    %v395 = vsub.f32 1.0, %v267
    %v396 = vsub.f32 1.0, %v268
    %v397 = vsub.f32 1.0, %v269
    %v398 = vsub.f32 1.0, %v270
    %v399 = vsub.f32 1.0, %v271
    %v400 = vsub.f32 1.0, %v272
    %v401 = vsub.f32 1.0, %v273
    %v402 = vsub.f32 1.0, %v274
    %v403 = vsub.f32 1.0, %v275
    %v404 = vsub.f32 1.0, %v276
    %v405 = vsub.f32 1.0, %v277
    %v406 = vsub.f32 1.0, %v278
    %v407 = vsub.f32 1.0, %v279
    %v408 = vsub.f32 1.0, %v280
    %v409 = vsub.f32 1.0, %v281
    %v410 = vsub.f32 %v394, %v378
    %v411 = vsub.f32 %v395, %v379
    %v412 = vsub.f32 %v396, %v380
    %v413 = vsub.f32 %v397, %v381
    %v414 = vsub.f32 %v398, %v382
    %v415 = vsub.f32 %v399, %v383
    %v416 = vsub.f32 %v400, %v384
    %v417 = vsub.f32 %v401, %v385
    %v418 = vsub.f32 %v402, %v386
    %v419 = vsub.f32 %v403, %v387
    %v420 = vsub.f32 %v404, %v388
    %v421 = vsub.f32 %v405, %v389
    %v422 = vsub.f32 %v406, %v390
    %v423 = vsub.f32 %v407, %v391
    %v424 = vsub.f32 %v408, %v392
    %v425 = vsub.f32 %v409, %v393
    %v426 = vsub.f32 %v410, %v330
    %v427 = vsub.f32 %v411, %v331
    %v428 = vsub.f32 %v412, %v332
    %v429 = vsub.f32 %v413, %v333
    %v430 = vsub.f32 %v414, %v334
    %v431 = vsub.f32 %v415, %v335
    %v432 = vsub.f32 %v416, %v336
    %v433 = vsub.f32 %v417, %v337
    %v434 = vsub.f32 %v418, %v338
    %v435 = vsub.f32 %v419, %v339
    %v436 = vsub.f32 %v420, %v340
    %v437 = vsub.f32 %v421, %v341
    %v438 = vsub.f32 %v422, %v342
    %v439 = vsub.f32 %v423, %v343
    %v440 = vsub.f32 %v424, %v344
    %v441 = vsub.f32 %v425, %v345
    %vm442 = vcmp.eq.f32.partialorder %v202, 0.0
    %vm443 = vcmp.eq.f32.partialorder %v203, 0.0
    %vm444 = vcmp.eq.f32.partialorder %v204, 0.0
    %vm445 = vcmp.eq.f32.partialorder %v205, 0.0
    %vm446 = vcmp.eq.f32.partialorder %v206, 0.0
    %vm447 = vcmp.eq.f32.partialorder %v207, 0.0
    %vm448 = vcmp.eq.f32.partialorder %v208, 0.0
    %vm449 = vcmp.eq.f32.partialorder %v209, 0.0
    %vm450 = vcmp.eq.f32.partialorder %v210, 0.0
    %vm451 = vcmp.eq.f32.partialorder %v211, 0.0
    %vm452 = vcmp.eq.f32.partialorder %v212, 0.0
    %vm453 = vcmp.eq.f32.partialorder %v213, 0.0
    %vm454 = vcmp.eq.f32.partialorder %v214, 0.0
    %vm455 = vcmp.eq.f32.partialorder %v215, 0.0
    %vm456 = vcmp.eq.f32.partialorder %v216, 0.0
    %vm457 = vcmp.eq.f32.partialorder %v217, 0.0
    %vm458 = vcmp.eq.f32.partialorder %v202, 1.0
    %vm459 = vcmp.eq.f32.partialorder %v203, 1.0
    %vm460 = vcmp.eq.f32.partialorder %v204, 1.0
    %vm461 = vcmp.eq.f32.partialorder %v205, 1.0
    %vm462 = vcmp.eq.f32.partialorder %v206, 1.0
    %vm463 = vcmp.eq.f32.partialorder %v207, 1.0
    %vm464 = vcmp.eq.f32.partialorder %v208, 1.0
    %vm465 = vcmp.eq.f32.partialorder %v209, 1.0
    %vm466 = vcmp.eq.f32.partialorder %v210, 1.0
    %vm467 = vcmp.eq.f32.partialorder %v211, 1.0
    %vm468 = vcmp.eq.f32.partialorder %v212, 1.0
    %vm469 = vcmp.eq.f32.partialorder %v213, 1.0
    %vm470 = vcmp.eq.f32.partialorder %v214, 1.0
    %vm471 = vcmp.eq.f32.partialorder %v215, 1.0
    %vm472 = vcmp.eq.f32.partialorder %v216, 1.0
    %vm473 = vcmp.eq.f32.partialorder %v217, 1.0
    %vm474 = vcmp.eq.f32.partialorder %v202, 2.0
    %vm475 = vcmp.eq.f32.partialorder %v203, 2.0
    %vm476 = vcmp.eq.f32.partialorder %v204, 2.0
    %vm477 = vcmp.eq.f32.partialorder %v205, 2.0
    %vm478 = vcmp.eq.f32.partialorder %v206, 2.0
    %vm479 = vcmp.eq.f32.partialorder %v207, 2.0
    %vm480 = vcmp.eq.f32.partialorder %v208, 2.0
    %vm481 = vcmp.eq.f32.partialorder %v209, 2.0
    %vm482 = vcmp.eq.f32.partialorder %v210, 2.0
    %vm483 = vcmp.eq.f32.partialorder %v211, 2.0
    %vm484 = vcmp.eq.f32.partialorder %v212, 2.0
    %vm485 = vcmp.eq.f32.partialorder %v213, 2.0
    %vm486 = vcmp.eq.f32.partialorder %v214, 2.0
    %vm487 = vcmp.eq.f32.partialorder %v215, 2.0
    %vm488 = vcmp.eq.f32.partialorder %v216, 2.0
    %vm489 = vcmp.eq.f32.partialorder %v217, 2.0
    %vm490 = vcmp.eq.f32.partialorder %v202, 3.0
    %vm491 = vcmp.eq.f32.partialorder %v203, 3.0
    %vm492 = vcmp.eq.f32.partialorder %v204, 3.0
    %vm493 = vcmp.eq.f32.partialorder %v205, 3.0
    %vm494 = vcmp.eq.f32.partialorder %v206, 3.0
    %vm495 = vcmp.eq.f32.partialorder %v207, 3.0
    %vm496 = vcmp.eq.f32.partialorder %v208, 3.0
    %vm497 = vcmp.eq.f32.partialorder %v209, 3.0
    %vm498 = vcmp.eq.f32.partialorder %v210, 3.0
    %vm499 = vcmp.eq.f32.partialorder %v211, 3.0
    %vm500 = vcmp.eq.f32.partialorder %v212, 3.0
    %vm501 = vcmp.eq.f32.partialorder %v213, 3.0
    %vm502 = vcmp.eq.f32.partialorder %v214, 3.0
    %vm503 = vcmp.eq.f32.partialorder %v215, 3.0
    %vm504 = vcmp.eq.f32.partialorder %v216, 3.0
    %vm505 = vcmp.eq.f32.partialorder %v217, 3.0
    %v506 = vsel %vm490, %v330, 0.0
    %v507 = vsel %vm491, %v331, 0.0
    %v508 = vsel %vm492, %v332, 0.0
    %v509 = vsel %vm493, %v333, 0.0
    %v510 = vsel %vm494, %v334, 0.0
    %v511 = vsel %vm495, %v335, 0.0
    %v512 = vsel %vm496, %v336, 0.0
    %v513 = vsel %vm497, %v337, 0.0
    %v514 = vsel %vm498, %v338, 0.0
    %v515 = vsel %vm499, %v339, 0.0
    %v516 = vsel %vm500, %v340, 0.0
    %v517 = vsel %vm501, %v341, 0.0
    %v518 = vsel %vm502, %v342, 0.0
    %v519 = vsel %vm503, %v343, 0.0
    %v520 = vsel %vm504, %v344, 0.0
    %v521 = vsel %vm505, %v345, 0.0
    %v522 = vsel %vm474, %v378, %v506
    %v523 = vsel %vm475, %v379, %v507
    %v524 = vsel %vm476, %v380, %v508
    %v525 = vsel %vm477, %v381, %v509
    %v526 = vsel %vm478, %v382, %v510
    %v527 = vsel %vm479, %v383, %v511
    %v528 = vsel %vm480, %v384, %v512
    %v529 = vsel %vm481, %v385, %v513
    %v530 = vsel %vm482, %v386, %v514
    %v531 = vsel %vm483, %v387, %v515
    %v532 = vsel %vm484, %v388, %v516
    %v533 = vsel %vm485, %v389, %v517
    %v534 = vsel %vm486, %v390, %v518
    %v535 = vsel %vm487, %v391, %v519
    %v536 = vsel %vm488, %v392, %v520
    %v537 = vsel %vm489, %v393, %v521
    %v538 = vsel %vm458, %v426, %v522
    %v539 = vsel %vm459, %v427, %v523
    %v540 = vsel %vm460, %v428, %v524
    %v541 = vsel %vm461, %v429, %v525
    %v542 = vsel %vm462, %v430, %v526
    %v543 = vsel %vm463, %v431, %v527
    %v544 = vsel %vm464, %v432, %v528
    %v545 = vsel %vm465, %v433, %v529
    %v546 = vsel %vm466, %v434, %v530
    %v547 = vsel %vm467, %v435, %v531
    %v548 = vsel %vm468, %v436, %v532
    %v549 = vsel %vm469, %v437, %v533
    %v550 = vsel %vm470, %v438, %v534
    %v551 = vsel %vm471, %v439, %v535
    %v552 = vsel %vm472, %v440, %v536
    %v553 = vsel %vm473, %v441, %v537
    %v554 = vsel %vm442, %v266, %v538
    %v555 = vsel %vm443, %v267, %v539
    %v556 = vsel %vm444, %v268, %v540
    %v557 = vsel %vm445, %v269, %v541
    %v558 = vsel %vm446, %v270, %v542
    %v559 = vsel %vm447, %v271, %v543
    %v560 = vsel %vm448, %v272, %v544
    %v561 = vsel %vm449, %v273, %v545
    %v562 = vsel %vm450, %v274, %v546
    %v563 = vsel %vm451, %v275, %v547
    %v564 = vsel %vm452, %v276, %v548
    %v565 = vsel %vm453, %v277, %v549
    %v566 = vsel %vm454, %v278, %v550
    %v567 = vsel %vm455, %v279, %v551
    %v568 = vsel %vm456, %v280, %v552
    %v569 = vsel %vm457, %v281, %v553
    %v570 = vpack.c.bf16 %v555, %v554
    %v571 = vpack.c.bf16 %v557, %v556
    %v572 = vpack.c.bf16 %v559, %v558
    %v573 = vpack.c.bf16 %v561, %v560
    %v574 = vpack.c.bf16 %v563, %v562
    %v575 = vpack.c.bf16 %v565, %v564
    %v576 = vpack.c.bf16 %v567, %v566
    %v577 = vpack.c.bf16 %v569, %v568
    %578 = vst [vmem:[#allocation2 + $0x8] sm:$0xff] %v570
    %579 = vst [vmem:[#allocation2 + $0x50] sm:$0xff] %v571
    %580 = vst [vmem:[#allocation2 + $0x98] sm:$0xff] %v572
    %581 = vst [vmem:[#allocation2 + $0xe0] sm:$0xff] %v573
    %582 = vst [vmem:[#allocation2 + $0x128] sm:$0xff] %v574
    %583 = vst [vmem:[#allocation2 + $0x170] sm:$0xff] %v575
    %584 = vst [vmem:[#allocation2 + $0x1b8] sm:$0xff] %v576
    %585 = vst [vmem:[#allocation2 + $0x200] sm:$0xff] %v577
    %vm586 = vcmp.eq.f32.partialorder %v202, 4.0
    %vm587 = vcmp.eq.f32.partialorder %v203, 4.0
    %vm588 = vcmp.eq.f32.partialorder %v204, 4.0
    %vm589 = vcmp.eq.f32.partialorder %v205, 4.0
    %vm590 = vcmp.eq.f32.partialorder %v206, 4.0
    %vm591 = vcmp.eq.f32.partialorder %v207, 4.0
    %vm592 = vcmp.eq.f32.partialorder %v208, 4.0
    %vm593 = vcmp.eq.f32.partialorder %v209, 4.0
    %vm594 = vcmp.eq.f32.partialorder %v210, 4.0
    %vm595 = vcmp.eq.f32.partialorder %v211, 4.0
    %vm596 = vcmp.eq.f32.partialorder %v212, 4.0
    %vm597 = vcmp.eq.f32.partialorder %v213, 4.0
    %vm598 = vcmp.eq.f32.partialorder %v214, 4.0
    %vm599 = vcmp.eq.f32.partialorder %v215, 4.0
    %vm600 = vcmp.eq.f32.partialorder %v216, 4.0
    %vm601 = vcmp.eq.f32.partialorder %v217, 4.0
    %v602 = vsel %vm586, %v330, 0.0
    %v603 = vsel %vm587, %v331, 0.0
    %v604 = vsel %vm588, %v332, 0.0
    %v605 = vsel %vm589, %v333, 0.0
    %v606 = vsel %vm590, %v334, 0.0
    %v607 = vsel %vm591, %v335, 0.0
    %v608 = vsel %vm592, %v336, 0.0
    %v609 = vsel %vm593, %v337, 0.0
    %v610 = vsel %vm594, %v338, 0.0
    %v611 = vsel %vm595, %v339, 0.0
    %v612 = vsel %vm596, %v340, 0.0
    %v613 = vsel %vm597, %v341, 0.0
    %v614 = vsel %vm598, %v342, 0.0
    %v615 = vsel %vm599, %v343, 0.0
    %v616 = vsel %vm600, %v344, 0.0
    %v617 = vsel %vm601, %v345, 0.0
    %v618 = vsel %vm490, %v378, %v602
    %v619 = vsel %vm491, %v379, %v603
    %v620 = vsel %vm492, %v380, %v604
    %v621 = vsel %vm493, %v381, %v605
    %v622 = vsel %vm494, %v382, %v606
    %v623 = vsel %vm495, %v383, %v607
    %v624 = vsel %vm496, %v384, %v608
    %v625 = vsel %vm497, %v385, %v609
    %v626 = vsel %vm498, %v386, %v610
    %v627 = vsel %vm499, %v387, %v611
    %v628 = vsel %vm500, %v388, %v612
    %v629 = vsel %vm501, %v389, %v613
    %v630 = vsel %vm502, %v390, %v614
    %v631 = vsel %vm503, %v391, %v615
    %v632 = vsel %vm504, %v392, %v616
    %v633 = vsel %vm505, %v393, %v617
    %v634 = vsel %vm474, %v426, %v618
    %v635 = vsel %vm475, %v427, %v619
    %v636 = vsel %vm476, %v428, %v620
    %v637 = vsel %vm477, %v429, %v621
    %v638 = vsel %vm478, %v430, %v622
    %v639 = vsel %vm479, %v431, %v623
    %v640 = vsel %vm480, %v432, %v624
    %v641 = vsel %vm481, %v433, %v625
    %v642 = vsel %vm482, %v434, %v626
    %v643 = vsel %vm483, %v435, %v627
    %v644 = vsel %vm484, %v436, %v628
    %v645 = vsel %vm485, %v437, %v629
    %v646 = vsel %vm486, %v438, %v630
    %v647 = vsel %vm487, %v439, %v631
    %v648 = vsel %vm488, %v440, %v632
    %v649 = vsel %vm489, %v441, %v633
    %v650 = vsel %vm458, %v266, %v634
    %v651 = vsel %vm459, %v267, %v635
    %v652 = vsel %vm460, %v268, %v636
    %v653 = vsel %vm461, %v269, %v637
    %v654 = vsel %vm462, %v270, %v638
    %v655 = vsel %vm463, %v271, %v639
    %v656 = vsel %vm464, %v272, %v640
    %v657 = vsel %vm465, %v273, %v641
    %v658 = vsel %vm466, %v274, %v642
    %v659 = vsel %vm467, %v275, %v643
    %v660 = vsel %vm468, %v276, %v644
    %v661 = vsel %vm469, %v277, %v645
    %v662 = vsel %vm470, %v278, %v646
    %v663 = vsel %vm471, %v279, %v647
    %v664 = vsel %vm472, %v280, %v648
    %v665 = vsel %vm473, %v281, %v649
    %v666 = vpack.c.bf16 %v651, %v650
    %v667 = vpack.c.bf16 %v653, %v652
    %v668 = vpack.c.bf16 %v655, %v654
    %v669 = vpack.c.bf16 %v657, %v656
    %v670 = vpack.c.bf16 %v659, %v658
    %v671 = vpack.c.bf16 %v661, %v660
    %v672 = vpack.c.bf16 %v663, %v662
    %v673 = vpack.c.bf16 %v665, %v664
    %674 = vst [vmem:[#allocation2 + $0x10] sm:$0xff] %v666
    %675 = vst [vmem:[#allocation2 + $0x58] sm:$0xff] %v667
    %676 = vst [vmem:[#allocation2 + $0xa0] sm:$0xff] %v668
    %677 = vst [vmem:[#allocation2 + $0xe8] sm:$0xff] %v669
    %678 = vst [vmem:[#allocation2 + $0x130] sm:$0xff] %v670
    %679 = vst [vmem:[#allocation2 + $0x178] sm:$0xff] %v671
    %680 = vst [vmem:[#allocation2 + $0x1c0] sm:$0xff] %v672
    %681 = vst [vmem:[#allocation2 + $0x208] sm:$0xff] %v673
    %vm682 = vcmp.eq.f32.partialorder %v202, 5.0
    %vm683 = vcmp.eq.f32.partialorder %v203, 5.0
    %vm684 = vcmp.eq.f32.partialorder %v204, 5.0
    %vm685 = vcmp.eq.f32.partialorder %v205, 5.0
    %vm686 = vcmp.eq.f32.partialorder %v206, 5.0
    %vm687 = vcmp.eq.f32.partialorder %v207, 5.0
    %vm688 = vcmp.eq.f32.partialorder %v208, 5.0
    %vm689 = vcmp.eq.f32.partialorder %v209, 5.0
    %vm690 = vcmp.eq.f32.partialorder %v210, 5.0
    %vm691 = vcmp.eq.f32.partialorder %v211, 5.0
    %vm692 = vcmp.eq.f32.partialorder %v212, 5.0
    %vm693 = vcmp.eq.f32.partialorder %v213, 5.0
    %vm694 = vcmp.eq.f32.partialorder %v214, 5.0
    %vm695 = vcmp.eq.f32.partialorder %v215, 5.0
    %vm696 = vcmp.eq.f32.partialorder %v216, 5.0
    %vm697 = vcmp.eq.f32.partialorder %v217, 5.0
    %v698 = vsel %vm682, %v330, 0.0
    %v699 = vsel %vm683, %v331, 0.0
    %v700 = vsel %vm684, %v332, 0.0
    %v701 = vsel %vm685, %v333, 0.0
    %v702 = vsel %vm686, %v334, 0.0
    %v703 = vsel %vm687, %v335, 0.0
    %v704 = vsel %vm688, %v336, 0.0
    %v705 = vsel %vm689, %v337, 0.0
    %v706 = vsel %vm690, %v338, 0.0
    %v707 = vsel %vm691, %v339, 0.0
    %v708 = vsel %vm692, %v340, 0.0
    %v709 = vsel %vm693, %v341, 0.0
    %v710 = vsel %vm694, %v342, 0.0
    %v711 = vsel %vm695, %v343, 0.0
    %v712 = vsel %vm696, %v344, 0.0
    %v713 = vsel %vm697, %v345, 0.0
    %v714 = vsel %vm586, %v378, %v698
    %v715 = vsel %vm587, %v379, %v699
    %v716 = vsel %vm588, %v380, %v700
    %v717 = vsel %vm589, %v381, %v701
    %v718 = vsel %vm590, %v382, %v702
    %v719 = vsel %vm591, %v383, %v703
    %v720 = vsel %vm592, %v384, %v704
    %v721 = vsel %vm593, %v385, %v705
    %v722 = vsel %vm594, %v386, %v706
    %v723 = vsel %vm595, %v387, %v707
    %v724 = vsel %vm596, %v388, %v708
    %v725 = vsel %vm597, %v389, %v709
    %v726 = vsel %vm598, %v390, %v710
    %v727 = vsel %vm599, %v391, %v711
    %v728 = vsel %vm600, %v392, %v712
    %v729 = vsel %vm601, %v393, %v713
    %v730 = vsel %vm490, %v426, %v714
    %v731 = vsel %vm491, %v427, %v715
    %v732 = vsel %vm492, %v428, %v716
    %v733 = vsel %vm493, %v429, %v717
    %v734 = vsel %vm494, %v430, %v718
    %v735 = vsel %vm495, %v431, %v719
    %v736 = vsel %vm496, %v432, %v720
    %v737 = vsel %vm497, %v433, %v721
    %v738 = vsel %vm498, %v434, %v722
    %v739 = vsel %vm499, %v435, %v723
    %v740 = vsel %vm500, %v436, %v724
    %v741 = vsel %vm501, %v437, %v725
    %v742 = vsel %vm502, %v438, %v726
    %v743 = vsel %vm503, %v439, %v727
    %v744 = vsel %vm504, %v440, %v728
    %v745 = vsel %vm505, %v441, %v729
    %v746 = vsel %vm474, %v266, %v730
    %v747 = vsel %vm475, %v267, %v731
    %v748 = vsel %vm476, %v268, %v732
    %v749 = vsel %vm477, %v269, %v733
    %v750 = vsel %vm478, %v270, %v734
    %v751 = vsel %vm479, %v271, %v735
    %v752 = vsel %vm480, %v272, %v736
    %v753 = vsel %vm481, %v273, %v737
    %v754 = vsel %vm482, %v274, %v738
    %v755 = vsel %vm483, %v275, %v739
    %v756 = vsel %vm484, %v276, %v740
    %v757 = vsel %vm485, %v277, %v741
    %v758 = vsel %vm486, %v278, %v742
    %v759 = vsel %vm487, %v279, %v743
    %v760 = vsel %vm488, %v280, %v744
    %v761 = vsel %vm489, %v281, %v745
    %v762 = vpack.c.bf16 %v747, %v746
    %v763 = vpack.c.bf16 %v749, %v748
    %v764 = vpack.c.bf16 %v751, %v750
    %v765 = vpack.c.bf16 %v753, %v752
    %v766 = vpack.c.bf16 %v755, %v754
    %v767 = vpack.c.bf16 %v757, %v756
    %v768 = vpack.c.bf16 %v759, %v758
    %v769 = vpack.c.bf16 %v761, %v760
    %770 = vst [vmem:[#allocation2 + $0x18] sm:$0xff] %v762
    %771 = vst [vmem:[#allocation2 + $0x60] sm:$0xff] %v763
    %772 = vst [vmem:[#allocation2 + $0xa8] sm:$0xff] %v764
    %773 = vst [vmem:[#allocation2 + $0xf0] sm:$0xff] %v765
    %774 = vst [vmem:[#allocation2 + $0x138] sm:$0xff] %v766
    %775 = vst [vmem:[#allocation2 + $0x180] sm:$0xff] %v767
    %776 = vst [vmem:[#allocation2 + $0x1c8] sm:$0xff] %v768
    %777 = vst [vmem:[#allocation2 + $0x210] sm:$0xff] %v769
    %vm778 = vcmp.eq.f32.partialorder %v202, 6.0
    %vm779 = vcmp.eq.f32.partialorder %v203, 6.0
    %vm780 = vcmp.eq.f32.partialorder %v204, 6.0
    %vm781 = vcmp.eq.f32.partialorder %v205, 6.0
    %vm782 = vcmp.eq.f32.partialorder %v206, 6.0
    %vm783 = vcmp.eq.f32.partialorder %v207, 6.0
    %vm784 = vcmp.eq.f32.partialorder %v208, 6.0
    %vm785 = vcmp.eq.f32.partialorder %v209, 6.0
    %vm786 = vcmp.eq.f32.partialorder %v210, 6.0
    %vm787 = vcmp.eq.f32.partialorder %v211, 6.0
    %vm788 = vcmp.eq.f32.partialorder %v212, 6.0
    %vm789 = vcmp.eq.f32.partialorder %v213, 6.0
    %vm790 = vcmp.eq.f32.partialorder %v214, 6.0
    %vm791 = vcmp.eq.f32.partialorder %v215, 6.0
    %vm792 = vcmp.eq.f32.partialorder %v216, 6.0
    %vm793 = vcmp.eq.f32.partialorder %v217, 6.0
    %v794 = vsel %vm778, %v330, 0.0
    %v795 = vsel %vm779, %v331, 0.0
    %v796 = vsel %vm780, %v332, 0.0
    %v797 = vsel %vm781, %v333, 0.0
    %v798 = vsel %vm782, %v334, 0.0
    %v799 = vsel %vm783, %v335, 0.0
    %v800 = vsel %vm784, %v336, 0.0
    %v801 = vsel %vm785, %v337, 0.0
    %v802 = vsel %vm786, %v338, 0.0
    %v803 = vsel %vm787, %v339, 0.0
    %v804 = vsel %vm788, %v340, 0.0
    %v805 = vsel %vm789, %v341, 0.0
    %v806 = vsel %vm790, %v342, 0.0
    %v807 = vsel %vm791, %v343, 0.0
    %v808 = vsel %vm792, %v344, 0.0
    %v809 = vsel %vm793, %v345, 0.0
    %v810 = vsel %vm682, %v378, %v794
    %v811 = vsel %vm683, %v379, %v795
    %v812 = vsel %vm684, %v380, %v796
    %v813 = vsel %vm685, %v381, %v797
    %v814 = vsel %vm686, %v382, %v798
    %v815 = vsel %vm687, %v383, %v799
    %v816 = vsel %vm688, %v384, %v800
    %v817 = vsel %vm689, %v385, %v801
    %v818 = vsel %vm690, %v386, %v802
    %v819 = vsel %vm691, %v387, %v803
    %v820 = vsel %vm692, %v388, %v804
    %v821 = vsel %vm693, %v389, %v805
    %v822 = vsel %vm694, %v390, %v806
    %v823 = vsel %vm695, %v391, %v807
    %v824 = vsel %vm696, %v392, %v808
    %v825 = vsel %vm697, %v393, %v809
    %v826 = vsel %vm586, %v426, %v810
    %v827 = vsel %vm587, %v427, %v811
    %v828 = vsel %vm588, %v428, %v812
    %v829 = vsel %vm589, %v429, %v813
    %v830 = vsel %vm590, %v430, %v814
    %v831 = vsel %vm591, %v431, %v815
    %v832 = vsel %vm592, %v432, %v816
    %v833 = vsel %vm593, %v433, %v817
    %v834 = vsel %vm594, %v434, %v818
    %v835 = vsel %vm595, %v435, %v819
    %v836 = vsel %vm596, %v436, %v820
    %v837 = vsel %vm597, %v437, %v821
    %v838 = vsel %vm598, %v438, %v822
    %v839 = vsel %vm599, %v439, %v823
    %v840 = vsel %vm600, %v440, %v824
    %v841 = vsel %vm601, %v441, %v825
    %v842 = vsel %vm490, %v266, %v826
    %v843 = vsel %vm491, %v267, %v827
    %v844 = vsel %vm492, %v268, %v828
    %v845 = vsel %vm493, %v269, %v829
    %v846 = vsel %vm494, %v270, %v830
    %v847 = vsel %vm495, %v271, %v831
    %v848 = vsel %vm496, %v272, %v832
    %v849 = vsel %vm497, %v273, %v833
    %v850 = vsel %vm498, %v274, %v834
    %v851 = vsel %vm499, %v275, %v835
    %v852 = vsel %vm500, %v276, %v836
    %v853 = vsel %vm501, %v277, %v837
    %v854 = vsel %vm502, %v278, %v838
    %v855 = vsel %vm503, %v279, %v839
    %v856 = vsel %vm504, %v280, %v840
    %v857 = vsel %vm505, %v281, %v841
    %v858 = vpack.c.bf16 %v843, %v842
    %v859 = vpack.c.bf16 %v845, %v844
    %v860 = vpack.c.bf16 %v847, %v846
    %v861 = vpack.c.bf16 %v849, %v848
    %v862 = vpack.c.bf16 %v851, %v850
    %v863 = vpack.c.bf16 %v853, %v852
    %v864 = vpack.c.bf16 %v855, %v854
    %v865 = vpack.c.bf16 %v857, %v856
    %866 = vst [vmem:[#allocation2 + $0x20] sm:$0xff] %v858
    %867 = vst [vmem:[#allocation2 + $0x68] sm:$0xff] %v859
    %868 = vst [vmem:[#allocation2 + $0xb0] sm:$0xff] %v860
    %869 = vst [vmem:[#allocation2 + $0xf8] sm:$0xff] %v861
    %870 = vst [vmem:[#allocation2 + $0x140] sm:$0xff] %v862
    %871 = vst [vmem:[#allocation2 + $0x188] sm:$0xff] %v863
    %872 = vst [vmem:[#allocation2 + $0x1d0] sm:$0xff] %v864
    %873 = vst [vmem:[#allocation2 + $0x218] sm:$0xff] %v865
    %vm874 = vcmp.eq.f32.partialorder %v202, 7.0
    %vm875 = vcmp.eq.f32.partialorder %v203, 7.0
    %vm876 = vcmp.eq.f32.partialorder %v204, 7.0
    %vm877 = vcmp.eq.f32.partialorder %v205, 7.0
    %vm878 = vcmp.eq.f32.partialorder %v206, 7.0
    %vm879 = vcmp.eq.f32.partialorder %v207, 7.0
    %vm880 = vcmp.eq.f32.partialorder %v208, 7.0
    %vm881 = vcmp.eq.f32.partialorder %v209, 7.0
    %vm882 = vcmp.eq.f32.partialorder %v210, 7.0
    %vm883 = vcmp.eq.f32.partialorder %v211, 7.0
    %vm884 = vcmp.eq.f32.partialorder %v212, 7.0
    %vm885 = vcmp.eq.f32.partialorder %v213, 7.0
    %vm886 = vcmp.eq.f32.partialorder %v214, 7.0
    %vm887 = vcmp.eq.f32.partialorder %v215, 7.0
    %vm888 = vcmp.eq.f32.partialorder %v216, 7.0
    %vm889 = vcmp.eq.f32.partialorder %v217, 7.0
    %v890 = vsel %vm874, %v330, 0.0
    %v891 = vsel %vm875, %v331, 0.0
    %v892 = vsel %vm876, %v332, 0.0
    %v893 = vsel %vm877, %v333, 0.0
    %v894 = vsel %vm878, %v334, 0.0
    %v895 = vsel %vm879, %v335, 0.0
    %v896 = vsel %vm880, %v336, 0.0
    %v897 = vsel %vm881, %v337, 0.0
    %v898 = vsel %vm882, %v338, 0.0
    %v899 = vsel %vm883, %v339, 0.0
    %v900 = vsel %vm884, %v340, 0.0
    %v901 = vsel %vm885, %v341, 0.0
    %v902 = vsel %vm886, %v342, 0.0
    %v903 = vsel %vm887, %v343, 0.0
    %v904 = vsel %vm888, %v344, 0.0
    %v905 = vsel %vm889, %v345, 0.0
    %v906 = vsel %vm778, %v378, %v890
    %v907 = vsel %vm779, %v379, %v891
    %v908 = vsel %vm780, %v380, %v892
    %v909 = vsel %vm781, %v381, %v893
    %v910 = vsel %vm782, %v382, %v894
    %v911 = vsel %vm783, %v383, %v895
    %v912 = vsel %vm784, %v384, %v896
    %v913 = vsel %vm785, %v385, %v897
    %v914 = vsel %vm786, %v386, %v898
    %v915 = vsel %vm787, %v387, %v899
    %v916 = vsel %vm788, %v388, %v900
    %v917 = vsel %vm789, %v389, %v901
    %v918 = vsel %vm790, %v390, %v902
    %v919 = vsel %vm791, %v391, %v903
    %v920 = vsel %vm792, %v392, %v904
    %v921 = vsel %vm793, %v393, %v905
    %v922 = vsel %vm682, %v426, %v906
    %v923 = vsel %vm683, %v427, %v907
    %v924 = vsel %vm684, %v428, %v908
    %v925 = vsel %vm685, %v429, %v909
    %v926 = vsel %vm686, %v430, %v910
    %v927 = vsel %vm687, %v431, %v911
    %v928 = vsel %vm688, %v432, %v912
    %v929 = vsel %vm689, %v433, %v913
    %v930 = vsel %vm690, %v434, %v914
    %v931 = vsel %vm691, %v435, %v915
    %v932 = vsel %vm692, %v436, %v916
    %v933 = vsel %vm693, %v437, %v917
    %v934 = vsel %vm694, %v438, %v918
    %v935 = vsel %vm695, %v439, %v919
    %v936 = vsel %vm696, %v440, %v920
    %v937 = vsel %vm697, %v441, %v921
    %v938 = vsel %vm586, %v266, %v922
    %v939 = vsel %vm587, %v267, %v923
    %v940 = vsel %vm588, %v268, %v924
    %v941 = vsel %vm589, %v269, %v925
    %v942 = vsel %vm590, %v270, %v926
    %v943 = vsel %vm591, %v271, %v927
    %v944 = vsel %vm592, %v272, %v928
    %v945 = vsel %vm593, %v273, %v929
    %v946 = vsel %vm594, %v274, %v930
    %v947 = vsel %vm595, %v275, %v931
    %v948 = vsel %vm596, %v276, %v932
    %v949 = vsel %vm597, %v277, %v933
    %v950 = vsel %vm598, %v278, %v934
    %v951 = vsel %vm599, %v279, %v935
    %v952 = vsel %vm600, %v280, %v936
    %v953 = vsel %vm601, %v281, %v937
    %v954 = vpack.c.bf16 %v939, %v938
    %v955 = vpack.c.bf16 %v941, %v940
    %v956 = vpack.c.bf16 %v943, %v942
    %v957 = vpack.c.bf16 %v945, %v944
    %v958 = vpack.c.bf16 %v947, %v946
    %v959 = vpack.c.bf16 %v949, %v948
    %v960 = vpack.c.bf16 %v951, %v950
    %v961 = vpack.c.bf16 %v953, %v952
    %962 = vst [vmem:[#allocation2 + $0x28] sm:$0xff] %v954
    %963 = vst [vmem:[#allocation2 + $0x70] sm:$0xff] %v955
    %964 = vst [vmem:[#allocation2 + $0xb8] sm:$0xff] %v956
    %965 = vst [vmem:[#allocation2 + $0x100] sm:$0xff] %v957
    %966 = vst [vmem:[#allocation2 + $0x148] sm:$0xff] %v958
    %967 = vst [vmem:[#allocation2 + $0x190] sm:$0xff] %v959
    %968 = vst [vmem:[#allocation2 + $0x1d8] sm:$0xff] %v960
    %969 = vst [vmem:[#allocation2 + $0x220] sm:$0xff] %v961
    %vm970 = vcmp.eq.f32.partialorder %v202, 8.0
    %vm971 = vcmp.eq.f32.partialorder %v203, 8.0
    %vm972 = vcmp.eq.f32.partialorder %v204, 8.0
    %vm973 = vcmp.eq.f32.partialorder %v205, 8.0
    %vm974 = vcmp.eq.f32.partialorder %v206, 8.0
    %vm975 = vcmp.eq.f32.partialorder %v207, 8.0
    %vm976 = vcmp.eq.f32.partialorder %v208, 8.0
    %vm977 = vcmp.eq.f32.partialorder %v209, 8.0
    %vm978 = vcmp.eq.f32.partialorder %v210, 8.0
    %vm979 = vcmp.eq.f32.partialorder %v211, 8.0
    %vm980 = vcmp.eq.f32.partialorder %v212, 8.0
    %vm981 = vcmp.eq.f32.partialorder %v213, 8.0
    %vm982 = vcmp.eq.f32.partialorder %v214, 8.0
    %vm983 = vcmp.eq.f32.partialorder %v215, 8.0
    %vm984 = vcmp.eq.f32.partialorder %v216, 8.0
    %vm985 = vcmp.eq.f32.partialorder %v217, 8.0
    %v986 = vsel %vm970, %v330, 0.0
    %v987 = vsel %vm971, %v331, 0.0
    %v988 = vsel %vm972, %v332, 0.0
    %v989 = vsel %vm973, %v333, 0.0
    %v990 = vsel %vm974, %v334, 0.0
    %v991 = vsel %vm975, %v335, 0.0
    %v992 = vsel %vm976, %v336, 0.0
    %v993 = vsel %vm977, %v337, 0.0
    %v994 = vsel %vm978, %v338, 0.0
    %v995 = vsel %vm979, %v339, 0.0
    %v996 = vsel %vm980, %v340, 0.0
    %v997 = vsel %vm981, %v341, 0.0
    %v998 = vsel %vm982, %v342, 0.0
    %v999 = vsel %vm983, %v343, 0.0
    %v1000 = vsel %vm984, %v344, 0.0
    %v1001 = vsel %vm985, %v345, 0.0
    %v1002 = vsel %vm874, %v378, %v986
    %v1003 = vsel %vm875, %v379, %v987
    %v1004 = vsel %vm876, %v380, %v988
    %v1005 = vsel %vm877, %v381, %v989
    %v1006 = vsel %vm878, %v382, %v990
    %v1007 = vsel %vm879, %v383, %v991
    %v1008 = vsel %vm880, %v384, %v992
    %v1009 = vsel %vm881, %v385, %v993
    %v1010 = vsel %vm882, %v386, %v994
    %v1011 = vsel %vm883, %v387, %v995
    %v1012 = vsel %vm884, %v388, %v996
    %v1013 = vsel %vm885, %v389, %v997
    %v1014 = vsel %vm886, %v390, %v998
    %v1015 = vsel %vm887, %v391, %v999
    %v1016 = vsel %vm888, %v392, %v1000
    %v1017 = vsel %vm889, %v393, %v1001
    %v1018 = vsel %vm778, %v426, %v1002
    %v1019 = vsel %vm779, %v427, %v1003
    %v1020 = vsel %vm780, %v428, %v1004
    %v1021 = vsel %vm781, %v429, %v1005
    %v1022 = vsel %vm782, %v430, %v1006
    %v1023 = vsel %vm783, %v431, %v1007
    %v1024 = vsel %vm784, %v432, %v1008
    %v1025 = vsel %vm785, %v433, %v1009
    %v1026 = vsel %vm786, %v434, %v1010
    %v1027 = vsel %vm787, %v435, %v1011
    %v1028 = vsel %vm788, %v436, %v1012
    %v1029 = vsel %vm789, %v437, %v1013
    %v1030 = vsel %vm790, %v438, %v1014
    %v1031 = vsel %vm791, %v439, %v1015
    %v1032 = vsel %vm792, %v440, %v1016
    %v1033 = vsel %vm793, %v441, %v1017
    %v1034 = vsel %vm682, %v266, %v1018
    %v1035 = vsel %vm683, %v267, %v1019
    %v1036 = vsel %vm684, %v268, %v1020
    %v1037 = vsel %vm685, %v269, %v1021
    %v1038 = vsel %vm686, %v270, %v1022
    %v1039 = vsel %vm687, %v271, %v1023
    %v1040 = vsel %vm688, %v272, %v1024
    %v1041 = vsel %vm689, %v273, %v1025
    %v1042 = vsel %vm690, %v274, %v1026
    %v1043 = vsel %vm691, %v275, %v1027
    %v1044 = vsel %vm692, %v276, %v1028
    %v1045 = vsel %vm693, %v277, %v1029
    %v1046 = vsel %vm694, %v278, %v1030
    %v1047 = vsel %vm695, %v279, %v1031
    %v1048 = vsel %vm696, %v280, %v1032
    %v1049 = vsel %vm697, %v281, %v1033
    %v1050 = vpack.c.bf16 %v1035, %v1034
    %v1051 = vpack.c.bf16 %v1037, %v1036
    %v1052 = vpack.c.bf16 %v1039, %v1038
    %v1053 = vpack.c.bf16 %v1041, %v1040
    %v1054 = vpack.c.bf16 %v1043, %v1042
    %v1055 = vpack.c.bf16 %v1045, %v1044
    %v1056 = vpack.c.bf16 %v1047, %v1046
    %v1057 = vpack.c.bf16 %v1049, %v1048
    %1058 = vst [vmem:[#allocation2 + $0x30] sm:$0xff] %v1050
    %1059 = vst [vmem:[#allocation2 + $0x78] sm:$0xff] %v1051
    %1060 = vst [vmem:[#allocation2 + $0xc0] sm:$0xff] %v1052
    %1061 = vst [vmem:[#allocation2 + $0x108] sm:$0xff] %v1053
    %1062 = vst [vmem:[#allocation2 + $0x150] sm:$0xff] %v1054
    %1063 = vst [vmem:[#allocation2 + $0x198] sm:$0xff] %v1055
    %1064 = vst [vmem:[#allocation2 + $0x1e0] sm:$0xff] %v1056
    %1065 = vst [vmem:[#allocation2 + $0x228] sm:$0xff] %v1057
    %vm1066 = vcmp.eq.f32.partialorder %v202, 9.0
    %vm1067 = vcmp.eq.f32.partialorder %v203, 9.0
    %vm1068 = vcmp.eq.f32.partialorder %v204, 9.0
    %vm1069 = vcmp.eq.f32.partialorder %v205, 9.0
    %vm1070 = vcmp.eq.f32.partialorder %v206, 9.0
    %vm1071 = vcmp.eq.f32.partialorder %v207, 9.0
    %vm1072 = vcmp.eq.f32.partialorder %v208, 9.0
    %vm1073 = vcmp.eq.f32.partialorder %v209, 9.0
    %vm1074 = vcmp.eq.f32.partialorder %v210, 9.0
    %vm1075 = vcmp.eq.f32.partialorder %v211, 9.0
    %vm1076 = vcmp.eq.f32.partialorder %v212, 9.0
    %vm1077 = vcmp.eq.f32.partialorder %v213, 9.0
    %vm1078 = vcmp.eq.f32.partialorder %v214, 9.0
    %vm1079 = vcmp.eq.f32.partialorder %v215, 9.0
    %vm1080 = vcmp.eq.f32.partialorder %v216, 9.0
    %vm1081 = vcmp.eq.f32.partialorder %v217, 9.0
    %v1082 = vsel %vm1066, %v330, 0.0
    %v1083 = vsel %vm1067, %v331, 0.0
    %v1084 = vsel %vm1068, %v332, 0.0
    %v1085 = vsel %vm1069, %v333, 0.0
    %v1086 = vsel %vm1070, %v334, 0.0
    %v1087 = vsel %vm1071, %v335, 0.0
    %v1088 = vsel %vm1072, %v336, 0.0
    %v1089 = vsel %vm1073, %v337, 0.0
    %v1090 = vsel %vm1074, %v338, 0.0
    %v1091 = vsel %vm1075, %v339, 0.0
    %v1092 = vsel %vm1076, %v340, 0.0
    %v1093 = vsel %vm1077, %v341, 0.0
    %v1094 = vsel %vm1078, %v342, 0.0
    %v1095 = vsel %vm1079, %v343, 0.0
    %v1096 = vsel %vm1080, %v344, 0.0
    %v1097 = vsel %vm1081, %v345, 0.0
    %v1098 = vsel %vm970, %v378, %v1082
    %v1099 = vsel %vm971, %v379, %v1083
    %v1100 = vsel %vm972, %v380, %v1084
    %v1101 = vsel %vm973, %v381, %v1085
    %v1102 = vsel %vm974, %v382, %v1086
    %v1103 = vsel %vm975, %v383, %v1087
    %v1104 = vsel %vm976, %v384, %v1088
    %v1105 = vsel %vm977, %v385, %v1089
    %v1106 = vsel %vm978, %v386, %v1090
    %v1107 = vsel %vm979, %v387, %v1091
    %v1108 = vsel %vm980, %v388, %v1092
    %v1109 = vsel %vm981, %v389, %v1093
    %v1110 = vsel %vm982, %v390, %v1094
    %v1111 = vsel %vm983, %v391, %v1095
    %v1112 = vsel %vm984, %v392, %v1096
    %v1113 = vsel %vm985, %v393, %v1097
    %v1114 = vsel %vm874, %v426, %v1098
    %v1115 = vsel %vm875, %v427, %v1099
    %v1116 = vsel %vm876, %v428, %v1100
    %v1117 = vsel %vm877, %v429, %v1101
    %v1118 = vsel %vm878, %v430, %v1102
    %v1119 = vsel %vm879, %v431, %v1103
    %v1120 = vsel %vm880, %v432, %v1104
    %v1121 = vsel %vm881, %v433, %v1105
    %v1122 = vsel %vm882, %v434, %v1106
    %v1123 = vsel %vm883, %v435, %v1107
    %v1124 = vsel %vm884, %v436, %v1108
    %v1125 = vsel %vm885, %v437, %v1109
    %v1126 = vsel %vm886, %v438, %v1110
    %v1127 = vsel %vm887, %v439, %v1111
    %v1128 = vsel %vm888, %v440, %v1112
    %v1129 = vsel %vm889, %v441, %v1113
    %v1130 = vsel %vm778, %v266, %v1114
    %v1131 = vsel %vm779, %v267, %v1115
    %v1132 = vsel %vm780, %v268, %v1116
    %v1133 = vsel %vm781, %v269, %v1117
    %v1134 = vsel %vm782, %v270, %v1118
    %v1135 = vsel %vm783, %v271, %v1119
    %v1136 = vsel %vm784, %v272, %v1120
    %v1137 = vsel %vm785, %v273, %v1121
    %v1138 = vsel %vm786, %v274, %v1122
    %v1139 = vsel %vm787, %v275, %v1123
    %v1140 = vsel %vm788, %v276, %v1124
    %v1141 = vsel %vm789, %v277, %v1125
    %v1142 = vsel %vm790, %v278, %v1126
    %v1143 = vsel %vm791, %v279, %v1127
    %v1144 = vsel %vm792, %v280, %v1128
    %v1145 = vsel %vm793, %v281, %v1129
    %v1146 = vpack.c.bf16 %v1131, %v1130
    %v1147 = vpack.c.bf16 %v1133, %v1132
    %v1148 = vpack.c.bf16 %v1135, %v1134
    %v1149 = vpack.c.bf16 %v1137, %v1136
    %v1150 = vpack.c.bf16 %v1139, %v1138
    %v1151 = vpack.c.bf16 %v1141, %v1140
    %v1152 = vpack.c.bf16 %v1143, %v1142
    %v1153 = vpack.c.bf16 %v1145, %v1144
    %1154 = vst [vmem:[#allocation2 + $0x38] sm:$0xff] %v1146
    %1155 = vst [vmem:[#allocation2 + $0x80] sm:$0xff] %v1147
    %1156 = vst [vmem:[#allocation2 + $0xc8] sm:$0xff] %v1148
    %1157 = vst [vmem:[#allocation2 + $0x110] sm:$0xff] %v1149
    %1158 = vst [vmem:[#allocation2 + $0x158] sm:$0xff] %v1150
    %1159 = vst [vmem:[#allocation2 + $0x1a0] sm:$0xff] %v1151
    %1160 = vst [vmem:[#allocation2 + $0x1e8] sm:$0xff] %v1152
    %1161 = vst [vmem:[#allocation2 + $0x230] sm:$0xff] %v1153
    %vm1162 = vcmp.eq.f32.partialorder %v202, 10.0
    %vm1163 = vcmp.eq.f32.partialorder %v203, 10.0
    %vm1164 = vcmp.eq.f32.partialorder %v204, 10.0
    %vm1165 = vcmp.eq.f32.partialorder %v205, 10.0
    %vm1166 = vcmp.eq.f32.partialorder %v206, 10.0
    %vm1167 = vcmp.eq.f32.partialorder %v207, 10.0
    %vm1168 = vcmp.eq.f32.partialorder %v208, 10.0
    %vm1169 = vcmp.eq.f32.partialorder %v209, 10.0
    %vm1170 = vcmp.eq.f32.partialorder %v210, 10.0
    %vm1171 = vcmp.eq.f32.partialorder %v211, 10.0
    %vm1172 = vcmp.eq.f32.partialorder %v212, 10.0
    %vm1173 = vcmp.eq.f32.partialorder %v213, 10.0
    %vm1174 = vcmp.eq.f32.partialorder %v214, 10.0
    %vm1175 = vcmp.eq.f32.partialorder %v215, 10.0
    %vm1176 = vcmp.eq.f32.partialorder %v216, 10.0
    %vm1177 = vcmp.eq.f32.partialorder %v217, 10.0
    %v1178 = vsel %vm1162, %v330, 0.0
    %v1179 = vsel %vm1163, %v331, 0.0
    %v1180 = vsel %vm1164, %v332, 0.0
    %v1181 = vsel %vm1165, %v333, 0.0
    %v1182 = vsel %vm1166, %v334, 0.0
    %v1183 = vsel %vm1167, %v335, 0.0
    %v1184 = vsel %vm1168, %v336, 0.0
    %v1185 = vsel %vm1169, %v337, 0.0
    %v1186 = vsel %vm1170, %v338, 0.0
    %v1187 = vsel %vm1171, %v339, 0.0
    %v1188 = vsel %vm1172, %v340, 0.0
    %v1189 = vsel %vm1173, %v341, 0.0
    %v1190 = vsel %vm1174, %v342, 0.0
    %v1191 = vsel %vm1175, %v343, 0.0
    %v1192 = vsel %vm1176, %v344, 0.0
    %v1193 = vsel %vm1177, %v345, 0.0
    %v1194 = vsel %vm1066, %v378, %v1178
    %v1195 = vsel %vm1067, %v379, %v1179
    %v1196 = vsel %vm1068, %v380, %v1180
    %v1197 = vsel %vm1069, %v381, %v1181
    %v1198 = vsel %vm1070, %v382, %v1182
    %v1199 = vsel %vm1071, %v383, %v1183
    %v1200 = vsel %vm1072, %v384, %v1184
    %v1201 = vsel %vm1073, %v385, %v1185
    %v1202 = vsel %vm1074, %v386, %v1186
    %v1203 = vsel %vm1075, %v387, %v1187
    %v1204 = vsel %vm1076, %v388, %v1188
    %v1205 = vsel %vm1077, %v389, %v1189
    %v1206 = vsel %vm1078, %v390, %v1190
    %v1207 = vsel %vm1079, %v391, %v1191
    %v1208 = vsel %vm1080, %v392, %v1192
    %v1209 = vsel %vm1081, %v393, %v1193
    %v1210 = vsel %vm970, %v426, %v1194
    %v1211 = vsel %vm971, %v427, %v1195
    %v1212 = vsel %vm972, %v428, %v1196
    %v1213 = vsel %vm973, %v429, %v1197
    %v1214 = vsel %vm974, %v430, %v1198
    %v1215 = vsel %vm975, %v431, %v1199
    %v1216 = vsel %vm976, %v432, %v1200
    %v1217 = vsel %vm977, %v433, %v1201
    %v1218 = vsel %vm978, %v434, %v1202
    %v1219 = vsel %vm979, %v435, %v1203
    %v1220 = vsel %vm980, %v436, %v1204
    %v1221 = vsel %vm981, %v437, %v1205
    %v1222 = vsel %vm982, %v438, %v1206
    %v1223 = vsel %vm983, %v439, %v1207
    %v1224 = vsel %vm984, %v440, %v1208
    %v1225 = vsel %vm985, %v441, %v1209
    %v1226 = vsel %vm874, %v266, %v1210
    %v1227 = vsel %vm875, %v267, %v1211
    %v1228 = vsel %vm876, %v268, %v1212
    %v1229 = vsel %vm877, %v269, %v1213
    %v1230 = vsel %vm878, %v270, %v1214
    %v1231 = vsel %vm879, %v271, %v1215
    %v1232 = vsel %vm880, %v272, %v1216
    %v1233 = vsel %vm881, %v273, %v1217
    %v1234 = vsel %vm882, %v274, %v1218
    %v1235 = vsel %vm883, %v275, %v1219
    %v1236 = vsel %vm884, %v276, %v1220
    %v1237 = vsel %vm885, %v277, %v1221
    %v1238 = vsel %vm886, %v278, %v1222
    %v1239 = vsel %vm887, %v279, %v1223
    %v1240 = vsel %vm888, %v280, %v1224
    %v1241 = vsel %vm889, %v281, %v1225
    %v1242 = vpack.c.bf16 %v1227, %v1226
    %v1243 = vpack.c.bf16 %v1229, %v1228
    %v1244 = vpack.c.bf16 %v1231, %v1230
    %v1245 = vpack.c.bf16 %v1233, %v1232
    %v1246 = vpack.c.bf16 %v1235, %v1234
    %v1247 = vpack.c.bf16 %v1237, %v1236
    %v1248 = vpack.c.bf16 %v1239, %v1238
    %v1249 = vpack.c.bf16 %v1241, %v1240
    %1250 = vst [vmem:[#allocation2 + $0x40] sm:$0xff] %v1242
    %1251 = vst [vmem:[#allocation2 + $0x88] sm:$0xff] %v1243
    %1252 = vst [vmem:[#allocation2 + $0xd0] sm:$0xff] %v1244
    %1253 = vst [vmem:[#allocation2 + $0x118] sm:$0xff] %v1245
    %1254 = vst [vmem:[#allocation2 + $0x160] sm:$0xff] %v1246
    %1255 = vst [vmem:[#allocation2 + $0x1a8] sm:$0xff] %v1247
    %1256 = vst [vmem:[#allocation2 + $0x1f0] sm:$0xff] %v1248
    %1257 = vst [vmem:[#allocation2 + $0x238] sm:$0xff] %v1249
    %v1258 = vld [vmem:[#allocation2] sm:$0xff]
    %v1259 = vld [vmem:[#allocation2 + $0x8] sm:$0xff]
    %v1260 = vld [vmem:[#allocation2 + $0x10] sm:$0xff]
    %v1261 = vld [vmem:[#allocation2 + $0x18] sm:$0xff]
    %v1262 = vld [vmem:[#allocation2 + $0x20] sm:$0xff]
    %v1263 = vld [vmem:[#allocation2 + $0x28] sm:$0xff]
    %v1264 = vld [vmem:[#allocation2 + $0x30] sm:$0xff]
    %v1265 = vld [vmem:[#allocation2 + $0x38] sm:$0xff]
    %v1266 = vld [vmem:[#allocation2 + $0x40] sm:$0xff]
    %v1267 = vld [vmem:[#allocation2 + $0x48] sm:$0xff]
    %v1268 = vld [vmem:[#allocation2 + $0x50] sm:$0xff]
    %v1269 = vld [vmem:[#allocation2 + $0x58] sm:$0xff]
    %v1270 = vld [vmem:[#allocation2 + $0x60] sm:$0xff]
    %v1271 = vld [vmem:[#allocation2 + $0x68] sm:$0xff]
    %v1272 = vld [vmem:[#allocation2 + $0x70] sm:$0xff]
    %v1273 = vld [vmem:[#allocation2 + $0x78] sm:$0xff]
    %v1274 = vld [vmem:[#allocation2 + $0x80] sm:$0xff]
    %v1275 = vld [vmem:[#allocation2 + $0x88] sm:$0xff]
    %v1276 = vld [vmem:[#allocation2 + $0x90] sm:$0xff]
    %v1277 = vld [vmem:[#allocation2 + $0x98] sm:$0xff]
    %v1278 = vld [vmem:[#allocation2 + $0xa0] sm:$0xff]
    %v1279 = vld [vmem:[#allocation2 + $0xa8] sm:$0xff]
    %v1280 = vld [vmem:[#allocation2 + $0xb0] sm:$0xff]
    %v1281 = vld [vmem:[#allocation2 + $0xb8] sm:$0xff]
    %v1282 = vld [vmem:[#allocation2 + $0xc0] sm:$0xff]
    %v1283 = vld [vmem:[#allocation2 + $0xc8] sm:$0xff]
    %v1284 = vld [vmem:[#allocation2 + $0xd0] sm:$0xff]
    %v1285 = vld [vmem:[#allocation2 + $0xd8] sm:$0xff]
    %v1286 = vld [vmem:[#allocation2 + $0xe0] sm:$0xff]
    %v1287 = vld [vmem:[#allocation2 + $0xe8] sm:$0xff]
    %v1288 = vld [vmem:[#allocation2 + $0xf0] sm:$0xff]
    %v1289 = vld [vmem:[#allocation2 + $0xf8] sm:$0xff]
    %v1290 = vld [vmem:[#allocation2 + $0x100] sm:$0xff]
    %v1291 = vld [vmem:[#allocation2 + $0x108] sm:$0xff]
    %v1292 = vld [vmem:[#allocation2 + $0x110] sm:$0xff]
    %v1293 = vld [vmem:[#allocation2 + $0x118] sm:$0xff]
    %v1294 = vld [vmem:[#allocation2 + $0x120] sm:$0xff]
    %v1295 = vld [vmem:[#allocation2 + $0x128] sm:$0xff]
    %v1296 = vld [vmem:[#allocation2 + $0x130] sm:$0xff]
    %v1297 = vld [vmem:[#allocation2 + $0x138] sm:$0xff]
    %v1298 = vld [vmem:[#allocation2 + $0x140] sm:$0xff]
    %v1299 = vld [vmem:[#allocation2 + $0x148] sm:$0xff]
    %v1300 = vld [vmem:[#allocation2 + $0x150] sm:$0xff]
    %v1301 = vld [vmem:[#allocation2 + $0x158] sm:$0xff]
    %v1302 = vld [vmem:[#allocation2 + $0x160] sm:$0xff]
    %v1303 = vld [vmem:[#allocation2 + $0x168] sm:$0xff]
    %v1304 = vld [vmem:[#allocation2 + $0x170] sm:$0xff]
    %v1305 = vld [vmem:[#allocation2 + $0x178] sm:$0xff]
    %v1306 = vld [vmem:[#allocation2 + $0x180] sm:$0xff]
    %v1307 = vld [vmem:[#allocation2 + $0x188] sm:$0xff]
    %v1308 = vld [vmem:[#allocation2 + $0x190] sm:$0xff]
    %v1309 = vld [vmem:[#allocation2 + $0x198] sm:$0xff]
    %v1310 = vld [vmem:[#allocation2 + $0x1a0] sm:$0xff]
    %v1311 = vld [vmem:[#allocation2 + $0x1a8] sm:$0xff]
    %v1312 = vld [vmem:[#allocation2 + $0x1b0] sm:$0xff]
    %v1313 = vld [vmem:[#allocation2 + $0x1b8] sm:$0xff]
    %v1314 = vld [vmem:[#allocation2 + $0x1c0] sm:$0xff]
    %v1315 = vld [vmem:[#allocation2 + $0x1c8] sm:$0xff]
    %v1316 = vld [vmem:[#allocation2 + $0x1d0] sm:$0xff]
    %v1317 = vld [vmem:[#allocation2 + $0x1d8] sm:$0xff]
    %v1318 = vld [vmem:[#allocation2 + $0x1e0] sm:$0xff]
    %v1319 = vld [vmem:[#allocation2 + $0x1e8] sm:$0xff]
    %v1320 = vld [vmem:[#allocation2 + $0x1f0] sm:$0xff]
    %v1321 = vld [vmem:[#allocation2 + $0x1f8] sm:$0xff]
    %v1322 = vld [vmem:[#allocation2 + $0x200] sm:$0xff]
    %v1323 = vld [vmem:[#allocation2 + $0x208] sm:$0xff]
    %v1324 = vld [vmem:[#allocation2 + $0x210] sm:$0xff]
    %v1325 = vld [vmem:[#allocation2 + $0x218] sm:$0xff]
    %v1326 = vld [vmem:[#allocation2 + $0x220] sm:$0xff]
    %v1327 = vld [vmem:[#allocation2 + $0x228] sm:$0xff]
    %v1328 = vld [vmem:[#allocation2 + $0x230] sm:$0xff]
    %v1329 = vld [vmem:[#allocation2 + $0x238] sm:$0xff]
    %v1330 = vld [vmem:[#allocation3] sm:$0xf]
    %v1331 = vld [vmem:[#allocation3 + $0x4] sm:$0xf]
    %v1332 = vld [vmem:[#allocation3 + $0x8] sm:$0xf]
    %v1333 = vld [vmem:[#allocation3 + $0xc] sm:$0xf]
    %v1334 = vld [vmem:[#allocation3 + $0x10] sm:$0xf]
    %v1335 = vld [vmem:[#allocation3 + $0x14] sm:$0xf]
    %v1336 = vld [vmem:[#allocation3 + $0x18] sm:$0xf]
    %v1337 = vld [vmem:[#allocation3 + $0x1c] sm:$0xf]
    %v1338 = vld [vmem:[#allocation3 + $0x20] sm:$0xf]
    %v1339 = vld [vmem:[#allocation3 + $0x24] sm:$0xf]
    %v1340 = vld [vmem:[#allocation3 + $0x28] sm:$0xf]
    %v1341 = vld [vmem:[#allocation3 + $0x2c] sm:$0xf]
    %v1342 = vld [vmem:[#allocation3 + $0x30] sm:$0xf]
    %v1343 = vld [vmem:[#allocation3 + $0x34] sm:$0xf]
    %v1344 = vld [vmem:[#allocation3 + $0x38] sm:$0xf]
    %v1345 = vld [vmem:[#allocation3 + $0x3c] sm:$0xf]
    %v1346 = vld [vmem:[#allocation3 + $0x40] sm:$0xf]
    %v1347 = vld [vmem:[#allocation3 + $0x44] sm:$0xf]
    %v1348 = vld [vmem:[#allocation3 + $0x48] sm:$0xf]
    %v1349 = vld [vmem:[#allocation3 + $0x4c] sm:$0xf]
    %v1350 = vld [vmem:[#allocation3 + $0x50] sm:$0xf]
    %v1351 = vld [vmem:[#allocation3 + $0x54] sm:$0xf]
    %v1352 = vld [vmem:[#allocation3 + $0x58] sm:$0xf]
    %v1353 = vld [vmem:[#allocation3 + $0x5c] sm:$0xf]
    %v1354 = vld [vmem:[#allocation3 + $0x60] sm:$0xf]
    %v1355 = vld [vmem:[#allocation3 + $0x64] sm:$0xf]
    %v1356 = vld [vmem:[#allocation3 + $0x68] sm:$0xf]
    %v1357 = vld [vmem:[#allocation3 + $0x6c] sm:$0xf]
    %v1358 = vld [vmem:[#allocation3 + $0x70] sm:$0xf]
    %v1359 = vld [vmem:[#allocation3 + $0x74] sm:$0xf]
    %v1360 = vld [vmem:[#allocation3 + $0x78] sm:$0xf]
    %v1361 = vld [vmem:[#allocation3 + $0x7c] sm:$0xf]
    %v1362 = vld [vmem:[#allocation3 + $0x80] sm:$0xf]
    %v1363 = vld [vmem:[#allocation3 + $0x84] sm:$0xf]
    %v1364 = vld [vmem:[#allocation3 + $0x88] sm:$0xf]
    %v1365 = vld [vmem:[#allocation3 + $0x8c] sm:$0xf]
    %v1366 = vld [vmem:[#allocation3 + $0x90] sm:$0xf]
    %v1367 = vld [vmem:[#allocation3 + $0x94] sm:$0xf]
    %v1368 = vld [vmem:[#allocation3 + $0x98] sm:$0xf]
    %v1369 = vld [vmem:[#allocation3 + $0x9c] sm:$0xf]
    %v1370 = vld [vmem:[#allocation3 + $0xa0] sm:$0xf]
    %v1371 = vld [vmem:[#allocation3 + $0xa4] sm:$0xf]
    %v1372 = vld [vmem:[#allocation3 + $0xa8] sm:$0xf]
    %v1373 = vld [vmem:[#allocation3 + $0xac] sm:$0xf]
    %v1374 = vld [vmem:[#allocation3 + $0xb0] sm:$0xf]
    %v1375 = vld [vmem:[#allocation3 + $0xb4] sm:$0xf]
    %v1376 = vld [vmem:[#allocation3 + $0xb8] sm:$0xf]
    %v1377 = vld [vmem:[#allocation3 + $0xbc] sm:$0xf]
    %v1378 = vld [vmem:[#allocation3 + $0xc0] sm:$0xf]
    %v1379 = vld [vmem:[#allocation3 + $0xc4] sm:$0xf]
    %v1380 = vld [vmem:[#allocation3 + $0xc8] sm:$0xf]
    %v1381 = vld [vmem:[#allocation3 + $0xcc] sm:$0xf]
    %v1382 = vld [vmem:[#allocation3 + $0xd0] sm:$0xf]
    %v1383 = vld [vmem:[#allocation3 + $0xd4] sm:$0xf]
    %v1384 = vld [vmem:[#allocation3 + $0xd8] sm:$0xf]
    %v1385 = vld [vmem:[#allocation3 + $0xdc] sm:$0xf]
    %v1386 = vld [vmem:[#allocation3 + $0xe0] sm:$0xf]
    %v1387 = vld [vmem:[#allocation3 + $0xe4] sm:$0xf]
    %v1388 = vld [vmem:[#allocation3 + $0xe8] sm:$0xf]
    %v1389 = vld [vmem:[#allocation3 + $0xec] sm:$0xf]
    %v1390 = vld [vmem:[#allocation3 + $0xf0] sm:$0xf]
    %v1391 = vld [vmem:[#allocation3 + $0xf4] sm:$0xf]
    %v1392 = vld [vmem:[#allocation3 + $0xf8] sm:$0xf]
    %v1393 = vld [vmem:[#allocation3 + $0xfc] sm:$0xf]
    %v1394 = vld [vmem:[#allocation3 + $0x100] sm:$0xf]
    %v1395 = vld [vmem:[#allocation3 + $0x104] sm:$0xf]
    %v1396 = vld [vmem:[#allocation3 + $0x108] sm:$0xf]
    %v1397 = vld [vmem:[#allocation3 + $0x10c] sm:$0xf]
    %v1398 = vld [vmem:[#allocation3 + $0x110] sm:$0xf]
    %v1399 = vld [vmem:[#allocation3 + $0x114] sm:$0xf]
    %v1400 = vld [vmem:[#allocation3 + $0x118] sm:$0xf]
    %v1401 = vld [vmem:[#allocation3 + $0x11c] sm:$0xf]
    %v1402 = vld [vmem:[#allocation3 + $0x120] sm:$0xf]
    %v1403 = vld [vmem:[#allocation3 + $0x124] sm:$0xf]
    %v1404 = vld [vmem:[#allocation3 + $0x128] sm:$0xf]
    %v1405 = vld [vmem:[#allocation3 + $0x12c] sm:$0xf]
    %v1406 = vld [vmem:[#allocation3 + $0x130] sm:$0xf]
    %v1407 = vld [vmem:[#allocation3 + $0x134] sm:$0xf]
    %v1408 = vld [vmem:[#allocation3 + $0x138] sm:$0xf]
    %v1409 = vld [vmem:[#allocation3 + $0x13c] sm:$0xf]
    %v1410 = vld [vmem:[#allocation3 + $0x140] sm:$0xf]
    %v1411 = vld [vmem:[#allocation3 + $0x144] sm:$0xf]
    %v1412 = vld [vmem:[#allocation3 + $0x148] sm:$0xf]
    %v1413 = vld [vmem:[#allocation3 + $0x14c] sm:$0xf]
    %v1414 = vld [vmem:[#allocation3 + $0x150] sm:$0xf]
    %v1415 = vld [vmem:[#allocation3 + $0x154] sm:$0xf]
    %v1416 = vld [vmem:[#allocation3 + $0x158] sm:$0xf]
    %v1417 = vld [vmem:[#allocation3 + $0x15c] sm:$0xf]
    %v1418 = vld [vmem:[#allocation3 + $0x160] sm:$0xf]
    %v1419 = vld [vmem:[#allocation3 + $0x164] sm:$0xf]
    %v1420 = vld [vmem:[#allocation3 + $0x168] sm:$0xf]
    %v1421 = vld [vmem:[#allocation3 + $0x16c] sm:$0xf]
    %v1422 = vld [vmem:[#allocation3 + $0x170] sm:$0xf]
    %v1423 = vld [vmem:[#allocation3 + $0x174] sm:$0xf]
    %v1424 = vld [vmem:[#allocation3 + $0x178] sm:$0xf]
    %v1425 = vld [vmem:[#allocation3 + $0x17c] sm:$0xf]
    %v1426 = vld [vmem:[#allocation3 + $0x180] sm:$0xf]
    %v1427 = vld [vmem:[#allocation3 + $0x184] sm:$0xf]
    %v1428 = vld [vmem:[#allocation3 + $0x188] sm:$0xf]
    %v1429 = vld [vmem:[#allocation3 + $0x18c] sm:$0xf]
    %v1430 = vld [vmem:[#allocation3 + $0x190] sm:$0xf]
    %v1431 = vld [vmem:[#allocation3 + $0x194] sm:$0xf]
    %v1432 = vld [vmem:[#allocation3 + $0x198] sm:$0xf]
    %v1433 = vld [vmem:[#allocation3 + $0x19c] sm:$0xf]
    %v1434 = vld [vmem:[#allocation3 + $0x1a0] sm:$0xf]
    %v1435 = vld [vmem:[#allocation3 + $0x1a4] sm:$0xf]
    %v1436 = vld [vmem:[#allocation3 + $0x1a8] sm:$0xf]
    %v1437 = vld [vmem:[#allocation3 + $0x1ac] sm:$0xf]
    %v1438 = vld [vmem:[#allocation3 + $0x1b0] sm:$0xf]
    %v1439 = vld [vmem:[#allocation3 + $0x1b4] sm:$0xf]
    %v1440 = vld [vmem:[#allocation3 + $0x1b8] sm:$0xf]
    %v1441 = vld [vmem:[#allocation3 + $0x1bc] sm:$0xf]
    %v1442 = vld [vmem:[#allocation3 + $0x1c0] sm:$0xf]
    %v1443 = vld [vmem:[#allocation3 + $0x1c4] sm:$0xf]
    %v1444 = vld [vmem:[#allocation3 + $0x1c8] sm:$0xf]
    %v1445 = vld [vmem:[#allocation3 + $0x1cc] sm:$0xf]
    %v1446 = vld [vmem:[#allocation3 + $0x1d0] sm:$0xf]
    %v1447 = vld [vmem:[#allocation3 + $0x1d4] sm:$0xf]
    %v1448 = vld [vmem:[#allocation3 + $0x1d8] sm:$0xf]
    %v1449 = vld [vmem:[#allocation3 + $0x1dc] sm:$0xf]
    %v1450 = vld [vmem:[#allocation3 + $0x1e0] sm:$0xf]
    %v1451 = vld [vmem:[#allocation3 + $0x1e4] sm:$0xf]
    %v1452 = vld [vmem:[#allocation3 + $0x1e8] sm:$0xf]
    %v1453 = vld [vmem:[#allocation3 + $0x1ec] sm:$0xf]
    %v1454 = vld [vmem:[#allocation3 + $0x1f0] sm:$0xf]
    %v1455 = vld [vmem:[#allocation3 + $0x1f4] sm:$0xf]
    %v1456 = vld [vmem:[#allocation3 + $0x1f8] sm:$0xf]
    %v1457 = vld [vmem:[#allocation3 + $0x1fc] sm:$0xf]
    %v1458 = vld [vmem:[#allocation3 + $0x200] sm:$0xf]
    %v1459 = vld [vmem:[#allocation3 + $0x204] sm:$0xf]
    %v1460 = vld [vmem:[#allocation3 + $0x208] sm:$0xf]
    %v1461 = vld [vmem:[#allocation3 + $0x20c] sm:$0xf]
    %v1462 = vld [vmem:[#allocation3 + $0x210] sm:$0xf]
    %v1463 = vld [vmem:[#allocation3 + $0x214] sm:$0xf]
    %v1464 = vld [vmem:[#allocation3 + $0x218] sm:$0xf]
    %v1465 = vld [vmem:[#allocation3 + $0x21c] sm:$0xf]
    %v1466 = vld [vmem:[#allocation3 + $0x220] sm:$0xf]
    %v1467 = vld [vmem:[#allocation3 + $0x224] sm:$0xf]
    %v1468 = vld [vmem:[#allocation3 + $0x228] sm:$0xf]
    %v1469 = vld [vmem:[#allocation3 + $0x22c] sm:$0xf]
    %v1470 = vld [vmem:[#allocation3 + $0x230] sm:$0xf]
    %v1471 = vld [vmem:[#allocation3 + $0x234] sm:$0xf]
    %v1472 = vld [vmem:[#allocation3 + $0x238] sm:$0xf]
    %v1473 = vld [vmem:[#allocation3 + $0x23c] sm:$0xf]
    %v1618 = vunpack.c.l.b16 %v1330
    %v1619 = vunpack.c.l.b16 %v1331
    %v1620 = vunpack.c.l.b16 %v1332
    %v1621 = vunpack.c.l.b16 %v1333
    %v1622 = vunpack.c.l.b16 %v1334
    %v1623 = vunpack.c.l.b16 %v1335
    %v1624 = vunpack.c.l.b16 %v1336
    %v1625 = vunpack.c.l.b16 %v1337
    %v1626 = vunpack.c.l.b16 %v1338
    %v1627 = vunpack.c.l.b16 %v1339
    %v1628 = vunpack.c.l.b16 %v1340
    %v1629 = vunpack.c.l.b16 %v1341
    %v1630 = vunpack.c.l.b16 %v1342
    %v1631 = vunpack.c.l.b16 %v1343
    %v1632 = vunpack.c.l.b16 %v1344
    %v1633 = vunpack.c.l.b16 %v1345
    %v1634 = vunpack.c.l.b16 %v1346
    %v1635 = vunpack.c.l.b16 %v1347
    %v1636 = vunpack.c.l.b16 %v1348
    %v1637 = vunpack.c.l.b16 %v1349
    %v1638 = vunpack.c.l.b16 %v1350
    %v1639 = vunpack.c.l.b16 %v1351
    %v1640 = vunpack.c.l.b16 %v1352
    %v1641 = vunpack.c.l.b16 %v1353
    %v1642 = vunpack.c.l.b16 %v1354
    %v1643 = vunpack.c.l.b16 %v1355
    %v1644 = vunpack.c.l.b16 %v1356
    %v1645 = vunpack.c.l.b16 %v1357
    %v1646 = vunpack.c.l.b16 %v1358
    %v1647 = vunpack.c.l.b16 %v1359
    %v1648 = vunpack.c.l.b16 %v1360
    %v1649 = vunpack.c.l.b16 %v1361
    %v1650 = vunpack.c.l.b16 %v1362
    %v1651 = vunpack.c.l.b16 %v1363
    %v1652 = vunpack.c.l.b16 %v1364
    %v1653 = vunpack.c.l.b16 %v1365
    %v1654 = vunpack.c.l.b16 %v1366
    %v1655 = vunpack.c.l.b16 %v1367
    %v1656 = vunpack.c.l.b16 %v1368
    %v1657 = vunpack.c.l.b16 %v1369
    %v1658 = vunpack.c.l.b16 %v1370
    %v1659 = vunpack.c.l.b16 %v1371
    %v1660 = vunpack.c.l.b16 %v1372
    %v1661 = vunpack.c.l.b16 %v1373
    %v1662 = vunpack.c.l.b16 %v1374
    %v1663 = vunpack.c.l.b16 %v1375
    %v1664 = vunpack.c.l.b16 %v1376
    %v1665 = vunpack.c.l.b16 %v1377
    %v1666 = vunpack.c.l.b16 %v1378
    %v1667 = vunpack.c.l.b16 %v1379
    %v1668 = vunpack.c.l.b16 %v1380
    %v1669 = vunpack.c.l.b16 %v1381
    %v1670 = vunpack.c.l.b16 %v1382
    %v1671 = vunpack.c.l.b16 %v1383
    %v1672 = vunpack.c.l.b16 %v1384
    %v1673 = vunpack.c.l.b16 %v1385
    %v1674 = vunpack.c.l.b16 %v1386
    %v1675 = vunpack.c.l.b16 %v1387
    %v1676 = vunpack.c.l.b16 %v1388
    %v1677 = vunpack.c.l.b16 %v1389
    %v1678 = vunpack.c.l.b16 %v1390
    %v1679 = vunpack.c.l.b16 %v1391
    %v1680 = vunpack.c.l.b16 %v1392
    %v1681 = vunpack.c.l.b16 %v1393
    %v1682 = vunpack.c.l.b16 %v1394
    %v1683 = vunpack.c.l.b16 %v1395
    %v1684 = vunpack.c.l.b16 %v1396
    %v1685 = vunpack.c.l.b16 %v1397
    %v1686 = vunpack.c.l.b16 %v1398
    %v1687 = vunpack.c.l.b16 %v1399
    %v1688 = vunpack.c.l.b16 %v1400
    %v1689 = vunpack.c.l.b16 %v1401
    %v1690 = vunpack.c.l.b16 %v1402
    %v1691 = vunpack.c.l.b16 %v1403
    %v1692 = vunpack.c.l.b16 %v1404
    %v1693 = vunpack.c.l.b16 %v1405
    %v1694 = vunpack.c.l.b16 %v1406
    %v1695 = vunpack.c.l.b16 %v1407
    %v1696 = vunpack.c.l.b16 %v1408
    %v1697 = vunpack.c.l.b16 %v1409
    %v1698 = vunpack.c.l.b16 %v1410
    %v1699 = vunpack.c.l.b16 %v1411
    %v1700 = vunpack.c.l.b16 %v1412
    %v1701 = vunpack.c.l.b16 %v1413
    %v1702 = vunpack.c.l.b16 %v1414
    %v1703 = vunpack.c.l.b16 %v1415
    %v1704 = vunpack.c.l.b16 %v1416
    %v1705 = vunpack.c.l.b16 %v1417
    %v1706 = vunpack.c.l.b16 %v1418
    %v1707 = vunpack.c.l.b16 %v1419
    %v1708 = vunpack.c.l.b16 %v1420
    %v1709 = vunpack.c.l.b16 %v1421
    %v1710 = vunpack.c.l.b16 %v1422
    %v1711 = vunpack.c.l.b16 %v1423
    %v1712 = vunpack.c.l.b16 %v1424
    %v1713 = vunpack.c.l.b16 %v1425
    %v1714 = vunpack.c.l.b16 %v1426
    %v1715 = vunpack.c.l.b16 %v1427
    %v1716 = vunpack.c.l.b16 %v1428
    %v1717 = vunpack.c.l.b16 %v1429
    %v1718 = vunpack.c.l.b16 %v1430
    %v1719 = vunpack.c.l.b16 %v1431
    %v1720 = vunpack.c.l.b16 %v1432
    %v1721 = vunpack.c.l.b16 %v1433
    %v1722 = vunpack.c.l.b16 %v1434
    %v1723 = vunpack.c.l.b16 %v1435
    %v1724 = vunpack.c.l.b16 %v1436
    %v1725 = vunpack.c.l.b16 %v1437
    %v1726 = vunpack.c.l.b16 %v1438
    %v1727 = vunpack.c.l.b16 %v1439
    %v1728 = vunpack.c.l.b16 %v1440
    %v1729 = vunpack.c.l.b16 %v1441
    %v1730 = vunpack.c.l.b16 %v1442
    %v1731 = vunpack.c.l.b16 %v1443
    %v1732 = vunpack.c.l.b16 %v1444
    %v1733 = vunpack.c.l.b16 %v1445
    %v1734 = vunpack.c.l.b16 %v1446
    %v1735 = vunpack.c.l.b16 %v1447
    %v1736 = vunpack.c.l.b16 %v1448
    %v1737 = vunpack.c.l.b16 %v1449
    %v1738 = vunpack.c.l.b16 %v1450
    %v1739 = vunpack.c.l.b16 %v1451
    %v1740 = vunpack.c.l.b16 %v1452
    %v1741 = vunpack.c.l.b16 %v1453
    %v1742 = vunpack.c.l.b16 %v1454
    %v1743 = vunpack.c.l.b16 %v1455
    %v1744 = vunpack.c.l.b16 %v1456
    %v1745 = vunpack.c.l.b16 %v1457
    %v1746 = vunpack.c.l.b16 %v1458
    %v1747 = vunpack.c.l.b16 %v1459
    %v1748 = vunpack.c.l.b16 %v1460
    %v1749 = vunpack.c.l.b16 %v1461
    %v1750 = vunpack.c.l.b16 %v1462
    %v1751 = vunpack.c.l.b16 %v1463
    %v1752 = vunpack.c.l.b16 %v1464
    %v1753 = vunpack.c.l.b16 %v1465
    %v1754 = vunpack.c.l.b16 %v1466
    %v1755 = vunpack.c.l.b16 %v1467
    %v1756 = vunpack.c.l.b16 %v1468
    %v1757 = vunpack.c.l.b16 %v1469
    %v1758 = vunpack.c.l.b16 %v1470
    %v1759 = vunpack.c.l.b16 %v1471
    %v1760 = vunpack.c.l.b16 %v1472
    %v1761 = vunpack.c.l.b16 %v1473
    %v1762 = vpack.c.b16 %v1619, %v1618
    %v1763 = vpack.c.b16 %v1621, %v1620
    %v1764 = vpack.c.b16 %v1623, %v1622
    %v1765 = vpack.c.b16 %v1625, %v1624
    %v1766 = vpack.c.b16 %v1627, %v1626
    %v1767 = vpack.c.b16 %v1629, %v1628
    %v1768 = vpack.c.b16 %v1631, %v1630
    %v1769 = vpack.c.b16 %v1633, %v1632
    %v1770 = vpack.c.b16 %v1635, %v1634
    %v1771 = vpack.c.b16 %v1637, %v1636
    %v1772 = vpack.c.b16 %v1639, %v1638
    %v1773 = vpack.c.b16 %v1641, %v1640
    %v1774 = vpack.c.b16 %v1643, %v1642
    %v1775 = vpack.c.b16 %v1645, %v1644
    %v1776 = vpack.c.b16 %v1647, %v1646
    %v1777 = vpack.c.b16 %v1649, %v1648
    %v1778 = vpack.c.b16 %v1651, %v1650
    %v1779 = vpack.c.b16 %v1653, %v1652
    %v1780 = vpack.c.b16 %v1655, %v1654
    %v1781 = vpack.c.b16 %v1657, %v1656
    %v1782 = vpack.c.b16 %v1659, %v1658
    %v1783 = vpack.c.b16 %v1661, %v1660
    %v1784 = vpack.c.b16 %v1663, %v1662
    %v1785 = vpack.c.b16 %v1665, %v1664
    %v1786 = vpack.c.b16 %v1667, %v1666
    %v1787 = vpack.c.b16 %v1669, %v1668
    %v1788 = vpack.c.b16 %v1671, %v1670
    %v1789 = vpack.c.b16 %v1673, %v1672
    %v1790 = vpack.c.b16 %v1675, %v1674
    %v1791 = vpack.c.b16 %v1677, %v1676
    %v1792 = vpack.c.b16 %v1679, %v1678
    %v1793 = vpack.c.b16 %v1681, %v1680
    %v1794 = vpack.c.b16 %v1683, %v1682
    %v1795 = vpack.c.b16 %v1685, %v1684
    %v1796 = vpack.c.b16 %v1687, %v1686
    %v1797 = vpack.c.b16 %v1689, %v1688
    %v1798 = vpack.c.b16 %v1691, %v1690
    %v1799 = vpack.c.b16 %v1693, %v1692
    %v1800 = vpack.c.b16 %v1695, %v1694
    %v1801 = vpack.c.b16 %v1697, %v1696
    %v1802 = vpack.c.b16 %v1699, %v1698
    %v1803 = vpack.c.b16 %v1701, %v1700
    %v1804 = vpack.c.b16 %v1703, %v1702
    %v1805 = vpack.c.b16 %v1705, %v1704
    %v1806 = vpack.c.b16 %v1707, %v1706
    %v1807 = vpack.c.b16 %v1709, %v1708
    %v1808 = vpack.c.b16 %v1711, %v1710
    %v1809 = vpack.c.b16 %v1713, %v1712
    %v1810 = vpack.c.b16 %v1715, %v1714
    %v1811 = vpack.c.b16 %v1717, %v1716
    %v1812 = vpack.c.b16 %v1719, %v1718
    %v1813 = vpack.c.b16 %v1721, %v1720
    %v1814 = vpack.c.b16 %v1723, %v1722
    %v1815 = vpack.c.b16 %v1725, %v1724
    %v1816 = vpack.c.b16 %v1727, %v1726
    %v1817 = vpack.c.b16 %v1729, %v1728
    %v1818 = vpack.c.b16 %v1731, %v1730
    %v1819 = vpack.c.b16 %v1733, %v1732
    %v1820 = vpack.c.b16 %v1735, %v1734
    %v1821 = vpack.c.b16 %v1737, %v1736
    %v1822 = vpack.c.b16 %v1739, %v1738
    %v1823 = vpack.c.b16 %v1741, %v1740
    %v1824 = vpack.c.b16 %v1743, %v1742
    %v1825 = vpack.c.b16 %v1745, %v1744
    %v1826 = vpack.c.b16 %v1747, %v1746
    %v1827 = vpack.c.b16 %v1749, %v1748
    %v1828 = vpack.c.b16 %v1751, %v1750
    %v1829 = vpack.c.b16 %v1753, %v1752
    %v1830 = vpack.c.b16 %v1755, %v1754
    %v1831 = vpack.c.b16 %v1757, %v1756
    %v1832 = vpack.c.b16 %v1759, %v1758
    %v1833 = vpack.c.b16 %v1761, %v1760
    %1906 = vmatprep.subr.bf16.mxu0 0
    %1907 = vmatpush1.bf16.msra.mxu0 %v1762
    %1908 = vmatprep.subr.bf16.mxu0 0
    %1909 = vmatpush1.bf16.msra.mxu0 %v1763
    %1910 = vmatprep.subr.bf16.mxu0 0
    %1911 = vmatpush1.bf16.msra.mxu0 %v1764
    %1912 = vmatprep.subr.bf16.mxu0 0
    %1913 = vmatpush1.bf16.msra.mxu0 %v1765
    %1914 = vmatprep.subr.bf16.mxu0 0
    %1915 = vmatpush1.bf16.msra.mxu0 %v1766
    %1916 = vmatprep.subr.bf16.mxu0 0
    %1917 = vmatpush1.bf16.msra.mxu0 %v1767
    %1918 = vmatprep.subr.bf16.mxu0 0
    %1919 = vmatpush1.bf16.msra.mxu0 %v1768
    %1920 = vmatprep.subr.bf16.mxu0 0
    %1921 = vmatpush1.bf16.msra.mxu0 %v1769
    %1922 = vmatprep.subr.bf16.mxu0 0
    %1923 = vmatpush1.bf16.msra.mxu0 %v1770
    %1924 = vmatprep.subr.bf16.mxu0 0
    %1925 = vmatpush1.bf16.msra.mxu0 %v1771
    %1926 = vmatprep.subr.bf16.mxu0 0
    %1927 = vmatpush1.bf16.msra.mxu0 %v1772
    %1928 = vmatprep.subr.bf16.mxu0 0
    %1929 = vmatpush1.bf16.msra.mxu0 %v1773
    %1930 = vmatprep.subr.bf16.mxu0 0
    %1931 = vmatpush1.bf16.msra.mxu0 %v1774
    %1932 = vmatprep.subr.bf16.mxu0 0
    %1933 = vmatpush1.bf16.msra.mxu0 %v1775
    %1934 = vmatprep.subr.bf16.mxu0 0
    %1935 = vmatpush1.bf16.msra.mxu0 %v1776
    %1936 = vmatprep.subr.bf16.mxu0 0
    %1937 = vmatpush1.bf16.msra.mxu0 %v1777
    %1938 = vmatprep.mubr.bf16.mxu0 %v1259
    %1939 = vmatmul.mubr.bf16.gmra.mrb[0].mxu0 %v1258
    %v1940 = vpop.f32.mrb[0].mxu0
    %v1941 = vadd.f32 0.0, %v1940
    %v1942 = vpop.f32.mrb[0].mxu0
    %v1943 = vpop.f32.mrb[0].mxu0
    %v1944 = vadd.f32 0.0, %v1943
    %v1945 = vpop.f32.mrb[0].mxu0
    %1946 = vmatprep.mubr.bf16.mxu0 %v1268
    %1947 = vmatmul.mubr.bf16.gmra.mrb[0].mxu0 %v1267
    %v1948 = vpop.f32.mrb[0].mxu0
    %v1949 = vadd.f32 0.0, %v1948
    %v1950 = vpop.f32.mrb[0].mxu0
    %v1951 = vpop.f32.mrb[0].mxu0
    %v1952 = vadd.f32 0.0, %v1951
    %v1953 = vpop.f32.mrb[0].mxu0
    %1954 = vmatprep.mubr.bf16.mxu0 %v1277
    %1955 = vmatmul.mubr.bf16.gmra.mrb[0].mxu0 %v1276
    %v1956 = vpop.f32.mrb[0].mxu0
    %v1957 = vadd.f32 0.0, %v1956
    %v1958 = vpop.f32.mrb[0].mxu0
    %v1959 = vpop.f32.mrb[0].mxu0
    %v1960 = vadd.f32 0.0, %v1959
    %v1961 = vpop.f32.mrb[0].mxu0
    %1962 = vmatprep.mubr.bf16.mxu0 %v1286
    %1963 = vmatmul.mubr.bf16.gmra.mrb[0].mxu0 %v1285
    %v1964 = vpop.f32.mrb[0].mxu0
    %v1965 = vadd.f32 0.0, %v1964
    %v1966 = vpop.f32.mrb[0].mxu0
    %v1967 = vpop.f32.mrb[0].mxu0
    %v1968 = vadd.f32 0.0, %v1967
    %v1969 = vpop.f32.mrb[0].mxu0
    %1970 = vmatprep.mubr.bf16.mxu0 %v1295
    %1971 = vmatmul.mubr.bf16.gmra.mrb[0].mxu0 %v1294
    %v1972 = vpop.f32.mrb[0].mxu0
    %v1973 = vadd.f32 0.0, %v1972
    %v1974 = vpop.f32.mrb[0].mxu0
    %v1975 = vpop.f32.mrb[0].mxu0
    %v1976 = vadd.f32 0.0, %v1975
    %v1977 = vpop.f32.mrb[0].mxu0
    %1978 = vmatprep.mubr.bf16.mxu0 %v1304
    %1979 = vmatmul.mubr.bf16.gmra.mrb[0].mxu0 %v1303
    %v1980 = vpop.f32.mrb[0].mxu0
    %v1981 = vadd.f32 0.0, %v1980
    %v1982 = vpop.f32.mrb[0].mxu0
    %v1983 = vpop.f32.mrb[0].mxu0
    %v1984 = vadd.f32 0.0, %v1983
    %v1985 = vpop.f32.mrb[0].mxu0
    %1986 = vmatprep.mubr.bf16.mxu0 %v1313
    %1987 = vmatmul.mubr.bf16.gmra.mrb[0].mxu0 %v1312
    %v1988 = vpop.f32.mrb[0].mxu0
    %v1989 = vadd.f32 0.0, %v1988
    %v1990 = vpop.f32.mrb[0].mxu0
    %v1991 = vpop.f32.mrb[0].mxu0
    %v1992 = vadd.f32 0.0, %v1991
    %v1993 = vpop.f32.mrb[0].mxu0
    %1994 = vmatprep.mubr.bf16.mxu0 %v1322
    %1995 = vmatmul.mubr.bf16.gmra.mrb[0].mxu0 %v1321
    %v1996 = vpop.f32.mrb[0].mxu0
    %v1997 = vadd.f32 0.0, %v1996
    %v1998 = vpop.f32.mrb[0].mxu0
    %v1999 = vpop.f32.mrb[0].mxu0
    %v2000 = vadd.f32 0.0, %v1999
    %v2001 = vpop.f32.mrb[0].mxu0
    %2002 = vdwg.mxu0
    %2003 = vmatprep.subr.bf16.mxu0 0
    %2004 = vmatpush1.bf16.msra.mxu0 %v1778
    %2005 = vmatprep.subr.bf16.mxu0 0
    %2006 = vmatpush1.bf16.msra.mxu0 %v1779
    %2007 = vmatprep.subr.bf16.mxu0 0
    %2008 = vmatpush1.bf16.msra.mxu0 %v1780
    %2009 = vmatprep.subr.bf16.mxu0 0
    %2010 = vmatpush1.bf16.msra.mxu0 %v1781
    %2011 = vmatprep.subr.bf16.mxu0 0
    %2012 = vmatpush1.bf16.msra.mxu0 %v1782
    %2013 = vmatprep.subr.bf16.mxu0 0
    %2014 = vmatpush1.bf16.msra.mxu0 %v1783
    %2015 = vmatprep.subr.bf16.mxu0 0
    %2016 = vmatpush1.bf16.msra.mxu0 %v1784
    %2017 = vmatprep.subr.bf16.mxu0 0
    %2018 = vmatpush1.bf16.msra.mxu0 %v1785
    %2019 = vmatprep.subr.bf16.mxu0 0
    %2020 = vmatpush1.bf16.msra.mxu0 %v1786
    %2021 = vmatprep.subr.bf16.mxu0 0
    %2022 = vmatpush1.bf16.msra.mxu0 %v1787
    %2023 = vmatprep.subr.bf16.mxu0 0
    %2024 = vmatpush1.bf16.msra.mxu0 %v1788
    %2025 = vmatprep.subr.bf16.mxu0 0
    %2026 = vmatpush1.bf16.msra.mxu0 %v1789
    %2027 = vmatprep.subr.bf16.mxu0 0
    %2028 = vmatpush1.bf16.msra.mxu0 %v1790
    %2029 = vmatprep.subr.bf16.mxu0 0
    %2030 = vmatpush1.bf16.msra.mxu0 %v1791
    %2031 = vmatprep.subr.bf16.mxu0 0
    %2032 = vmatpush1.bf16.msra.mxu0 %v1792
    %2033 = vmatprep.subr.bf16.mxu0 0
    %2034 = vmatpush1.bf16.msra.mxu0 %v1793
    %2035 = vmatprep.mubr.bf16.mxu0 %v1261
    %2036 = vmatmul.mubr.bf16.gmra.mrb[0].mxu0 %v1260
    %v2037 = vpop.f32.mrb[0].mxu0
    %v2038 = vadd.f32 %v1941, %v2037
    %v2039 = vpop.f32.mrb[0].mxu0
    %v2040 = vpop.f32.mrb[0].mxu0
    %v2041 = vadd.f32 %v1944, %v2040
    %v2042 = vpop.f32.mrb[0].mxu0
    %2043 = vmatprep.mubr.bf16.mxu0 %v1270
    %2044 = vmatmul.mubr.bf16.gmra.mrb[0].mxu0 %v1269
    %v2045 = vpop.f32.mrb[0].mxu0
    %v2046 = vadd.f32 %v1949, %v2045
    %v2047 = vpop.f32.mrb[0].mxu0
    %v2048 = vpop.f32.mrb[0].mxu0
    %v2049 = vadd.f32 %v1952, %v2048
    %v2050 = vpop.f32.mrb[0].mxu0
    %2051 = vmatprep.mubr.bf16.mxu0 %v1279
    %2052 = vmatmul.mubr.bf16.gmra.mrb[0].mxu0 %v1278
    %v2053 = vpop.f32.mrb[0].mxu0
    %v2054 = vadd.f32 %v1957, %v2053
    %v2055 = vpop.f32.mrb[0].mxu0
    %v2056 = vpop.f32.mrb[0].mxu0
    %v2057 = vadd.f32 %v1960, %v2056
    %v2058 = vpop.f32.mrb[0].mxu0
    %2059 = vmatprep.mubr.bf16.mxu0 %v1288
    %2060 = vmatmul.mubr.bf16.gmra.mrb[0].mxu0 %v1287
    %v2061 = vpop.f32.mrb[0].mxu0
    %v2062 = vadd.f32 %v1965, %v2061
    %v2063 = vpop.f32.mrb[0].mxu0
    %v2064 = vpop.f32.mrb[0].mxu0
    %v2065 = vadd.f32 %v1968, %v2064
    %v2066 = vpop.f32.mrb[0].mxu0
    %2067 = vmatprep.mubr.bf16.mxu0 %v1297
    %2068 = vmatmul.mubr.bf16.gmra.mrb[0].mxu0 %v1296
    %v2069 = vpop.f32.mrb[0].mxu0
    %v2070 = vadd.f32 %v1973, %v2069
    %v2071 = vpop.f32.mrb[0].mxu0
    %v2072 = vpop.f32.mrb[0].mxu0
    %v2073 = vadd.f32 %v1976, %v2072
    %v2074 = vpop.f32.mrb[0].mxu0
    %2075 = vmatprep.mubr.bf16.mxu0 %v1306
    %2076 = vmatmul.mubr.bf16.gmra.mrb[0].mxu0 %v1305
    %v2077 = vpop.f32.mrb[0].mxu0
    %v2078 = vadd.f32 %v1981, %v2077
    %v2079 = vpop.f32.mrb[0].mxu0
    %v2080 = vpop.f32.mrb[0].mxu0
    %v2081 = vadd.f32 %v1984, %v2080
    %v2082 = vpop.f32.mrb[0].mxu0
    %2083 = vmatprep.mubr.bf16.mxu0 %v1315
    %2084 = vmatmul.mubr.bf16.gmra.mrb[0].mxu0 %v1314
    %v2085 = vpop.f32.mrb[0].mxu0
    %v2086 = vadd.f32 %v1989, %v2085
    %v2087 = vpop.f32.mrb[0].mxu0
    %v2088 = vpop.f32.mrb[0].mxu0
    %v2089 = vadd.f32 %v1992, %v2088
    %v2090 = vpop.f32.mrb[0].mxu0
    %2091 = vmatprep.mubr.bf16.mxu0 %v1324
    %2092 = vmatmul.mubr.bf16.gmra.mrb[0].mxu0 %v1323
    %v2093 = vpop.f32.mrb[0].mxu0
    %v2094 = vadd.f32 %v1997, %v2093
    %v2095 = vpop.f32.mrb[0].mxu0
    %v2096 = vpop.f32.mrb[0].mxu0
    %v2097 = vadd.f32 %v2000, %v2096
    %v2098 = vpop.f32.mrb[0].mxu0
    %2099 = vdwg.mxu0
    %2100 = vmatprep.subr.bf16.mxu0 0
    %2101 = vmatpush1.bf16.msra.mxu0 %v1794
    %2102 = vmatprep.subr.bf16.mxu0 0
    %2103 = vmatpush1.bf16.msra.mxu0 %v1795
    %2104 = vmatprep.subr.bf16.mxu0 0
    %2105 = vmatpush1.bf16.msra.mxu0 %v1796
    %2106 = vmatprep.subr.bf16.mxu0 0
    %2107 = vmatpush1.bf16.msra.mxu0 %v1797
    %2108 = vmatprep.subr.bf16.mxu0 0
    %2109 = vmatpush1.bf16.msra.mxu0 %v1798
    %2110 = vmatprep.subr.bf16.mxu0 0
    %2111 = vmatpush1.bf16.msra.mxu0 %v1799
    %2112 = vmatprep.subr.bf16.mxu0 0
    %2113 = vmatpush1.bf16.msra.mxu0 %v1800
    %2114 = vmatprep.subr.bf16.mxu0 0
    %2115 = vmatpush1.bf16.msra.mxu0 %v1801
    %2116 = vmatprep.subr.bf16.mxu0 0
    %2117 = vmatpush1.bf16.msra.mxu0 %v1802
    %2118 = vmatprep.subr.bf16.mxu0 0
    %2119 = vmatpush1.bf16.msra.mxu0 %v1803
    %2120 = vmatprep.subr.bf16.mxu0 0
    %2121 = vmatpush1.bf16.msra.mxu0 %v1804
    %2122 = vmatprep.subr.bf16.mxu0 0
    %2123 = vmatpush1.bf16.msra.mxu0 %v1805
    %2124 = vmatprep.subr.bf16.mxu0 0
    %2125 = vmatpush1.bf16.msra.mxu0 %v1806
    %2126 = vmatprep.subr.bf16.mxu0 0
    %2127 = vmatpush1.bf16.msra.mxu0 %v1807
    %2128 = vmatprep.subr.bf16.mxu0 0
    %2129 = vmatpush1.bf16.msra.mxu0 %v1808
    %2130 = vmatprep.subr.bf16.mxu0 0
    %2131 = vmatpush1.bf16.msra.mxu0 %v1809
    %2132 = vmatprep.mubr.bf16.mxu0 %v1263
    %2133 = vmatmul.mubr.bf16.gmra.mrb[0].mxu0 %v1262
    %v2134 = vpop.f32.mrb[0].mxu0
    %v2135 = vadd.f32 %v2038, %v2134
    %v2136 = vpop.f32.mrb[0].mxu0
    %v2137 = vpop.f32.mrb[0].mxu0
    %v2138 = vadd.f32 %v2041, %v2137
    %v2139 = vpop.f32.mrb[0].mxu0
    %2140 = vmatprep.mubr.bf16.mxu0 %v1272
    %2141 = vmatmul.mubr.bf16.gmra.mrb[0].mxu0 %v1271
    %v2142 = vpop.f32.mrb[0].mxu0
    %v2143 = vadd.f32 %v2046, %v2142
    %v2144 = vpop.f32.mrb[0].mxu0
    %v2145 = vpop.f32.mrb[0].mxu0
    %v2146 = vadd.f32 %v2049, %v2145
    %v2147 = vpop.f32.mrb[0].mxu0
    %2148 = vmatprep.mubr.bf16.mxu0 %v1281
    %2149 = vmatmul.mubr.bf16.gmra.mrb[0].mxu0 %v1280
    %v2150 = vpop.f32.mrb[0].mxu0
    %v2151 = vadd.f32 %v2054, %v2150
    %v2152 = vpop.f32.mrb[0].mxu0
    %v2153 = vpop.f32.mrb[0].mxu0
    %v2154 = vadd.f32 %v2057, %v2153
    %v2155 = vpop.f32.mrb[0].mxu0
    %2156 = vmatprep.mubr.bf16.mxu0 %v1290
    %2157 = vmatmul.mubr.bf16.gmra.mrb[0].mxu0 %v1289
    %v2158 = vpop.f32.mrb[0].mxu0
    %v2159 = vadd.f32 %v2062, %v2158
    %v2160 = vpop.f32.mrb[0].mxu0
    %v2161 = vpop.f32.mrb[0].mxu0
    %v2162 = vadd.f32 %v2065, %v2161
    %v2163 = vpop.f32.mrb[0].mxu0
    %2164 = vmatprep.mubr.bf16.mxu0 %v1299
    %2165 = vmatmul.mubr.bf16.gmra.mrb[0].mxu0 %v1298
    %v2166 = vpop.f32.mrb[0].mxu0
    %v2167 = vadd.f32 %v2070, %v2166
    %v2168 = vpop.f32.mrb[0].mxu0
    %v2169 = vpop.f32.mrb[0].mxu0
    %v2170 = vadd.f32 %v2073, %v2169
    %v2171 = vpop.f32.mrb[0].mxu0
    %2172 = vmatprep.mubr.bf16.mxu0 %v1308
    %2173 = vmatmul.mubr.bf16.gmra.mrb[0].mxu0 %v1307
    %v2174 = vpop.f32.mrb[0].mxu0
    %v2175 = vadd.f32 %v2078, %v2174
    %v2176 = vpop.f32.mrb[0].mxu0
    %v2177 = vpop.f32.mrb[0].mxu0
    %v2178 = vadd.f32 %v2081, %v2177
    %v2179 = vpop.f32.mrb[0].mxu0
    %2180 = vmatprep.mubr.bf16.mxu0 %v1317
    %2181 = vmatmul.mubr.bf16.gmra.mrb[0].mxu0 %v1316
    %v2182 = vpop.f32.mrb[0].mxu0
    %v2183 = vadd.f32 %v2086, %v2182
    %v2184 = vpop.f32.mrb[0].mxu0
    %v2185 = vpop.f32.mrb[0].mxu0
    %v2186 = vadd.f32 %v2089, %v2185
    %v2187 = vpop.f32.mrb[0].mxu0
    %2188 = vmatprep.mubr.bf16.mxu0 %v1326
    %2189 = vmatmul.mubr.bf16.gmra.mrb[0].mxu0 %v1325
    %v2190 = vpop.f32.mrb[0].mxu0
    %v2191 = vadd.f32 %v2094, %v2190
    %v2192 = vpop.f32.mrb[0].mxu0
    %v2193 = vpop.f32.mrb[0].mxu0
    %v2194 = vadd.f32 %v2097, %v2193
    %v2195 = vpop.f32.mrb[0].mxu0
    %2196 = vdwg.mxu0
    %2197 = vmatprep.subr.bf16.mxu0 0
    %2198 = vmatpush1.bf16.msra.mxu0 %v1810
    %2199 = vmatprep.subr.bf16.mxu0 0
    %2200 = vmatpush1.bf16.msra.mxu0 %v1811
    %2201 = vmatprep.subr.bf16.mxu0 0
    %2202 = vmatpush1.bf16.msra.mxu0 %v1812
    %2203 = vmatprep.subr.bf16.mxu0 0
    %2204 = vmatpush1.bf16.msra.mxu0 %v1813
    %2205 = vmatprep.subr.bf16.mxu0 0
    %2206 = vmatpush1.bf16.msra.mxu0 %v1814
    %2207 = vmatprep.subr.bf16.mxu0 0
    %2208 = vmatpush1.bf16.msra.mxu0 %v1815
    %2209 = vmatprep.subr.bf16.mxu0 0
    %2210 = vmatpush1.bf16.msra.mxu0 %v1816
    %2211 = vmatprep.subr.bf16.mxu0 0
    %2212 = vmatpush1.bf16.msra.mxu0 %v1817
    %2213 = vmatprep.subr.bf16.mxu0 0
    %2214 = vmatpush1.bf16.msra.mxu0 %v1818
    %2215 = vmatprep.subr.bf16.mxu0 0
    %2216 = vmatpush1.bf16.msra.mxu0 %v1819
    %2217 = vmatprep.subr.bf16.mxu0 0
    %2218 = vmatpush1.bf16.msra.mxu0 %v1820
    %2219 = vmatprep.subr.bf16.mxu0 0
    %2220 = vmatpush1.bf16.msra.mxu0 %v1821
    %2221 = vmatprep.subr.bf16.mxu0 0
    %2222 = vmatpush1.bf16.msra.mxu0 %v1822
    %2223 = vmatprep.subr.bf16.mxu0 0
    %2224 = vmatpush1.bf16.msra.mxu0 %v1823
    %2225 = vmatprep.subr.bf16.mxu0 0
    %2226 = vmatpush1.bf16.msra.mxu0 %v1824
    %2227 = vmatprep.subr.bf16.mxu0 0
    %2228 = vmatpush1.bf16.msra.mxu0 %v1825
    %2229 = vmatprep.mubr.bf16.mxu0 %v1265
    %2230 = vmatmul.mubr.bf16.gmra.mrb[0].mxu0 %v1264
    %v2231 = vpop.f32.mrb[0].mxu0
    %v2232 = vadd.f32 %v2135, %v2231
    %v2233 = vpop.f32.mrb[0].mxu0
    %v2234 = vpop.f32.mrb[0].mxu0
    %v2235 = vadd.f32 %v2138, %v2234
    %v2236 = vpop.f32.mrb[0].mxu0
    %2237 = vmatprep.mubr.bf16.mxu0 %v1274
    %2238 = vmatmul.mubr.bf16.gmra.mrb[0].mxu0 %v1273
    %v2239 = vpop.f32.mrb[0].mxu0
    %v2240 = vadd.f32 %v2143, %v2239
    %v2241 = vpop.f32.mrb[0].mxu0
    %v2242 = vpop.f32.mrb[0].mxu0
    %v2243 = vadd.f32 %v2146, %v2242
    %v2244 = vpop.f32.mrb[0].mxu0
    %2245 = vmatprep.mubr.bf16.mxu0 %v1283
    %2246 = vmatmul.mubr.bf16.gmra.mrb[0].mxu0 %v1282
    %v2247 = vpop.f32.mrb[0].mxu0
    %v2248 = vadd.f32 %v2151, %v2247
    %v2249 = vpop.f32.mrb[0].mxu0
    %v2250 = vpop.f32.mrb[0].mxu0
    %v2251 = vadd.f32 %v2154, %v2250
    %v2252 = vpop.f32.mrb[0].mxu0
    %2253 = vmatprep.mubr.bf16.mxu0 %v1292
    %2254 = vmatmul.mubr.bf16.gmra.mrb[0].mxu0 %v1291
    %v2255 = vpop.f32.mrb[0].mxu0
    %v2256 = vadd.f32 %v2159, %v2255
    %v2257 = vpop.f32.mrb[0].mxu0
    %v2258 = vpop.f32.mrb[0].mxu0
    %v2259 = vadd.f32 %v2162, %v2258
    %v2260 = vpop.f32.mrb[0].mxu0
    %2261 = vmatprep.mubr.bf16.mxu0 %v1301
    %2262 = vmatmul.mubr.bf16.gmra.mrb[0].mxu0 %v1300
    %v2263 = vpop.f32.mrb[0].mxu0
    %v2264 = vadd.f32 %v2167, %v2263
    %v2265 = vpop.f32.mrb[0].mxu0
    %v2266 = vpop.f32.mrb[0].mxu0
    %v2267 = vadd.f32 %v2170, %v2266
    %v2268 = vpop.f32.mrb[0].mxu0
    %2269 = vmatprep.mubr.bf16.mxu0 %v1310
    %2270 = vmatmul.mubr.bf16.gmra.mrb[0].mxu0 %v1309
    %v2271 = vpop.f32.mrb[0].mxu0
    %v2272 = vadd.f32 %v2175, %v2271
    %v2273 = vpop.f32.mrb[0].mxu0
    %v2274 = vpop.f32.mrb[0].mxu0
    %v2275 = vadd.f32 %v2178, %v2274
    %v2276 = vpop.f32.mrb[0].mxu0
    %2277 = vmatprep.mubr.bf16.mxu0 %v1319
    %2278 = vmatmul.mubr.bf16.gmra.mrb[0].mxu0 %v1318
    %v2279 = vpop.f32.mrb[0].mxu0
    %v2280 = vadd.f32 %v2183, %v2279
    %v2281 = vpop.f32.mrb[0].mxu0
    %v2282 = vpop.f32.mrb[0].mxu0
    %v2283 = vadd.f32 %v2186, %v2282
    %v2284 = vpop.f32.mrb[0].mxu0
    %2285 = vmatprep.mubr.bf16.mxu0 %v1328
    %2286 = vmatmul.mubr.bf16.gmra.mrb[0].mxu0 %v1327
    %v2287 = vpop.f32.mrb[0].mxu0
    %v2288 = vadd.f32 %v2191, %v2287
    %v2289 = vpop.f32.mrb[0].mxu0
    %v2290 = vpop.f32.mrb[0].mxu0
    %v2291 = vadd.f32 %v2194, %v2290
    %v2292 = vpop.f32.mrb[0].mxu0
    %2293 = vdwg.mxu0
    %2294 = vmatprep.subr.bf16.mxu0 0
    %2295 = vmatpush1.bf16.msra.mxu0 %v1826
    %2296 = vmatprep.subr.bf16.mxu0 0
    %2297 = vmatpush1.bf16.msra.mxu0 %v1827
    %2298 = vmatprep.subr.bf16.mxu0 0
    %2299 = vmatpush1.bf16.msra.mxu0 %v1828
    %2300 = vmatprep.subr.bf16.mxu0 0
    %2301 = vmatpush1.bf16.msra.mxu0 %v1829
    %2302 = vmatprep.subr.bf16.mxu0 0
    %2303 = vmatpush1.bf16.msra.mxu0 %v1830
    %2304 = vmatprep.subr.bf16.mxu0 0
    %2305 = vmatpush1.bf16.msra.mxu0 %v1831
    %2306 = vmatprep.subr.bf16.mxu0 0
    %2307 = vmatpush1.bf16.msra.mxu0 %v1832
    %2308 = vmatprep.subr.bf16.mxu0 0
    %2309 = vmatpush1.bf16.msra.mxu0 %v1833
    %2310 = vmatprep.subr.bf16.mxu0 0
    %2311 = vmatpush1.bf16.msra.mxu0 0
    %2312 = vmatprep.subr.bf16.mxu0 0
    %2313 = vmatpush1.bf16.msra.mxu0 0
    %2314 = vmatprep.subr.bf16.mxu0 0
    %2315 = vmatpush1.bf16.msra.mxu0 0
    %2316 = vmatprep.subr.bf16.mxu0 0
    %2317 = vmatpush1.bf16.msra.mxu0 0
    %2318 = vmatprep.subr.bf16.mxu0 0
    %2319 = vmatpush1.bf16.msra.mxu0 0
    %2320 = vmatprep.subr.bf16.mxu0 0
    %2321 = vmatpush1.bf16.msra.mxu0 0
    %2322 = vmatprep.subr.bf16.mxu0 0
    %2323 = vmatpush1.bf16.msra.mxu0 0
    %2324 = vmatprep.subr.bf16.mxu0 0
    %2325 = vmatpush1.bf16.msra.mxu0 0
    %2326 = vmatprep.mubr.bf16.mxu0 0
    %2327 = vmatmul.mubr.bf16.gmra.mrb[0].mxu0 %v1266
    %v2328 = vpop.f32.mrb[0].mxu0
    %v2329 = vadd.f32 %v2232, %v2328
    %v2330 = vpop.f32.mrb[0].mxu0
    %v2331 = vpop.f32.mrb[0].mxu0
    %v2332 = vadd.f32 %v2235, %v2331
    %v2333 = vpop.f32.mrb[0].mxu0
    %2334 = vmatprep.mubr.bf16.mxu0 0
    %2335 = vmatmul.mubr.bf16.gmra.mrb[0].mxu0 %v1275
    %v2336 = vpop.f32.mrb[0].mxu0
    %v2337 = vadd.f32 %v2240, %v2336
    %v2338 = vpop.f32.mrb[0].mxu0
    %v2339 = vpop.f32.mrb[0].mxu0
    %v2340 = vadd.f32 %v2243, %v2339
    %v2341 = vpop.f32.mrb[0].mxu0
    %2342 = vmatprep.mubr.bf16.mxu0 0
    %2343 = vmatmul.mubr.bf16.gmra.mrb[0].mxu0 %v1284
    %v2344 = vpop.f32.mrb[0].mxu0
    %v2345 = vadd.f32 %v2248, %v2344
    %v2346 = vpop.f32.mrb[0].mxu0
    %v2347 = vpop.f32.mrb[0].mxu0
    %v2348 = vadd.f32 %v2251, %v2347
    %v2349 = vpop.f32.mrb[0].mxu0
    %2350 = vmatprep.mubr.bf16.mxu0 0
    %2351 = vmatmul.mubr.bf16.gmra.mrb[0].mxu0 %v1293
    %v2352 = vpop.f32.mrb[0].mxu0
    %v2353 = vadd.f32 %v2256, %v2352
    %v2354 = vpop.f32.mrb[0].mxu0
    %v2355 = vpop.f32.mrb[0].mxu0
    %v2356 = vadd.f32 %v2259, %v2355
    %v2357 = vpop.f32.mrb[0].mxu0
    %2358 = vmatprep.mubr.bf16.mxu0 0
    %2359 = vmatmul.mubr.bf16.gmra.mrb[0].mxu0 %v1302
    %v2360 = vpop.f32.mrb[0].mxu0
    %v2361 = vadd.f32 %v2264, %v2360
    %v2362 = vpop.f32.mrb[0].mxu0
    %v2363 = vpop.f32.mrb[0].mxu0
    %v2364 = vadd.f32 %v2267, %v2363
    %v2365 = vpop.f32.mrb[0].mxu0
    %2366 = vmatprep.mubr.bf16.mxu0 0
    %2367 = vmatmul.mubr.bf16.gmra.mrb[0].mxu0 %v1311
    %v2368 = vpop.f32.mrb[0].mxu0
    %v2369 = vadd.f32 %v2272, %v2368
    %v2370 = vpop.f32.mrb[0].mxu0
    %v2371 = vpop.f32.mrb[0].mxu0
    %v2372 = vadd.f32 %v2275, %v2371
    %v2373 = vpop.f32.mrb[0].mxu0
    %2374 = vmatprep.mubr.bf16.mxu0 0
    %2375 = vmatmul.mubr.bf16.gmra.mrb[0].mxu0 %v1320
    %v2376 = vpop.f32.mrb[0].mxu0
    %v2377 = vadd.f32 %v2280, %v2376
    %v2378 = vpop.f32.mrb[0].mxu0
    %v2379 = vpop.f32.mrb[0].mxu0
    %v2380 = vadd.f32 %v2283, %v2379
    %v2381 = vpop.f32.mrb[0].mxu0
    %2382 = vmatprep.mubr.bf16.mxu0 0
    %2383 = vmatmul.mubr.bf16.gmra.mrb[0].mxu0 %v1329
    %v2384 = vpop.f32.mrb[0].mxu0
    %v2385 = vadd.f32 %v2288, %v2384
    %v2386 = vpop.f32.mrb[0].mxu0
    %v2387 = vpop.f32.mrb[0].mxu0
    %v2388 = vadd.f32 %v2291, %v2387
    %v2389 = vpop.f32.mrb[0].mxu0
    %2390 = vdwg.mxu0
    %v2391 = vpack.c.bf16 %v2332, %v2329
    %v2392 = vpack.c.bf16 %v2340, %v2337
    %v2393 = vpack.c.bf16 %v2348, %v2345
    %v2394 = vpack.c.bf16 %v2356, %v2353
    %v2395 = vpack.c.bf16 %v2364, %v2361
    %v2396 = vpack.c.bf16 %v2372, %v2369
    %v2397 = vpack.c.bf16 %v2380, %v2377
    %v2398 = vpack.c.bf16 %v2388, %v2385
    %v2407 = vunpack.c.l.b16 %v2391
    %v2408 = vunpack.c.h.b16 %v2391
    %v2409 = vunpack.c.l.b16 %v2392
    %v2410 = vunpack.c.h.b16 %v2392
    %v2411 = vunpack.c.l.b16 %v2393
    %v2412 = vunpack.c.h.b16 %v2393
    %v2413 = vunpack.c.l.b16 %v2394
    %v2414 = vunpack.c.h.b16 %v2394
    %v2415 = vunpack.c.l.b16 %v2395
    %v2416 = vunpack.c.h.b16 %v2395
    %v2417 = vunpack.c.l.b16 %v2396
    %v2418 = vunpack.c.h.b16 %v2396
    %v2419 = vunpack.c.l.b16 %v2397
    %v2420 = vunpack.c.h.b16 %v2397
    %v2421 = vunpack.c.l.b16 %v2398
    %v2422 = vunpack.c.h.b16 %v2398
    %v2423 = vpack.c.b16 %v2407, %v2407
    %v2424 = vpack.c.b16 %v2408, %v2408
    %v2425 = vpack.c.b16 %v2409, %v2409
    %v2426 = vpack.c.b16 %v2410, %v2410
    %v2427 = vpack.c.b16 %v2411, %v2411
    %v2428 = vpack.c.b16 %v2412, %v2412
    %v2429 = vpack.c.b16 %v2413, %v2413
    %v2430 = vpack.c.b16 %v2414, %v2414
    %v2431 = vpack.c.b16 %v2415, %v2415
    %v2432 = vpack.c.b16 %v2416, %v2416
    %v2433 = vpack.c.b16 %v2417, %v2417
    %v2434 = vpack.c.b16 %v2418, %v2418
    %v2435 = vpack.c.b16 %v2419, %v2419
    %v2436 = vpack.c.b16 %v2420, %v2420
    %v2437 = vpack.c.b16 %v2421, %v2421
    %v2438 = vpack.c.b16 %v2422, %v2422
    %2455 = vst [vmem:[%s2] sm:$0xf] %v2423
    %2456 = vst [vmem:[%s2 + $0x4] sm:$0xf] %v2424
    %2457 = vst [vmem:[%s2 + $0x8] sm:$0xf] %v2425
    %2458 = vst [vmem:[%s2 + $0xc] sm:$0xf] %v2426
    %2459 = vst [vmem:[%s2 + $0x10] sm:$0xf] %v2427
    %2460 = vst [vmem:[%s2 + $0x14] sm:$0xf] %v2428
    %2461 = vst [vmem:[%s2 + $0x18] sm:$0xf] %v2429
    %2462 = vst [vmem:[%s2 + $0x1c] sm:$0xf] %v2430
    %2463 = vst [vmem:[%s2 + $0x20] sm:$0xf] %v2431
    %2464 = vst [vmem:[%s2 + $0x24] sm:$0xf] %v2432
    %2465 = vst [vmem:[%s2 + $0x28] sm:$0xf] %v2433
    %2466 = vst [vmem:[%s2 + $0x2c] sm:$0xf] %v2434
    %2467 = vst [vmem:[%s2 + $0x30] sm:$0xf] %v2435
    %2468 = vst [vmem:[%s2 + $0x34] sm:$0xf] %v2436
    %2469 = vst [vmem:[%s2 + $0x38] sm:$0xf] %v2437
    %2470 = vst [vmem:[%s2 + $0x3c] sm:$0xf] %v2438
    // Predicated region
    $region14: #{_lambda_.6} parent=1 // pred_check
      _
    $region15: #{_lambda_.6} parent=1 // pred_check_branch
      %2472 = sbr.rel (0) target = $region17
    $region16: #{_lambda_.6} parent=1 // pred_region
      _
    $region17: #{_lambda_.6} parent=1 // pred_fallthru
      _
    // Predicated region
    $region18: #{_lambda_.6} parent=1 // pred_check
      _
    $region19: #{_lambda_.6} parent=1 // pred_check_branch
      %2474 = sbr.rel (0) target = $region21
    $region20: #{_lambda_.6} parent=1 // pred_region
      _
    $region21: #{_lambda_.6} parent=1 // pred_fallthru
      _
    %2475 = vsyncpa [#allocation4], 1

// kernel: _lambda_.8
$region0: #{_lambda_.8}
  #allocation0 [shape = 'u32[]', space=smem, size = 0x4, offset = 0x4, fixed_abs, tag = 'smem constant byte address 0x4 - core index']
  #allocation1 [shape = 'u32[144,128]{1,0:T(1,128)}', space=vmem, size = 0x12000, scoped, tag = 'internal scratch']
  #allocation2 [shape = 'bf16[128,1152]{1,0:T(16,128)(2,1)}', space=vmem, size = 0x48000, scoped, tag = 'scratch operand']
  %s0 = inlined_call_operand.vmem [shape: bf16[128,128], index: 0, kind: input, shape index: {}]
  %s1 = inlined_call_operand.vmem [shape: bf16[1152,128], index: 1, kind: input, shape index: {}]
  %s2 = inlined_call_operand.vmem [shape: bf16[128,128], index: 2, kind: output, shape index: {}]
  %s3 = sld [smem:[#allocation0]]
  $region18: #{_lambda_.8} parent=0
    _
  %s5 = ssub.s32 1, %s3
  %s6 = scalar_select 0, %s5, %s3
  // Predicated region
  $region2: #{_lambda_.8} parent=0 // pred_check
    _
  $region3: #{_lambda_.8} parent=0 // pred_check_branch
    %8 = sbr.rel (0) target = $region5
  $region4: #{_lambda_.8} parent=0 // pred_region
    _
  $region5: #{_lambda_.8} parent=0 // pred_fallthru
    _
  // Predicated region
  $region6: #{_lambda_.8} parent=0 // pred_check
    _
  $region7: #{_lambda_.8} parent=0 // pred_check_branch
    %10 = sbr.rel (0) target = $region9
  $region8: #{_lambda_.8} parent=0 // pred_region
    _
  $region9: #{_lambda_.8} parent=0 // pred_fallthru
    _
  %v12 = vld [vmem:[%s0] sm:$0xf]
  %v13 = vld [vmem:[%s0 + $0x4] sm:$0xf]
  %v14 = vld [vmem:[%s0 + $0x8] sm:$0xf]
  %v15 = vld [vmem:[%s0 + $0xc] sm:$0xf]
  %v16 = vld [vmem:[%s0 + $0x10] sm:$0xf]
  %v17 = vld [vmem:[%s0 + $0x14] sm:$0xf]
  %v18 = vld [vmem:[%s0 + $0x18] sm:$0xf]
  %v19 = vld [vmem:[%s0 + $0x1c] sm:$0xf]
  %v20 = vld [vmem:[%s0 + $0x20] sm:$0xf]
  %v21 = vld [vmem:[%s0 + $0x24] sm:$0xf]
  %v22 = vld [vmem:[%s0 + $0x28] sm:$0xf]
  %v23 = vld [vmem:[%s0 + $0x2c] sm:$0xf]
  %v24 = vld [vmem:[%s0 + $0x30] sm:$0xf]
  %v25 = vld [vmem:[%s0 + $0x34] sm:$0xf]
  %v26 = vld [vmem:[%s0 + $0x38] sm:$0xf]
  %v27 = vld [vmem:[%s0 + $0x3c] sm:$0xf]
  %v28 = vunpack.c.l.bf16 %v12
  %v29 = vunpack.c.l.bf16 %v13
  %v30 = vunpack.c.l.bf16 %v14
  %v31 = vunpack.c.l.bf16 %v15
  %v32 = vunpack.c.l.bf16 %v16
  %v33 = vunpack.c.l.bf16 %v17
  %v34 = vunpack.c.l.bf16 %v18
  %v35 = vunpack.c.l.bf16 %v19
  %v36 = vunpack.c.l.bf16 %v20
  %v37 = vunpack.c.l.bf16 %v21
  %v38 = vunpack.c.l.bf16 %v22
  %v39 = vunpack.c.l.bf16 %v23
  %v40 = vunpack.c.l.bf16 %v24
  %v41 = vunpack.c.l.bf16 %v25
  %v42 = vunpack.c.l.bf16 %v26
  %v43 = vunpack.c.l.bf16 %v27
  %v44 = vxor.u32 %v28, 2147483648
  %v45 = vxor.u32 %v29, 2147483648
  %v46 = vxor.u32 %v30, 2147483648
  %v47 = vxor.u32 %v31, 2147483648
  %v48 = vxor.u32 %v32, 2147483648
  %v49 = vxor.u32 %v33, 2147483648
  %v50 = vxor.u32 %v34, 2147483648
  %v51 = vxor.u32 %v35, 2147483648
  %v52 = vxor.u32 %v36, 2147483648
  %v53 = vxor.u32 %v37, 2147483648
  %v54 = vxor.u32 %v38, 2147483648
  %v55 = vxor.u32 %v39, 2147483648
  %v56 = vxor.u32 %v40, 2147483648
  %v57 = vxor.u32 %v41, 2147483648
  %v58 = vxor.u32 %v42, 2147483648
  %v59 = vxor.u32 %v43, 2147483648
  %v60 = vmul.f32 %v44, 1.442695
  %v61 = vpow.pop %v60
  %v62 = vmul.f32 %v45, 1.442695
  %v63 = vpow.pop %v62
  %v64 = vmul.f32 %v46, 1.442695
  %v65 = vpow.pop %v64
  %v66 = vmul.f32 %v47, 1.442695
  %v67 = vpow.pop %v66
  %v68 = vmul.f32 %v48, 1.442695
  %v69 = vpow.pop %v68
  %v70 = vmul.f32 %v49, 1.442695
  %v71 = vpow.pop %v70
  %v72 = vmul.f32 %v50, 1.442695
  %v73 = vpow.pop %v72
  %v74 = vmul.f32 %v51, 1.442695
  %v75 = vpow.pop %v74
  %v76 = vmul.f32 %v52, 1.442695
  %v77 = vpow.pop %v76
  %v78 = vmul.f32 %v53, 1.442695
  %v79 = vpow.pop %v78
  %v80 = vmul.f32 %v54, 1.442695
  %v81 = vpow.pop %v80
  %v82 = vmul.f32 %v55, 1.442695
  %v83 = vpow.pop %v82
  %v84 = vmul.f32 %v56, 1.442695
  %v85 = vpow.pop %v84
  %v86 = vmul.f32 %v57, 1.442695
  %v87 = vpow.pop %v86
  %v88 = vmul.f32 %v58, 1.442695
  %v89 = vpow.pop %v88
  %v90 = vmul.f32 %v59, 1.442695
  %v91 = vpow.pop %v90
  %v92 = vadd.f32 %v61, 1.0
  %v93 = vadd.f32 %v63, 1.0
  %v94 = vadd.f32 %v65, 1.0
  %v95 = vadd.f32 %v67, 1.0
  %v96 = vadd.f32 %v69, 1.0
  %v97 = vadd.f32 %v71, 1.0
  %v98 = vadd.f32 %v73, 1.0
  %v99 = vadd.f32 %v75, 1.0
  %v100 = vadd.f32 %v77, 1.0
  %v101 = vadd.f32 %v79, 1.0
  %v102 = vadd.f32 %v81, 1.0
  %v103 = vadd.f32 %v83, 1.0
  %v104 = vadd.f32 %v85, 1.0
  %v105 = vadd.f32 %v87, 1.0
  %v106 = vadd.f32 %v89, 1.0
  %v107 = vadd.f32 %v91, 1.0
  %v108 = vrcp.pop %v92
  %v109 = vmul.f32 1.0, %v108
  %v110 = vrcp.pop %v93
  %v111 = vmul.f32 1.0, %v110
  %v112 = vrcp.pop %v94
  %v113 = vmul.f32 1.0, %v112
  %v114 = vrcp.pop %v95
  %v115 = vmul.f32 1.0, %v114
  %v116 = vrcp.pop %v96
  %v117 = vmul.f32 1.0, %v116
  %v118 = vrcp.pop %v97
  %v119 = vmul.f32 1.0, %v118
  %v120 = vrcp.pop %v98
  %v121 = vmul.f32 1.0, %v120
  %v122 = vrcp.pop %v99
  %v123 = vmul.f32 1.0, %v122
  %v124 = vrcp.pop %v100
  %v125 = vmul.f32 1.0, %v124
  %v126 = vrcp.pop %v101
  %v127 = vmul.f32 1.0, %v126
  %v128 = vrcp.pop %v102
  %v129 = vmul.f32 1.0, %v128
  %v130 = vrcp.pop %v103
  %v131 = vmul.f32 1.0, %v130
  %v132 = vrcp.pop %v104
  %v133 = vmul.f32 1.0, %v132
  %v134 = vrcp.pop %v105
  %v135 = vmul.f32 1.0, %v134
  %v136 = vrcp.pop %v106
  %v137 = vmul.f32 1.0, %v136
  %v138 = vrcp.pop %v107
  %v139 = vmul.f32 1.0, %v138
  %v140 = vmul.f32 %v28, %v109
  %v141 = vmul.f32 %v29, %v111
  %v142 = vmul.f32 %v30, %v113
  %v143 = vmul.f32 %v31, %v115
  %v144 = vmul.f32 %v32, %v117
  %v145 = vmul.f32 %v33, %v119
  %v146 = vmul.f32 %v34, %v121
  %v147 = vmul.f32 %v35, %v123
  %v148 = vmul.f32 %v36, %v125
  %v149 = vmul.f32 %v37, %v127
  %v150 = vmul.f32 %v38, %v129
  %v151 = vmul.f32 %v39, %v131
  %v152 = vmul.f32 %v40, %v133
  %v153 = vmul.f32 %v41, %v135
  %v154 = vmul.f32 %v42, %v137
  %v155 = vmul.f32 %v43, %v139
  %v156 = vpack.c.bf16 %v141, %v140
  %v157 = vpack.c.bf16 %v143, %v142
  %v158 = vpack.c.bf16 %v145, %v144
  %v159 = vpack.c.bf16 %v147, %v146
  %v160 = vpack.c.bf16 %v149, %v148
  %v161 = vpack.c.bf16 %v151, %v150
  %v162 = vpack.c.bf16 %v153, %v152
  %v163 = vpack.c.bf16 %v155, %v154
  %164 = vst [vmem:[#allocation2] sm:$0xff] %v156
  %165 = vst [vmem:[#allocation2 + $0x48] sm:$0xff] %v157
  %166 = vst [vmem:[#allocation2 + $0x90] sm:$0xff] %v158
  %167 = vst [vmem:[#allocation2 + $0xd8] sm:$0xff] %v159
  %168 = vst [vmem:[#allocation2 + $0x120] sm:$0xff] %v160
  %169 = vst [vmem:[#allocation2 + $0x168] sm:$0xff] %v161
  %170 = vst [vmem:[#allocation2 + $0x1b0] sm:$0xff] %v162
  %171 = vst [vmem:[#allocation2 + $0x1f8] sm:$0xff] %v163
  %v172 = vsub.f32 %v28, -2.2
  %v173 = vsub.f32 %v29, -2.2
  %v174 = vsub.f32 %v30, -2.2
  %v175 = vsub.f32 %v31, -2.2
  %v176 = vsub.f32 %v32, -2.2
  %v177 = vsub.f32 %v33, -2.2
  %v178 = vsub.f32 %v34, -2.2
  %v179 = vsub.f32 %v35, -2.2
  %v180 = vsub.f32 %v36, -2.2
  %v181 = vsub.f32 %v37, -2.2
  %v182 = vsub.f32 %v38, -2.2
  %v183 = vsub.f32 %v39, -2.2
  %v184 = vsub.f32 %v40, -2.2
  %v185 = vsub.f32 %v41, -2.2
  %v186 = vsub.f32 %v42, -2.2
  %v187 = vsub.f32 %v43, -2.2
  %v188 = vmul.f32 %v172, 2.5
  %v189 = vmul.f32 %v173, 2.5
  %v190 = vmul.f32 %v174, 2.5
  %v191 = vmul.f32 %v175, 2.5
  %v192 = vmul.f32 %v176, 2.5
  %v193 = vmul.f32 %v177, 2.5
  %v194 = vmul.f32 %v178, 2.5
  %v195 = vmul.f32 %v179, 2.5
  %v196 = vmul.f32 %v180, 2.5
  %v197 = vmul.f32 %v181, 2.5
  %v198 = vmul.f32 %v182, 2.5
  %v199 = vmul.f32 %v183, 2.5
  %v200 = vmul.f32 %v184, 2.5
  %v201 = vmul.f32 %v185, 2.5
  %v202 = vmul.f32 %v186, 2.5
  %v203 = vmul.f32 %v187, 2.5
  %v204 = vfloor.f32 %v188
  %v205 = vfloor.f32 %v189
  %v206 = vfloor.f32 %v190
  %v207 = vfloor.f32 %v191
  %v208 = vfloor.f32 %v192
  %v209 = vfloor.f32 %v193
  %v210 = vfloor.f32 %v194
  %v211 = vfloor.f32 %v195
  %v212 = vfloor.f32 %v196
  %v213 = vfloor.f32 %v197
  %v214 = vfloor.f32 %v198
  %v215 = vfloor.f32 %v199
  %v216 = vfloor.f32 %v200
  %v217 = vfloor.f32 %v201
  %v218 = vfloor.f32 %v202
  %v219 = vfloor.f32 %v203
  %v220 = vsub.f32 %v188, %v204
  %v221 = vsub.f32 %v189, %v205
  %v222 = vsub.f32 %v190, %v206
  %v223 = vsub.f32 %v191, %v207
  %v224 = vsub.f32 %v192, %v208
  %v225 = vsub.f32 %v193, %v209
  %v226 = vsub.f32 %v194, %v210
  %v227 = vsub.f32 %v195, %v211
  %v228 = vsub.f32 %v196, %v212
  %v229 = vsub.f32 %v197, %v213
  %v230 = vsub.f32 %v198, %v214
  %v231 = vsub.f32 %v199, %v215
  %v232 = vsub.f32 %v200, %v216
  %v233 = vsub.f32 %v201, %v217
  %v234 = vsub.f32 %v202, %v218
  %v235 = vsub.f32 %v203, %v219
  %v236 = vmul.f32 %v220, %v220
  %v237 = vmul.f32 %v221, %v221
  %v238 = vmul.f32 %v222, %v222
  %v239 = vmul.f32 %v223, %v223
  %v240 = vmul.f32 %v224, %v224
  %v241 = vmul.f32 %v225, %v225
  %v242 = vmul.f32 %v226, %v226
  %v243 = vmul.f32 %v227, %v227
  %v244 = vmul.f32 %v228, %v228
  %v245 = vmul.f32 %v229, %v229
  %v246 = vmul.f32 %v230, %v230
  %v247 = vmul.f32 %v231, %v231
  %v248 = vmul.f32 %v232, %v232
  %v249 = vmul.f32 %v233, %v233
  %v250 = vmul.f32 %v234, %v234
  %v251 = vmul.f32 %v235, %v235
  %v252 = vmul.f32 %v236, %v220
  %v253 = vmul.f32 %v237, %v221
  %v254 = vmul.f32 %v238, %v222
  %v255 = vmul.f32 %v239, %v223
  %v256 = vmul.f32 %v240, %v224
  %v257 = vmul.f32 %v241, %v225
  %v258 = vmul.f32 %v242, %v226
  %v259 = vmul.f32 %v243, %v227
  %v260 = vmul.f32 %v244, %v228
  %v261 = vmul.f32 %v245, %v229
  %v262 = vmul.f32 %v246, %v230
  %v263 = vmul.f32 %v247, %v231
  %v264 = vmul.f32 %v248, %v232
  %v265 = vmul.f32 %v249, %v233
  %v266 = vmul.f32 %v250, %v234
  %v267 = vmul.f32 %v251, %v235
  %v268 = vmul.f32 %v252, 0.16666667
  %v269 = vmul.f32 %v253, 0.16666667
  %v270 = vmul.f32 %v254, 0.16666667
  %v271 = vmul.f32 %v255, 0.16666667
  %v272 = vmul.f32 %v256, 0.16666667
  %v273 = vmul.f32 %v257, 0.16666667
  %v274 = vmul.f32 %v258, 0.16666667
  %v275 = vmul.f32 %v259, 0.16666667
  %v276 = vmul.f32 %v260, 0.16666667
  %v277 = vmul.f32 %v261, 0.16666667
  %v278 = vmul.f32 %v262, 0.16666667
  %v279 = vmul.f32 %v263, 0.16666667
  %v280 = vmul.f32 %v264, 0.16666667
  %v281 = vmul.f32 %v265, 0.16666667
  %v282 = vmul.f32 %v266, 0.16666667
  %v283 = vmul.f32 %v267, 0.16666667
  %v284 = vsub.f32 1.0, %v220
  %v285 = vsub.f32 1.0, %v221
  %v286 = vsub.f32 1.0, %v222
  %v287 = vsub.f32 1.0, %v223
  %v288 = vsub.f32 1.0, %v224
  %v289 = vsub.f32 1.0, %v225
  %v290 = vsub.f32 1.0, %v226
  %v291 = vsub.f32 1.0, %v227
  %v292 = vsub.f32 1.0, %v228
  %v293 = vsub.f32 1.0, %v229
  %v294 = vsub.f32 1.0, %v230
  %v295 = vsub.f32 1.0, %v231
  %v296 = vsub.f32 1.0, %v232
  %v297 = vsub.f32 1.0, %v233
  %v298 = vsub.f32 1.0, %v234
  %v299 = vsub.f32 1.0, %v235
  %v300 = vmul.f32 %v284, %v284
  %v301 = vmul.f32 %v285, %v285
  %v302 = vmul.f32 %v286, %v286
  %v303 = vmul.f32 %v287, %v287
  %v304 = vmul.f32 %v288, %v288
  %v305 = vmul.f32 %v289, %v289
  %v306 = vmul.f32 %v290, %v290
  %v307 = vmul.f32 %v291, %v291
  %v308 = vmul.f32 %v292, %v292
  %v309 = vmul.f32 %v293, %v293
  %v310 = vmul.f32 %v294, %v294
  %v311 = vmul.f32 %v295, %v295
  %v312 = vmul.f32 %v296, %v296
  %v313 = vmul.f32 %v297, %v297
  %v314 = vmul.f32 %v298, %v298
  %v315 = vmul.f32 %v299, %v299
  %v316 = vmul.f32 %v300, %v284
  %v317 = vmul.f32 %v301, %v285
  %v318 = vmul.f32 %v302, %v286
  %v319 = vmul.f32 %v303, %v287
  %v320 = vmul.f32 %v304, %v288
  %v321 = vmul.f32 %v305, %v289
  %v322 = vmul.f32 %v306, %v290
  %v323 = vmul.f32 %v307, %v291
  %v324 = vmul.f32 %v308, %v292
  %v325 = vmul.f32 %v309, %v293
  %v326 = vmul.f32 %v310, %v294
  %v327 = vmul.f32 %v311, %v295
  %v328 = vmul.f32 %v312, %v296
  %v329 = vmul.f32 %v313, %v297
  %v330 = vmul.f32 %v314, %v298
  %v331 = vmul.f32 %v315, %v299
  %v332 = vmul.f32 %v316, 0.16666667
  %v333 = vmul.f32 %v317, 0.16666667
  %v334 = vmul.f32 %v318, 0.16666667
  %v335 = vmul.f32 %v319, 0.16666667
  %v336 = vmul.f32 %v320, 0.16666667
  %v337 = vmul.f32 %v321, 0.16666667
  %v338 = vmul.f32 %v322, 0.16666667
  %v339 = vmul.f32 %v323, 0.16666667
  %v340 = vmul.f32 %v324, 0.16666667
  %v341 = vmul.f32 %v325, 0.16666667
  %v342 = vmul.f32 %v326, 0.16666667
  %v343 = vmul.f32 %v327, 0.16666667
  %v344 = vmul.f32 %v328, 0.16666667
  %v345 = vmul.f32 %v329, 0.16666667
  %v346 = vmul.f32 %v330, 0.16666667
  %v347 = vmul.f32 %v331, 0.16666667
  %v348 = vmul.f32 %v252, 0.5
  %v349 = vmul.f32 %v253, 0.5
  %v350 = vmul.f32 %v254, 0.5
  %v351 = vmul.f32 %v255, 0.5
  %v352 = vmul.f32 %v256, 0.5
  %v353 = vmul.f32 %v257, 0.5
  %v354 = vmul.f32 %v258, 0.5
  %v355 = vmul.f32 %v259, 0.5
  %v356 = vmul.f32 %v260, 0.5
  %v357 = vmul.f32 %v261, 0.5
  %v358 = vmul.f32 %v262, 0.5
  %v359 = vmul.f32 %v263, 0.5
  %v360 = vmul.f32 %v264, 0.5
  %v361 = vmul.f32 %v265, 0.5
  %v362 = vmul.f32 %v266, 0.5
  %v363 = vmul.f32 %v267, 0.5
  %v364 = vsub.f32 %v348, %v236
  %v365 = vsub.f32 %v349, %v237
  %v366 = vsub.f32 %v350, %v238
  %v367 = vsub.f32 %v351, %v239
  %v368 = vsub.f32 %v352, %v240
  %v369 = vsub.f32 %v353, %v241
  %v370 = vsub.f32 %v354, %v242
  %v371 = vsub.f32 %v355, %v243
  %v372 = vsub.f32 %v356, %v244
  %v373 = vsub.f32 %v357, %v245
  %v374 = vsub.f32 %v358, %v246
  %v375 = vsub.f32 %v359, %v247
  %v376 = vsub.f32 %v360, %v248
  %v377 = vsub.f32 %v361, %v249
  %v378 = vsub.f32 %v362, %v250
  %v379 = vsub.f32 %v363, %v251
  %v380 = vadd.f32 %v364, 0.6666667
  %v381 = vadd.f32 %v365, 0.6666667
  %v382 = vadd.f32 %v366, 0.6666667
  %v383 = vadd.f32 %v367, 0.6666667
  %v384 = vadd.f32 %v368, 0.6666667
  %v385 = vadd.f32 %v369, 0.6666667
  %v386 = vadd.f32 %v370, 0.6666667
  %v387 = vadd.f32 %v371, 0.6666667
  %v388 = vadd.f32 %v372, 0.6666667
  %v389 = vadd.f32 %v373, 0.6666667
  %v390 = vadd.f32 %v374, 0.6666667
  %v391 = vadd.f32 %v375, 0.6666667
  %v392 = vadd.f32 %v376, 0.6666667
  %v393 = vadd.f32 %v377, 0.6666667
  %v394 = vadd.f32 %v378, 0.6666667
  %v395 = vadd.f32 %v379, 0.6666667
  %v396 = vsub.f32 1.0, %v268
  %v397 = vsub.f32 1.0, %v269
  %v398 = vsub.f32 1.0, %v270
  %v399 = vsub.f32 1.0, %v271
  %v400 = vsub.f32 1.0, %v272
  %v401 = vsub.f32 1.0, %v273
  %v402 = vsub.f32 1.0, %v274
  %v403 = vsub.f32 1.0, %v275
  %v404 = vsub.f32 1.0, %v276
  %v405 = vsub.f32 1.0, %v277
  %v406 = vsub.f32 1.0, %v278
  %v407 = vsub.f32 1.0, %v279
  %v408 = vsub.f32 1.0, %v280
  %v409 = vsub.f32 1.0, %v281
  %v410 = vsub.f32 1.0, %v282
  %v411 = vsub.f32 1.0, %v283
  %v412 = vsub.f32 %v396, %v380
  %v413 = vsub.f32 %v397, %v381
  %v414 = vsub.f32 %v398, %v382
  %v415 = vsub.f32 %v399, %v383
  %v416 = vsub.f32 %v400, %v384
  %v417 = vsub.f32 %v401, %v385
  %v418 = vsub.f32 %v402, %v386
  %v419 = vsub.f32 %v403, %v387
  %v420 = vsub.f32 %v404, %v388
  %v421 = vsub.f32 %v405, %v389
  %v422 = vsub.f32 %v406, %v390
  %v423 = vsub.f32 %v407, %v391
  %v424 = vsub.f32 %v408, %v392
  %v425 = vsub.f32 %v409, %v393
  %v426 = vsub.f32 %v410, %v394
  %v427 = vsub.f32 %v411, %v395
  %v428 = vsub.f32 %v412, %v332
  %v429 = vsub.f32 %v413, %v333
  %v430 = vsub.f32 %v414, %v334
  %v431 = vsub.f32 %v415, %v335
  %v432 = vsub.f32 %v416, %v336
  %v433 = vsub.f32 %v417, %v337
  %v434 = vsub.f32 %v418, %v338
  %v435 = vsub.f32 %v419, %v339
  %v436 = vsub.f32 %v420, %v340
  %v437 = vsub.f32 %v421, %v341
  %v438 = vsub.f32 %v422, %v342
  %v439 = vsub.f32 %v423, %v343
  %v440 = vsub.f32 %v424, %v344
  %v441 = vsub.f32 %v425, %v345
  %v442 = vsub.f32 %v426, %v346
  %v443 = vsub.f32 %v427, %v347
  %vm444 = vcmp.eq.f32.partialorder %v204, 0.0
  %vm445 = vcmp.eq.f32.partialorder %v205, 0.0
  %vm446 = vcmp.eq.f32.partialorder %v206, 0.0
  %vm447 = vcmp.eq.f32.partialorder %v207, 0.0
  %vm448 = vcmp.eq.f32.partialorder %v208, 0.0
  %vm449 = vcmp.eq.f32.partialorder %v209, 0.0
  %vm450 = vcmp.eq.f32.partialorder %v210, 0.0
  %vm451 = vcmp.eq.f32.partialorder %v211, 0.0
  %vm452 = vcmp.eq.f32.partialorder %v212, 0.0
  %vm453 = vcmp.eq.f32.partialorder %v213, 0.0
  %vm454 = vcmp.eq.f32.partialorder %v214, 0.0
  %vm455 = vcmp.eq.f32.partialorder %v215, 0.0
  %vm456 = vcmp.eq.f32.partialorder %v216, 0.0
  %vm457 = vcmp.eq.f32.partialorder %v217, 0.0
  %vm458 = vcmp.eq.f32.partialorder %v218, 0.0
  %vm459 = vcmp.eq.f32.partialorder %v219, 0.0
  %vm460 = vcmp.eq.f32.partialorder %v204, 1.0
  %vm461 = vcmp.eq.f32.partialorder %v205, 1.0
  %vm462 = vcmp.eq.f32.partialorder %v206, 1.0
  %vm463 = vcmp.eq.f32.partialorder %v207, 1.0
  %vm464 = vcmp.eq.f32.partialorder %v208, 1.0
  %vm465 = vcmp.eq.f32.partialorder %v209, 1.0
  %vm466 = vcmp.eq.f32.partialorder %v210, 1.0
  %vm467 = vcmp.eq.f32.partialorder %v211, 1.0
  %vm468 = vcmp.eq.f32.partialorder %v212, 1.0
  %vm469 = vcmp.eq.f32.partialorder %v213, 1.0
  %vm470 = vcmp.eq.f32.partialorder %v214, 1.0
  %vm471 = vcmp.eq.f32.partialorder %v215, 1.0
  %vm472 = vcmp.eq.f32.partialorder %v216, 1.0
  %vm473 = vcmp.eq.f32.partialorder %v217, 1.0
  %vm474 = vcmp.eq.f32.partialorder %v218, 1.0
  %vm475 = vcmp.eq.f32.partialorder %v219, 1.0
  %vm476 = vcmp.eq.f32.partialorder %v204, 2.0
  %vm477 = vcmp.eq.f32.partialorder %v205, 2.0
  %vm478 = vcmp.eq.f32.partialorder %v206, 2.0
  %vm479 = vcmp.eq.f32.partialorder %v207, 2.0
  %vm480 = vcmp.eq.f32.partialorder %v208, 2.0
  %vm481 = vcmp.eq.f32.partialorder %v209, 2.0
  %vm482 = vcmp.eq.f32.partialorder %v210, 2.0
  %vm483 = vcmp.eq.f32.partialorder %v211, 2.0
  %vm484 = vcmp.eq.f32.partialorder %v212, 2.0
  %vm485 = vcmp.eq.f32.partialorder %v213, 2.0
  %vm486 = vcmp.eq.f32.partialorder %v214, 2.0
  %vm487 = vcmp.eq.f32.partialorder %v215, 2.0
  %vm488 = vcmp.eq.f32.partialorder %v216, 2.0
  %vm489 = vcmp.eq.f32.partialorder %v217, 2.0
  %vm490 = vcmp.eq.f32.partialorder %v218, 2.0
  %vm491 = vcmp.eq.f32.partialorder %v219, 2.0
  %vm492 = vcmp.eq.f32.partialorder %v204, 3.0
  %vm493 = vcmp.eq.f32.partialorder %v205, 3.0
  %vm494 = vcmp.eq.f32.partialorder %v206, 3.0
  %vm495 = vcmp.eq.f32.partialorder %v207, 3.0
  %vm496 = vcmp.eq.f32.partialorder %v208, 3.0
  %vm497 = vcmp.eq.f32.partialorder %v209, 3.0
  %vm498 = vcmp.eq.f32.partialorder %v210, 3.0
  %vm499 = vcmp.eq.f32.partialorder %v211, 3.0
  %vm500 = vcmp.eq.f32.partialorder %v212, 3.0
  %vm501 = vcmp.eq.f32.partialorder %v213, 3.0
  %vm502 = vcmp.eq.f32.partialorder %v214, 3.0
  %vm503 = vcmp.eq.f32.partialorder %v215, 3.0
  %vm504 = vcmp.eq.f32.partialorder %v216, 3.0
  %vm505 = vcmp.eq.f32.partialorder %v217, 3.0
  %vm506 = vcmp.eq.f32.partialorder %v218, 3.0
  %vm507 = vcmp.eq.f32.partialorder %v219, 3.0
  %v508 = vsel %vm492, %v332, 0.0
  %v509 = vsel %vm493, %v333, 0.0
  %v510 = vsel %vm494, %v334, 0.0
  %v511 = vsel %vm495, %v335, 0.0
  %v512 = vsel %vm496, %v336, 0.0
  %v513 = vsel %vm497, %v337, 0.0
  %v514 = vsel %vm498, %v338, 0.0
  %v515 = vsel %vm499, %v339, 0.0
  %v516 = vsel %vm500, %v340, 0.0
  %v517 = vsel %vm501, %v341, 0.0
  %v518 = vsel %vm502, %v342, 0.0
  %v519 = vsel %vm503, %v343, 0.0
  %v520 = vsel %vm504, %v344, 0.0
  %v521 = vsel %vm505, %v345, 0.0
  %v522 = vsel %vm506, %v346, 0.0
  %v523 = vsel %vm507, %v347, 0.0
  %v524 = vsel %vm476, %v380, %v508
  %v525 = vsel %vm477, %v381, %v509
  %v526 = vsel %vm478, %v382, %v510
  %v527 = vsel %vm479, %v383, %v511
  %v528 = vsel %vm480, %v384, %v512
  %v529 = vsel %vm481, %v385, %v513
  %v530 = vsel %vm482, %v386, %v514
  %v531 = vsel %vm483, %v387, %v515
  %v532 = vsel %vm484, %v388, %v516
  %v533 = vsel %vm485, %v389, %v517
  %v534 = vsel %vm486, %v390, %v518
  %v535 = vsel %vm487, %v391, %v519
  %v536 = vsel %vm488, %v392, %v520
  %v537 = vsel %vm489, %v393, %v521
  %v538 = vsel %vm490, %v394, %v522
  %v539 = vsel %vm491, %v395, %v523
  %v540 = vsel %vm460, %v428, %v524
  %v541 = vsel %vm461, %v429, %v525
  %v542 = vsel %vm462, %v430, %v526
  %v543 = vsel %vm463, %v431, %v527
  %v544 = vsel %vm464, %v432, %v528
  %v545 = vsel %vm465, %v433, %v529
  %v546 = vsel %vm466, %v434, %v530
  %v547 = vsel %vm467, %v435, %v531
  %v548 = vsel %vm468, %v436, %v532
  %v549 = vsel %vm469, %v437, %v533
  %v550 = vsel %vm470, %v438, %v534
  %v551 = vsel %vm471, %v439, %v535
  %v552 = vsel %vm472, %v440, %v536
  %v553 = vsel %vm473, %v441, %v537
  %v554 = vsel %vm474, %v442, %v538
  %v555 = vsel %vm475, %v443, %v539
  %v556 = vsel %vm444, %v268, %v540
  %v557 = vsel %vm445, %v269, %v541
  %v558 = vsel %vm446, %v270, %v542
  %v559 = vsel %vm447, %v271, %v543
  %v560 = vsel %vm448, %v272, %v544
  %v561 = vsel %vm449, %v273, %v545
  %v562 = vsel %vm450, %v274, %v546
  %v563 = vsel %vm451, %v275, %v547
  %v564 = vsel %vm452, %v276, %v548
  %v565 = vsel %vm453, %v277, %v549
  %v566 = vsel %vm454, %v278, %v550
  %v567 = vsel %vm455, %v279, %v551
  %v568 = vsel %vm456, %v280, %v552
  %v569 = vsel %vm457, %v281, %v553
  %v570 = vsel %vm458, %v282, %v554
  %v571 = vsel %vm459, %v283, %v555
  %v572 = vpack.c.bf16 %v557, %v556
  %v573 = vpack.c.bf16 %v559, %v558
  %v574 = vpack.c.bf16 %v561, %v560
  %v575 = vpack.c.bf16 %v563, %v562
  %v576 = vpack.c.bf16 %v565, %v564
  %v577 = vpack.c.bf16 %v567, %v566
  %v578 = vpack.c.bf16 %v569, %v568
  %v579 = vpack.c.bf16 %v571, %v570
  %580 = vst [vmem:[#allocation2 + $0x8] sm:$0xff] %v572
  %581 = vst [vmem:[#allocation2 + $0x50] sm:$0xff] %v573
  %582 = vst [vmem:[#allocation2 + $0x98] sm:$0xff] %v574
  %583 = vst [vmem:[#allocation2 + $0xe0] sm:$0xff] %v575
  %584 = vst [vmem:[#allocation2 + $0x128] sm:$0xff] %v576
  %585 = vst [vmem:[#allocation2 + $0x170] sm:$0xff] %v577
  %586 = vst [vmem:[#allocation2 + $0x1b8] sm:$0xff] %v578
  %587 = vst [vmem:[#allocation2 + $0x200] sm:$0xff] %v579
  %vm588 = vcmp.eq.f32.partialorder %v204, 4.0
  %vm589 = vcmp.eq.f32.partialorder %v205, 4.0
  %vm590 = vcmp.eq.f32.partialorder %v206, 4.0
  %vm591 = vcmp.eq.f32.partialorder %v207, 4.0
  %vm592 = vcmp.eq.f32.partialorder %v208, 4.0
  %vm593 = vcmp.eq.f32.partialorder %v209, 4.0
  %vm594 = vcmp.eq.f32.partialorder %v210, 4.0
  %vm595 = vcmp.eq.f32.partialorder %v211, 4.0
  %vm596 = vcmp.eq.f32.partialorder %v212, 4.0
  %vm597 = vcmp.eq.f32.partialorder %v213, 4.0
  %vm598 = vcmp.eq.f32.partialorder %v214, 4.0
  %vm599 = vcmp.eq.f32.partialorder %v215, 4.0
  %vm600 = vcmp.eq.f32.partialorder %v216, 4.0
  %vm601 = vcmp.eq.f32.partialorder %v217, 4.0
  %vm602 = vcmp.eq.f32.partialorder %v218, 4.0
  %vm603 = vcmp.eq.f32.partialorder %v219, 4.0
  %v604 = vsel %vm588, %v332, 0.0
  %v605 = vsel %vm589, %v333, 0.0
  %v606 = vsel %vm590, %v334, 0.0
  %v607 = vsel %vm591, %v335, 0.0
  %v608 = vsel %vm592, %v336, 0.0
  %v609 = vsel %vm593, %v337, 0.0
  %v610 = vsel %vm594, %v338, 0.0
  %v611 = vsel %vm595, %v339, 0.0
  %v612 = vsel %vm596, %v340, 0.0
  %v613 = vsel %vm597, %v341, 0.0
  %v614 = vsel %vm598, %v342, 0.0
  %v615 = vsel %vm599, %v343, 0.0
  %v616 = vsel %vm600, %v344, 0.0
  %v617 = vsel %vm601, %v345, 0.0
  %v618 = vsel %vm602, %v346, 0.0
  %v619 = vsel %vm603, %v347, 0.0
  %v620 = vsel %vm492, %v380, %v604
  %v621 = vsel %vm493, %v381, %v605
  %v622 = vsel %vm494, %v382, %v606
  %v623 = vsel %vm495, %v383, %v607
  %v624 = vsel %vm496, %v384, %v608
  %v625 = vsel %vm497, %v385, %v609
  %v626 = vsel %vm498, %v386, %v610
  %v627 = vsel %vm499, %v387, %v611
  %v628 = vsel %vm500, %v388, %v612
  %v629 = vsel %vm501, %v389, %v613
  %v630 = vsel %vm502, %v390, %v614
  %v631 = vsel %vm503, %v391, %v615
  %v632 = vsel %vm504, %v392, %v616
  %v633 = vsel %vm505, %v393, %v617
  %v634 = vsel %vm506, %v394, %v618
  %v635 = vsel %vm507, %v395, %v619
  %v636 = vsel %vm476, %v428, %v620
  %v637 = vsel %vm477, %v429, %v621
  %v638 = vsel %vm478, %v430, %v622
  %v639 = vsel %vm479, %v431, %v623
  %v640 = vsel %vm480, %v432, %v624
  %v641 = vsel %vm481, %v433, %v625
  %v642 = vsel %vm482, %v434, %v626
  %v643 = vsel %vm483, %v435, %v627
  %v644 = vsel %vm484, %v436, %v628
  %v645 = vsel %vm485, %v437, %v629
  %v646 = vsel %vm486, %v438, %v630
  %v647 = vsel %vm487, %v439, %v631
  %v648 = vsel %vm488, %v440, %v632
  %v649 = vsel %vm489, %v441, %v633
  %v650 = vsel %vm490, %v442, %v634
  %v651 = vsel %vm491, %v443, %v635
  %v652 = vsel %vm460, %v268, %v636
  %v653 = vsel %vm461, %v269, %v637
  %v654 = vsel %vm462, %v270, %v638
  %v655 = vsel %vm463, %v271, %v639
  %v656 = vsel %vm464, %v272, %v640
  %v657 = vsel %vm465, %v273, %v641
  %v658 = vsel %vm466, %v274, %v642
  %v659 = vsel %vm467, %v275, %v643
  %v660 = vsel %vm468, %v276, %v644
  %v661 = vsel %vm469, %v277, %v645
  %v662 = vsel %vm470, %v278, %v646
  %v663 = vsel %vm471, %v279, %v647
  %v664 = vsel %vm472, %v280, %v648
  %v665 = vsel %vm473, %v281, %v649
  %v666 = vsel %vm474, %v282, %v650
  %v667 = vsel %vm475, %v283, %v651
  %v668 = vpack.c.bf16 %v653, %v652
  %v669 = vpack.c.bf16 %v655, %v654
  %v670 = vpack.c.bf16 %v657, %v656
  %v671 = vpack.c.bf16 %v659, %v658
  %v672 = vpack.c.bf16 %v661, %v660
  %v673 = vpack.c.bf16 %v663, %v662
  %v674 = vpack.c.bf16 %v665, %v664
  %v675 = vpack.c.bf16 %v667, %v666
  %676 = vst [vmem:[#allocation2 + $0x10] sm:$0xff] %v668
  %677 = vst [vmem:[#allocation2 + $0x58] sm:$0xff] %v669
  %678 = vst [vmem:[#allocation2 + $0xa0] sm:$0xff] %v670
  %679 = vst [vmem:[#allocation2 + $0xe8] sm:$0xff] %v671
  %680 = vst [vmem:[#allocation2 + $0x130] sm:$0xff] %v672
  %681 = vst [vmem:[#allocation2 + $0x178] sm:$0xff] %v673
  %682 = vst [vmem:[#allocation2 + $0x1c0] sm:$0xff] %v674
  %683 = vst [vmem:[#allocation2 + $0x208] sm:$0xff] %v675
  %vm684 = vcmp.eq.f32.partialorder %v204, 5.0
  %vm685 = vcmp.eq.f32.partialorder %v205, 5.0
  %vm686 = vcmp.eq.f32.partialorder %v206, 5.0
  %vm687 = vcmp.eq.f32.partialorder %v207, 5.0
  %vm688 = vcmp.eq.f32.partialorder %v208, 5.0
  %vm689 = vcmp.eq.f32.partialorder %v209, 5.0
  %vm690 = vcmp.eq.f32.partialorder %v210, 5.0
  %vm691 = vcmp.eq.f32.partialorder %v211, 5.0
  %vm692 = vcmp.eq.f32.partialorder %v212, 5.0
  %vm693 = vcmp.eq.f32.partialorder %v213, 5.0
  %vm694 = vcmp.eq.f32.partialorder %v214, 5.0
  %vm695 = vcmp.eq.f32.partialorder %v215, 5.0
  %vm696 = vcmp.eq.f32.partialorder %v216, 5.0
  %vm697 = vcmp.eq.f32.partialorder %v217, 5.0
  %vm698 = vcmp.eq.f32.partialorder %v218, 5.0
  %vm699 = vcmp.eq.f32.partialorder %v219, 5.0
  %v700 = vsel %vm684, %v332, 0.0
  %v701 = vsel %vm685, %v333, 0.0
  %v702 = vsel %vm686, %v334, 0.0
  %v703 = vsel %vm687, %v335, 0.0
  %v704 = vsel %vm688, %v336, 0.0
  %v705 = vsel %vm689, %v337, 0.0
  %v706 = vsel %vm690, %v338, 0.0
  %v707 = vsel %vm691, %v339, 0.0
  %v708 = vsel %vm692, %v340, 0.0
  %v709 = vsel %vm693, %v341, 0.0
  %v710 = vsel %vm694, %v342, 0.0
  %v711 = vsel %vm695, %v343, 0.0
  %v712 = vsel %vm696, %v344, 0.0
  %v713 = vsel %vm697, %v345, 0.0
  %v714 = vsel %vm698, %v346, 0.0
  %v715 = vsel %vm699, %v347, 0.0
  %v716 = vsel %vm588, %v380, %v700
  %v717 = vsel %vm589, %v381, %v701
  %v718 = vsel %vm590, %v382, %v702
  %v719 = vsel %vm591, %v383, %v703
  %v720 = vsel %vm592, %v384, %v704
  %v721 = vsel %vm593, %v385, %v705
  %v722 = vsel %vm594, %v386, %v706
  %v723 = vsel %vm595, %v387, %v707
  %v724 = vsel %vm596, %v388, %v708
  %v725 = vsel %vm597, %v389, %v709
  %v726 = vsel %vm598, %v390, %v710
  %v727 = vsel %vm599, %v391, %v711
  %v728 = vsel %vm600, %v392, %v712
  %v729 = vsel %vm601, %v393, %v713
  %v730 = vsel %vm602, %v394, %v714
  %v731 = vsel %vm603, %v395, %v715
  %v732 = vsel %vm492, %v428, %v716
  %v733 = vsel %vm493, %v429, %v717
  %v734 = vsel %vm494, %v430, %v718
  %v735 = vsel %vm495, %v431, %v719
  %v736 = vsel %vm496, %v432, %v720
  %v737 = vsel %vm497, %v433, %v721
  %v738 = vsel %vm498, %v434, %v722
  %v739 = vsel %vm499, %v435, %v723
  %v740 = vsel %vm500, %v436, %v724
  %v741 = vsel %vm501, %v437, %v725
  %v742 = vsel %vm502, %v438, %v726
  %v743 = vsel %vm503, %v439, %v727
  %v744 = vsel %vm504, %v440, %v728
  %v745 = vsel %vm505, %v441, %v729
  %v746 = vsel %vm506, %v442, %v730
  %v747 = vsel %vm507, %v443, %v731
  %v748 = vsel %vm476, %v268, %v732
  %v749 = vsel %vm477, %v269, %v733
  %v750 = vsel %vm478, %v270, %v734
  %v751 = vsel %vm479, %v271, %v735
  %v752 = vsel %vm480, %v272, %v736
  %v753 = vsel %vm481, %v273, %v737
  %v754 = vsel %vm482, %v274, %v738
  %v755 = vsel %vm483, %v275, %v739
  %v756 = vsel %vm484, %v276, %v740
  %v757 = vsel %vm485, %v277, %v741
  %v758 = vsel %vm486, %v278, %v742
  %v759 = vsel %vm487, %v279, %v743
  %v760 = vsel %vm488, %v280, %v744
  %v761 = vsel %vm489, %v281, %v745
  %v762 = vsel %vm490, %v282, %v746
  %v763 = vsel %vm491, %v283, %v747
  %v764 = vpack.c.bf16 %v749, %v748
  %v765 = vpack.c.bf16 %v751, %v750
  %v766 = vpack.c.bf16 %v753, %v752
  %v767 = vpack.c.bf16 %v755, %v754
  %v768 = vpack.c.bf16 %v757, %v756
  %v769 = vpack.c.bf16 %v759, %v758
  %v770 = vpack.c.bf16 %v761, %v760
  %v771 = vpack.c.bf16 %v763, %v762
  %772 = vst [vmem:[#allocation2 + $0x18] sm:$0xff] %v764
  %773 = vst [vmem:[#allocation2 + $0x60] sm:$0xff] %v765
  %774 = vst [vmem:[#allocation2 + $0xa8] sm:$0xff] %v766
  %775 = vst [vmem:[#allocation2 + $0xf0] sm:$0xff] %v767
  %776 = vst [vmem:[#allocation2 + $0x138] sm:$0xff] %v768
  %777 = vst [vmem:[#allocation2 + $0x180] sm:$0xff] %v769
  %778 = vst [vmem:[#allocation2 + $0x1c8] sm:$0xff] %v770
  %779 = vst [vmem:[#allocation2 + $0x210] sm:$0xff] %v771
  %vm780 = vcmp.eq.f32.partialorder %v204, 6.0
  %vm781 = vcmp.eq.f32.partialorder %v205, 6.0
  %vm782 = vcmp.eq.f32.partialorder %v206, 6.0
  %vm783 = vcmp.eq.f32.partialorder %v207, 6.0
  %vm784 = vcmp.eq.f32.partialorder %v208, 6.0
  %vm785 = vcmp.eq.f32.partialorder %v209, 6.0
  %vm786 = vcmp.eq.f32.partialorder %v210, 6.0
  %vm787 = vcmp.eq.f32.partialorder %v211, 6.0
  %vm788 = vcmp.eq.f32.partialorder %v212, 6.0
  %vm789 = vcmp.eq.f32.partialorder %v213, 6.0
  %vm790 = vcmp.eq.f32.partialorder %v214, 6.0
  %vm791 = vcmp.eq.f32.partialorder %v215, 6.0
  %vm792 = vcmp.eq.f32.partialorder %v216, 6.0
  %vm793 = vcmp.eq.f32.partialorder %v217, 6.0
  %vm794 = vcmp.eq.f32.partialorder %v218, 6.0
  %vm795 = vcmp.eq.f32.partialorder %v219, 6.0
  %v796 = vsel %vm780, %v332, 0.0
  %v797 = vsel %vm781, %v333, 0.0
  %v798 = vsel %vm782, %v334, 0.0
  %v799 = vsel %vm783, %v335, 0.0
  %v800 = vsel %vm784, %v336, 0.0
  %v801 = vsel %vm785, %v337, 0.0
  %v802 = vsel %vm786, %v338, 0.0
  %v803 = vsel %vm787, %v339, 0.0
  %v804 = vsel %vm788, %v340, 0.0
  %v805 = vsel %vm789, %v341, 0.0
  %v806 = vsel %vm790, %v342, 0.0
  %v807 = vsel %vm791, %v343, 0.0
  %v808 = vsel %vm792, %v344, 0.0
  %v809 = vsel %vm793, %v345, 0.0
  %v810 = vsel %vm794, %v346, 0.0
  %v811 = vsel %vm795, %v347, 0.0
  %v812 = vsel %vm684, %v380, %v796
  %v813 = vsel %vm685, %v381, %v797
  %v814 = vsel %vm686, %v382, %v798
  %v815 = vsel %vm687, %v383, %v799
  %v816 = vsel %vm688, %v384, %v800
  %v817 = vsel %vm689, %v385, %v801
  %v818 = vsel %vm690, %v386, %v802
  %v819 = vsel %vm691, %v387, %v803
  %v820 = vsel %vm692, %v388, %v804
  %v821 = vsel %vm693, %v389, %v805
  %v822 = vsel %vm694, %v390, %v806
  %v823 = vsel %vm695, %v391, %v807
  %v824 = vsel %vm696, %v392, %v808
  %v825 = vsel %vm697, %v393, %v809
  %v826 = vsel %vm698, %v394, %v810
  %v827 = vsel %vm699, %v395, %v811
  %v828 = vsel %vm588, %v428, %v812
  %v829 = vsel %vm589, %v429, %v813
  %v830 = vsel %vm590, %v430, %v814
  %v831 = vsel %vm591, %v431, %v815
  %v832 = vsel %vm592, %v432, %v816
  %v833 = vsel %vm593, %v433, %v817
  %v834 = vsel %vm594, %v434, %v818
  %v835 = vsel %vm595, %v435, %v819
  %v836 = vsel %vm596, %v436, %v820
  %v837 = vsel %vm597, %v437, %v821
  %v838 = vsel %vm598, %v438, %v822
  %v839 = vsel %vm599, %v439, %v823
  %v840 = vsel %vm600, %v440, %v824
  %v841 = vsel %vm601, %v441, %v825
  %v842 = vsel %vm602, %v442, %v826
  %v843 = vsel %vm603, %v443, %v827
  %v844 = vsel %vm492, %v268, %v828
  %v845 = vsel %vm493, %v269, %v829
  %v846 = vsel %vm494, %v270, %v830
  %v847 = vsel %vm495, %v271, %v831
  %v848 = vsel %vm496, %v272, %v832
  %v849 = vsel %vm497, %v273, %v833
  %v850 = vsel %vm498, %v274, %v834
  %v851 = vsel %vm499, %v275, %v835
  %v852 = vsel %vm500, %v276, %v836
  %v853 = vsel %vm501, %v277, %v837
  %v854 = vsel %vm502, %v278, %v838
  %v855 = vsel %vm503, %v279, %v839
  %v856 = vsel %vm504, %v280, %v840
  %v857 = vsel %vm505, %v281, %v841
  %v858 = vsel %vm506, %v282, %v842
  %v859 = vsel %vm507, %v283, %v843
  %v860 = vpack.c.bf16 %v845, %v844
  %v861 = vpack.c.bf16 %v847, %v846
  %v862 = vpack.c.bf16 %v849, %v848
  %v863 = vpack.c.bf16 %v851, %v850
  %v864 = vpack.c.bf16 %v853, %v852
  %v865 = vpack.c.bf16 %v855, %v854
  %v866 = vpack.c.bf16 %v857, %v856
  %v867 = vpack.c.bf16 %v859, %v858
  %868 = vst [vmem:[#allocation2 + $0x20] sm:$0xff] %v860
  %869 = vst [vmem:[#allocation2 + $0x68] sm:$0xff] %v861
  %870 = vst [vmem:[#allocation2 + $0xb0] sm:$0xff] %v862
  %871 = vst [vmem:[#allocation2 + $0xf8] sm:$0xff] %v863
  %872 = vst [vmem:[#allocation2 + $0x140] sm:$0xff] %v864
  %873 = vst [vmem:[#allocation2 + $0x188] sm:$0xff] %v865
  %874 = vst [vmem:[#allocation2 + $0x1d0] sm:$0xff] %v866
  %875 = vst [vmem:[#allocation2 + $0x218] sm:$0xff] %v867
  %vm876 = vcmp.eq.f32.partialorder %v204, 7.0
  %vm877 = vcmp.eq.f32.partialorder %v205, 7.0
  %vm878 = vcmp.eq.f32.partialorder %v206, 7.0
  %vm879 = vcmp.eq.f32.partialorder %v207, 7.0
  %vm880 = vcmp.eq.f32.partialorder %v208, 7.0
  %vm881 = vcmp.eq.f32.partialorder %v209, 7.0
  %vm882 = vcmp.eq.f32.partialorder %v210, 7.0
  %vm883 = vcmp.eq.f32.partialorder %v211, 7.0
  %vm884 = vcmp.eq.f32.partialorder %v212, 7.0
  %vm885 = vcmp.eq.f32.partialorder %v213, 7.0
  %vm886 = vcmp.eq.f32.partialorder %v214, 7.0
  %vm887 = vcmp.eq.f32.partialorder %v215, 7.0
  %vm888 = vcmp.eq.f32.partialorder %v216, 7.0
  %vm889 = vcmp.eq.f32.partialorder %v217, 7.0
  %vm890 = vcmp.eq.f32.partialorder %v218, 7.0
  %vm891 = vcmp.eq.f32.partialorder %v219, 7.0
  %v892 = vsel %vm876, %v332, 0.0
  %v893 = vsel %vm877, %v333, 0.0
  %v894 = vsel %vm878, %v334, 0.0
  %v895 = vsel %vm879, %v335, 0.0
  %v896 = vsel %vm880, %v336, 0.0
  %v897 = vsel %vm881, %v337, 0.0
  %v898 = vsel %vm882, %v338, 0.0
  %v899 = vsel %vm883, %v339, 0.0
  %v900 = vsel %vm884, %v340, 0.0
  %v901 = vsel %vm885, %v341, 0.0
  %v902 = vsel %vm886, %v342, 0.0
  %v903 = vsel %vm887, %v343, 0.0
  %v904 = vsel %vm888, %v344, 0.0
  %v905 = vsel %vm889, %v345, 0.0
  %v906 = vsel %vm890, %v346, 0.0
  %v907 = vsel %vm891, %v347, 0.0
  %v908 = vsel %vm780, %v380, %v892
  %v909 = vsel %vm781, %v381, %v893
  %v910 = vsel %vm782, %v382, %v894
  %v911 = vsel %vm783, %v383, %v895
  %v912 = vsel %vm784, %v384, %v896
  %v913 = vsel %vm785, %v385, %v897
  %v914 = vsel %vm786, %v386, %v898
  %v915 = vsel %vm787, %v387, %v899
  %v916 = vsel %vm788, %v388, %v900
  %v917 = vsel %vm789, %v389, %v901
  %v918 = vsel %vm790, %v390, %v902
  %v919 = vsel %vm791, %v391, %v903
  %v920 = vsel %vm792, %v392, %v904
  %v921 = vsel %vm793, %v393, %v905
  %v922 = vsel %vm794, %v394, %v906
  %v923 = vsel %vm795, %v395, %v907
  %v924 = vsel %vm684, %v428, %v908
  %v925 = vsel %vm685, %v429, %v909
  %v926 = vsel %vm686, %v430, %v910
  %v927 = vsel %vm687, %v431, %v911
  %v928 = vsel %vm688, %v432, %v912
  %v929 = vsel %vm689, %v433, %v913
  %v930 = vsel %vm690, %v434, %v914
  %v931 = vsel %vm691, %v435, %v915
  %v932 = vsel %vm692, %v436, %v916
  %v933 = vsel %vm693, %v437, %v917
  %v934 = vsel %vm694, %v438, %v918
  %v935 = vsel %vm695, %v439, %v919
  %v936 = vsel %vm696, %v440, %v920
  %v937 = vsel %vm697, %v441, %v921
  %v938 = vsel %vm698, %v442, %v922
  %v939 = vsel %vm699, %v443, %v923
  %v940 = vsel %vm588, %v268, %v924
  %v941 = vsel %vm589, %v269, %v925
  %v942 = vsel %vm590, %v270, %v926
  %v943 = vsel %vm591, %v271, %v927
  %v944 = vsel %vm592, %v272, %v928
  %v945 = vsel %vm593, %v273, %v929
  %v946 = vsel %vm594, %v274, %v930
  %v947 = vsel %vm595, %v275, %v931
  %v948 = vsel %vm596, %v276, %v932
  %v949 = vsel %vm597, %v277, %v933
  %v950 = vsel %vm598, %v278, %v934
  %v951 = vsel %vm599, %v279, %v935
  %v952 = vsel %vm600, %v280, %v936
  %v953 = vsel %vm601, %v281, %v937
  %v954 = vsel %vm602, %v282, %v938
  %v955 = vsel %vm603, %v283, %v939
  %v956 = vpack.c.bf16 %v941, %v940
  %v957 = vpack.c.bf16 %v943, %v942
  %v958 = vpack.c.bf16 %v945, %v944
  %v959 = vpack.c.bf16 %v947, %v946
  %v960 = vpack.c.bf16 %v949, %v948
  %v961 = vpack.c.bf16 %v951, %v950
  %v962 = vpack.c.bf16 %v953, %v952
  %v963 = vpack.c.bf16 %v955, %v954
  %964 = vst [vmem:[#allocation2 + $0x28] sm:$0xff] %v956
  %965 = vst [vmem:[#allocation2 + $0x70] sm:$0xff] %v957
  %966 = vst [vmem:[#allocation2 + $0xb8] sm:$0xff] %v958
  %967 = vst [vmem:[#allocation2 + $0x100] sm:$0xff] %v959
  %968 = vst [vmem:[#allocation2 + $0x148] sm:$0xff] %v960
  %969 = vst [vmem:[#allocation2 + $0x190] sm:$0xff] %v961
  %970 = vst [vmem:[#allocation2 + $0x1d8] sm:$0xff] %v962
  %971 = vst [vmem:[#allocation2 + $0x220] sm:$0xff] %v963
  %vm972 = vcmp.eq.f32.partialorder %v204, 8.0
  %vm973 = vcmp.eq.f32.partialorder %v205, 8.0
  %vm974 = vcmp.eq.f32.partialorder %v206, 8.0
  %vm975 = vcmp.eq.f32.partialorder %v207, 8.0
  %vm976 = vcmp.eq.f32.partialorder %v208, 8.0
  %vm977 = vcmp.eq.f32.partialorder %v209, 8.0
  %vm978 = vcmp.eq.f32.partialorder %v210, 8.0
  %vm979 = vcmp.eq.f32.partialorder %v211, 8.0
  %vm980 = vcmp.eq.f32.partialorder %v212, 8.0
  %vm981 = vcmp.eq.f32.partialorder %v213, 8.0
  %vm982 = vcmp.eq.f32.partialorder %v214, 8.0
  %vm983 = vcmp.eq.f32.partialorder %v215, 8.0
  %vm984 = vcmp.eq.f32.partialorder %v216, 8.0
  %vm985 = vcmp.eq.f32.partialorder %v217, 8.0
  %vm986 = vcmp.eq.f32.partialorder %v218, 8.0
  %vm987 = vcmp.eq.f32.partialorder %v219, 8.0
  %v988 = vsel %vm972, %v332, 0.0
  %v989 = vsel %vm973, %v333, 0.0
  %v990 = vsel %vm974, %v334, 0.0
  %v991 = vsel %vm975, %v335, 0.0
  %v992 = vsel %vm976, %v336, 0.0
  %v993 = vsel %vm977, %v337, 0.0
  %v994 = vsel %vm978, %v338, 0.0
  %v995 = vsel %vm979, %v339, 0.0
  %v996 = vsel %vm980, %v340, 0.0
  %v997 = vsel %vm981, %v341, 0.0
  %v998 = vsel %vm982, %v342, 0.0
  %v999 = vsel %vm983, %v343, 0.0
  %v1000 = vsel %vm984, %v344, 0.0
  %v1001 = vsel %vm985, %v345, 0.0
  %v1002 = vsel %vm986, %v346, 0.0
  %v1003 = vsel %vm987, %v347, 0.0
  %v1004 = vsel %vm876, %v380, %v988
  %v1005 = vsel %vm877, %v381, %v989
  %v1006 = vsel %vm878, %v382, %v990
  %v1007 = vsel %vm879, %v383, %v991
  %v1008 = vsel %vm880, %v384, %v992
  %v1009 = vsel %vm881, %v385, %v993
  %v1010 = vsel %vm882, %v386, %v994
  %v1011 = vsel %vm883, %v387, %v995
  %v1012 = vsel %vm884, %v388, %v996
  %v1013 = vsel %vm885, %v389, %v997
  %v1014 = vsel %vm886, %v390, %v998
  %v1015 = vsel %vm887, %v391, %v999
  %v1016 = vsel %vm888, %v392, %v1000
  %v1017 = vsel %vm889, %v393, %v1001
  %v1018 = vsel %vm890, %v394, %v1002
  %v1019 = vsel %vm891, %v395, %v1003
  %v1020 = vsel %vm780, %v428, %v1004
  %v1021 = vsel %vm781, %v429, %v1005
  %v1022 = vsel %vm782, %v430, %v1006
  %v1023 = vsel %vm783, %v431, %v1007
  %v1024 = vsel %vm784, %v432, %v1008
  %v1025 = vsel %vm785, %v433, %v1009
  %v1026 = vsel %vm786, %v434, %v1010
  %v1027 = vsel %vm787, %v435, %v1011
  %v1028 = vsel %vm788, %v436, %v1012
  %v1029 = vsel %vm789, %v437, %v1013
  %v1030 = vsel %vm790, %v438, %v1014
  %v1031 = vsel %vm791, %v439, %v1015
  %v1032 = vsel %vm792, %v440, %v1016
  %v1033 = vsel %vm793, %v441, %v1017
  %v1034 = vsel %vm794, %v442, %v1018
  %v1035 = vsel %vm795, %v443, %v1019
  %v1036 = vsel %vm684, %v268, %v1020
  %v1037 = vsel %vm685, %v269, %v1021
  %v1038 = vsel %vm686, %v270, %v1022
  %v1039 = vsel %vm687, %v271, %v1023
  %v1040 = vsel %vm688, %v272, %v1024
  %v1041 = vsel %vm689, %v273, %v1025
  %v1042 = vsel %vm690, %v274, %v1026
  %v1043 = vsel %vm691, %v275, %v1027
  %v1044 = vsel %vm692, %v276, %v1028
  %v1045 = vsel %vm693, %v277, %v1029
  %v1046 = vsel %vm694, %v278, %v1030
  %v1047 = vsel %vm695, %v279, %v1031
  %v1048 = vsel %vm696, %v280, %v1032
  %v1049 = vsel %vm697, %v281, %v1033
  %v1050 = vsel %vm698, %v282, %v1034
  %v1051 = vsel %vm699, %v283, %v1035
  %v1052 = vpack.c.bf16 %v1037, %v1036
  %v1053 = vpack.c.bf16 %v1039, %v1038
  %v1054 = vpack.c.bf16 %v1041, %v1040
  %v1055 = vpack.c.bf16 %v1043, %v1042
  %v1056 = vpack.c.bf16 %v1045, %v1044
  %v1057 = vpack.c.bf16 %v1047, %v1046
  %v1058 = vpack.c.bf16 %v1049, %v1048
  %v1059 = vpack.c.bf16 %v1051, %v1050
  %1060 = vst [vmem:[#allocation2 + $0x30] sm:$0xff] %v1052
  %1061 = vst [vmem:[#allocation2 + $0x78] sm:$0xff] %v1053
  %1062 = vst [vmem:[#allocation2 + $0xc0] sm:$0xff] %v1054
  %1063 = vst [vmem:[#allocation2 + $0x108] sm:$0xff] %v1055
  %1064 = vst [vmem:[#allocation2 + $0x150] sm:$0xff] %v1056
  %1065 = vst [vmem:[#allocation2 + $0x198] sm:$0xff] %v1057
  %1066 = vst [vmem:[#allocation2 + $0x1e0] sm:$0xff] %v1058
  %1067 = vst [vmem:[#allocation2 + $0x228] sm:$0xff] %v1059
  %vm1068 = vcmp.eq.f32.partialorder %v204, 9.0
  %vm1069 = vcmp.eq.f32.partialorder %v205, 9.0
  %vm1070 = vcmp.eq.f32.partialorder %v206, 9.0
  %vm1071 = vcmp.eq.f32.partialorder %v207, 9.0
  %vm1072 = vcmp.eq.f32.partialorder %v208, 9.0
  %vm1073 = vcmp.eq.f32.partialorder %v209, 9.0
  %vm1074 = vcmp.eq.f32.partialorder %v210, 9.0
  %vm1075 = vcmp.eq.f32.partialorder %v211, 9.0
  %vm1076 = vcmp.eq.f32.partialorder %v212, 9.0
  %vm1077 = vcmp.eq.f32.partialorder %v213, 9.0
  %vm1078 = vcmp.eq.f32.partialorder %v214, 9.0
  %vm1079 = vcmp.eq.f32.partialorder %v215, 9.0
  %vm1080 = vcmp.eq.f32.partialorder %v216, 9.0
  %vm1081 = vcmp.eq.f32.partialorder %v217, 9.0
  %vm1082 = vcmp.eq.f32.partialorder %v218, 9.0
  %vm1083 = vcmp.eq.f32.partialorder %v219, 9.0
  %v1084 = vsel %vm1068, %v332, 0.0
  %v1085 = vsel %vm1069, %v333, 0.0
  %v1086 = vsel %vm1070, %v334, 0.0
  %v1087 = vsel %vm1071, %v335, 0.0
  %v1088 = vsel %vm1072, %v336, 0.0
  %v1089 = vsel %vm1073, %v337, 0.0
  %v1090 = vsel %vm1074, %v338, 0.0
  %v1091 = vsel %vm1075, %v339, 0.0
  %v1092 = vsel %vm1076, %v340, 0.0
  %v1093 = vsel %vm1077, %v341, 0.0
  %v1094 = vsel %vm1078, %v342, 0.0
  %v1095 = vsel %vm1079, %v343, 0.0
  %v1096 = vsel %vm1080, %v344, 0.0
  %v1097 = vsel %vm1081, %v345, 0.0
  %v1098 = vsel %vm1082, %v346, 0.0
  %v1099 = vsel %vm1083, %v347, 0.0
  %v1100 = vsel %vm972, %v380, %v1084
  %v1101 = vsel %vm973, %v381, %v1085
  %v1102 = vsel %vm974, %v382, %v1086
  %v1103 = vsel %vm975, %v383, %v1087
  %v1104 = vsel %vm976, %v384, %v1088
  %v1105 = vsel %vm977, %v385, %v1089
  %v1106 = vsel %vm978, %v386, %v1090
  %v1107 = vsel %vm979, %v387, %v1091
  %v1108 = vsel %vm980, %v388, %v1092
  %v1109 = vsel %vm981, %v389, %v1093
  %v1110 = vsel %vm982, %v390, %v1094
  %v1111 = vsel %vm983, %v391, %v1095
  %v1112 = vsel %vm984, %v392, %v1096
  %v1113 = vsel %vm985, %v393, %v1097
  %v1114 = vsel %vm986, %v394, %v1098
  %v1115 = vsel %vm987, %v395, %v1099
  %v1116 = vsel %vm876, %v428, %v1100
  %v1117 = vsel %vm877, %v429, %v1101
  %v1118 = vsel %vm878, %v430, %v1102
  %v1119 = vsel %vm879, %v431, %v1103
  %v1120 = vsel %vm880, %v432, %v1104
  %v1121 = vsel %vm881, %v433, %v1105
  %v1122 = vsel %vm882, %v434, %v1106
  %v1123 = vsel %vm883, %v435, %v1107
  %v1124 = vsel %vm884, %v436, %v1108
  %v1125 = vsel %vm885, %v437, %v1109
  %v1126 = vsel %vm886, %v438, %v1110
  %v1127 = vsel %vm887, %v439, %v1111
  %v1128 = vsel %vm888, %v440, %v1112
  %v1129 = vsel %vm889, %v441, %v1113
  %v1130 = vsel %vm890, %v442, %v1114
  %v1131 = vsel %vm891, %v443, %v1115
  %v1132 = vsel %vm780, %v268, %v1116
  %v1133 = vsel %vm781, %v269, %v1117
  %v1134 = vsel %vm782, %v270, %v1118
  %v1135 = vsel %vm783, %v271, %v1119
  %v1136 = vsel %vm784, %v272, %v1120
  %v1137 = vsel %vm785, %v273, %v1121
  %v1138 = vsel %vm786, %v274, %v1122
  %v1139 = vsel %vm787, %v275, %v1123
  %v1140 = vsel %vm788, %v276, %v1124
  %v1141 = vsel %vm789, %v277, %v1125
  %v1142 = vsel %vm790, %v278, %v1126
  %v1143 = vsel %vm791, %v279, %v1127
  %v1144 = vsel %vm792, %v280, %v1128
  %v1145 = vsel %vm793, %v281, %v1129
  %v1146 = vsel %vm794, %v282, %v1130
  %v1147 = vsel %vm795, %v283, %v1131
  %v1148 = vpack.c.bf16 %v1133, %v1132
  %v1149 = vpack.c.bf16 %v1135, %v1134
  %v1150 = vpack.c.bf16 %v1137, %v1136
  %v1151 = vpack.c.bf16 %v1139, %v1138
  %v1152 = vpack.c.bf16 %v1141, %v1140
  %v1153 = vpack.c.bf16 %v1143, %v1142
  %v1154 = vpack.c.bf16 %v1145, %v1144
  %v1155 = vpack.c.bf16 %v1147, %v1146
  %1156 = vst [vmem:[#allocation2 + $0x38] sm:$0xff] %v1148
  %1157 = vst [vmem:[#allocation2 + $0x80] sm:$0xff] %v1149
  %1158 = vst [vmem:[#allocation2 + $0xc8] sm:$0xff] %v1150
  %1159 = vst [vmem:[#allocation2 + $0x110] sm:$0xff] %v1151
  %1160 = vst [vmem:[#allocation2 + $0x158] sm:$0xff] %v1152
  %1161 = vst [vmem:[#allocation2 + $0x1a0] sm:$0xff] %v1153
  %1162 = vst [vmem:[#allocation2 + $0x1e8] sm:$0xff] %v1154
  %1163 = vst [vmem:[#allocation2 + $0x230] sm:$0xff] %v1155
  %vm1164 = vcmp.eq.f32.partialorder %v204, 10.0
  %vm1165 = vcmp.eq.f32.partialorder %v205, 10.0
  %vm1166 = vcmp.eq.f32.partialorder %v206, 10.0
  %vm1167 = vcmp.eq.f32.partialorder %v207, 10.0
  %vm1168 = vcmp.eq.f32.partialorder %v208, 10.0
  %vm1169 = vcmp.eq.f32.partialorder %v209, 10.0
  %vm1170 = vcmp.eq.f32.partialorder %v210, 10.0
  %vm1171 = vcmp.eq.f32.partialorder %v211, 10.0
  %vm1172 = vcmp.eq.f32.partialorder %v212, 10.0
  %vm1173 = vcmp.eq.f32.partialorder %v213, 10.0
  %vm1174 = vcmp.eq.f32.partialorder %v214, 10.0
  %vm1175 = vcmp.eq.f32.partialorder %v215, 10.0
  %vm1176 = vcmp.eq.f32.partialorder %v216, 10.0
  %vm1177 = vcmp.eq.f32.partialorder %v217, 10.0
  %vm1178 = vcmp.eq.f32.partialorder %v218, 10.0
  %vm1179 = vcmp.eq.f32.partialorder %v219, 10.0
  %v1180 = vsel %vm1164, %v332, 0.0
  %v1181 = vsel %vm1165, %v333, 0.0
  %v1182 = vsel %vm1166, %v334, 0.0
  %v1183 = vsel %vm1167, %v335, 0.0
  %v1184 = vsel %vm1168, %v336, 0.0
  %v1185 = vsel %vm1169, %v337, 0.0
  %v1186 = vsel %vm1170, %v338, 0.0
  %v1187 = vsel %vm1171, %v339, 0.0
  %v1188 = vsel %vm1172, %v340, 0.0
  %v1189 = vsel %vm1173, %v341, 0.0
  %v1190 = vsel %vm1174, %v342, 0.0
  %v1191 = vsel %vm1175, %v343, 0.0
  %v1192 = vsel %vm1176, %v344, 0.0
  %v1193 = vsel %vm1177, %v345, 0.0
  %v1194 = vsel %vm1178, %v346, 0.0
  %v1195 = vsel %vm1179, %v347, 0.0
  %v1196 = vsel %vm1068, %v380, %v1180
  %v1197 = vsel %vm1069, %v381, %v1181
  %v1198 = vsel %vm1070, %v382, %v1182
  %v1199 = vsel %vm1071, %v383, %v1183
  %v1200 = vsel %vm1072, %v384, %v1184
  %v1201 = vsel %vm1073, %v385, %v1185
  %v1202 = vsel %vm1074, %v386, %v1186
  %v1203 = vsel %vm1075, %v387, %v1187
  %v1204 = vsel %vm1076, %v388, %v1188
  %v1205 = vsel %vm1077, %v389, %v1189
  %v1206 = vsel %vm1078, %v390, %v1190
  %v1207 = vsel %vm1079, %v391, %v1191
  %v1208 = vsel %vm1080, %v392, %v1192
  %v1209 = vsel %vm1081, %v393, %v1193
  %v1210 = vsel %vm1082, %v394, %v1194
  %v1211 = vsel %vm1083, %v395, %v1195
  %v1212 = vsel %vm972, %v428, %v1196
  %v1213 = vsel %vm973, %v429, %v1197
  %v1214 = vsel %vm974, %v430, %v1198
  %v1215 = vsel %vm975, %v431, %v1199
  %v1216 = vsel %vm976, %v432, %v1200
  %v1217 = vsel %vm977, %v433, %v1201
  %v1218 = vsel %vm978, %v434, %v1202
  %v1219 = vsel %vm979, %v435, %v1203
  %v1220 = vsel %vm980, %v436, %v1204
  %v1221 = vsel %vm981, %v437, %v1205
  %v1222 = vsel %vm982, %v438, %v1206
  %v1223 = vsel %vm983, %v439, %v1207
  %v1224 = vsel %vm984, %v440, %v1208
  %v1225 = vsel %vm985, %v441, %v1209
  %v1226 = vsel %vm986, %v442, %v1210
  %v1227 = vsel %vm987, %v443, %v1211
  %v1228 = vsel %vm876, %v268, %v1212
  %v1229 = vsel %vm877, %v269, %v1213
  %v1230 = vsel %vm878, %v270, %v1214
  %v1231 = vsel %vm879, %v271, %v1215
  %v1232 = vsel %vm880, %v272, %v1216
  %v1233 = vsel %vm881, %v273, %v1217
  %v1234 = vsel %vm882, %v274, %v1218
  %v1235 = vsel %vm883, %v275, %v1219
  %v1236 = vsel %vm884, %v276, %v1220
  %v1237 = vsel %vm885, %v277, %v1221
  %v1238 = vsel %vm886, %v278, %v1222
  %v1239 = vsel %vm887, %v279, %v1223
  %v1240 = vsel %vm888, %v280, %v1224
  %v1241 = vsel %vm889, %v281, %v1225
  %v1242 = vsel %vm890, %v282, %v1226
  %v1243 = vsel %vm891, %v283, %v1227
  %v1244 = vpack.c.bf16 %v1229, %v1228
  %v1245 = vpack.c.bf16 %v1231, %v1230
  %v1246 = vpack.c.bf16 %v1233, %v1232
  %v1247 = vpack.c.bf16 %v1235, %v1234
  %v1248 = vpack.c.bf16 %v1237, %v1236
  %v1249 = vpack.c.bf16 %v1239, %v1238
  %v1250 = vpack.c.bf16 %v1241, %v1240
  %v1251 = vpack.c.bf16 %v1243, %v1242
  %1252 = vst [vmem:[#allocation2 + $0x40] sm:$0xff] %v1244
  %1253 = vst [vmem:[#allocation2 + $0x88] sm:$0xff] %v1245
  %1254 = vst [vmem:[#allocation2 + $0xd0] sm:$0xff] %v1246
  %1255 = vst [vmem:[#allocation2 + $0x118] sm:$0xff] %v1247
  %1256 = vst [vmem:[#allocation2 + $0x160] sm:$0xff] %v1248
  %1257 = vst [vmem:[#allocation2 + $0x1a8] sm:$0xff] %v1249
  %1258 = vst [vmem:[#allocation2 + $0x1f0] sm:$0xff] %v1250
  %1259 = vst [vmem:[#allocation2 + $0x238] sm:$0xff] %v1251
  %v1260 = vld [vmem:[#allocation2] sm:$0xff]
  %v1261 = vld [vmem:[#allocation2 + $0x8] sm:$0xff]
  %v1262 = vld [vmem:[#allocation2 + $0x10] sm:$0xff]
  %v1263 = vld [vmem:[#allocation2 + $0x18] sm:$0xff]
  %v1264 = vld [vmem:[#allocation2 + $0x20] sm:$0xff]
  %v1265 = vld [vmem:[#allocation2 + $0x28] sm:$0xff]
  %v1266 = vld [vmem:[#allocation2 + $0x30] sm:$0xff]
  %v1267 = vld [vmem:[#allocation2 + $0x38] sm:$0xff]
  %v1268 = vld [vmem:[#allocation2 + $0x40] sm:$0xff]
  %v1269 = vld [vmem:[#allocation2 + $0x48] sm:$0xff]
  %v1270 = vld [vmem:[#allocation2 + $0x50] sm:$0xff]
  %v1271 = vld [vmem:[#allocation2 + $0x58] sm:$0xff]
  %v1272 = vld [vmem:[#allocation2 + $0x60] sm:$0xff]
  %v1273 = vld [vmem:[#allocation2 + $0x68] sm:$0xff]
  %v1274 = vld [vmem:[#allocation2 + $0x70] sm:$0xff]
  %v1275 = vld [vmem:[#allocation2 + $0x78] sm:$0xff]
  %v1276 = vld [vmem:[#allocation2 + $0x80] sm:$0xff]
  %v1277 = vld [vmem:[#allocation2 + $0x88] sm:$0xff]
  %v1278 = vld [vmem:[#allocation2 + $0x90] sm:$0xff]
  %v1279 = vld [vmem:[#allocation2 + $0x98] sm:$0xff]
  %v1280 = vld [vmem:[#allocation2 + $0xa0] sm:$0xff]
  %v1281 = vld [vmem:[#allocation2 + $0xa8] sm:$0xff]
  %v1282 = vld [vmem:[#allocation2 + $0xb0] sm:$0xff]
  %v1283 = vld [vmem:[#allocation2 + $0xb8] sm:$0xff]
  %v1284 = vld [vmem:[#allocation2 + $0xc0] sm:$0xff]
  %v1285 = vld [vmem:[#allocation2 + $0xc8] sm:$0xff]
  %v1286 = vld [vmem:[#allocation2 + $0xd0] sm:$0xff]
  %v1287 = vld [vmem:[#allocation2 + $0xd8] sm:$0xff]
  %v1288 = vld [vmem:[#allocation2 + $0xe0] sm:$0xff]
  %v1289 = vld [vmem:[#allocation2 + $0xe8] sm:$0xff]
  %v1290 = vld [vmem:[#allocation2 + $0xf0] sm:$0xff]
  %v1291 = vld [vmem:[#allocation2 + $0xf8] sm:$0xff]
  %v1292 = vld [vmem:[#allocation2 + $0x100] sm:$0xff]
  %v1293 = vld [vmem:[#allocation2 + $0x108] sm:$0xff]
  %v1294 = vld [vmem:[#allocation2 + $0x110] sm:$0xff]
  %v1295 = vld [vmem:[#allocation2 + $0x118] sm:$0xff]
  %v1296 = vld [vmem:[#allocation2 + $0x120] sm:$0xff]
  %v1297 = vld [vmem:[#allocation2 + $0x128] sm:$0xff]
  %v1298 = vld [vmem:[#allocation2 + $0x130] sm:$0xff]
  %v1299 = vld [vmem:[#allocation2 + $0x138] sm:$0xff]
  %v1300 = vld [vmem:[#allocation2 + $0x140] sm:$0xff]
  %v1301 = vld [vmem:[#allocation2 + $0x148] sm:$0xff]
  %v1302 = vld [vmem:[#allocation2 + $0x150] sm:$0xff]
  %v1303 = vld [vmem:[#allocation2 + $0x158] sm:$0xff]
  %v1304 = vld [vmem:[#allocation2 + $0x160] sm:$0xff]
  %v1305 = vld [vmem:[#allocation2 + $0x168] sm:$0xff]
  %v1306 = vld [vmem:[#allocation2 + $0x170] sm:$0xff]
  %v1307 = vld [vmem:[#allocation2 + $0x178] sm:$0xff]
  %v1308 = vld [vmem:[#allocation2 + $0x180] sm:$0xff]
  %v1309 = vld [vmem:[#allocation2 + $0x188] sm:$0xff]
  %v1310 = vld [vmem:[#allocation2 + $0x190] sm:$0xff]
  %v1311 = vld [vmem:[#allocation2 + $0x198] sm:$0xff]
  %v1312 = vld [vmem:[#allocation2 + $0x1a0] sm:$0xff]
  %v1313 = vld [vmem:[#allocation2 + $0x1a8] sm:$0xff]
  %v1314 = vld [vmem:[#allocation2 + $0x1b0] sm:$0xff]
  %v1315 = vld [vmem:[#allocation2 + $0x1b8] sm:$0xff]
  %v1316 = vld [vmem:[#allocation2 + $0x1c0] sm:$0xff]
  %v1317 = vld [vmem:[#allocation2 + $0x1c8] sm:$0xff]
  %v1318 = vld [vmem:[#allocation2 + $0x1d0] sm:$0xff]
  %v1319 = vld [vmem:[#allocation2 + $0x1d8] sm:$0xff]
  %v1320 = vld [vmem:[#allocation2 + $0x1e0] sm:$0xff]
  %v1321 = vld [vmem:[#allocation2 + $0x1e8] sm:$0xff]
  %v1322 = vld [vmem:[#allocation2 + $0x1f0] sm:$0xff]
  %v1323 = vld [vmem:[#allocation2 + $0x1f8] sm:$0xff]
  %v1324 = vld [vmem:[#allocation2 + $0x200] sm:$0xff]
  %v1325 = vld [vmem:[#allocation2 + $0x208] sm:$0xff]
  %v1326 = vld [vmem:[#allocation2 + $0x210] sm:$0xff]
  %v1327 = vld [vmem:[#allocation2 + $0x218] sm:$0xff]
  %v1328 = vld [vmem:[#allocation2 + $0x220] sm:$0xff]
  %v1329 = vld [vmem:[#allocation2 + $0x228] sm:$0xff]
  %v1330 = vld [vmem:[#allocation2 + $0x230] sm:$0xff]
  %v1331 = vld [vmem:[#allocation2 + $0x238] sm:$0xff]
  %v1332 = vld [vmem:[%s1] sm:$0xf]
  %v1333 = vld [vmem:[%s1 + $0x4] sm:$0xf]
  %v1334 = vld [vmem:[%s1 + $0x8] sm:$0xf]
  %v1335 = vld [vmem:[%s1 + $0xc] sm:$0xf]
  %v1336 = vld [vmem:[%s1 + $0x10] sm:$0xf]
  %v1337 = vld [vmem:[%s1 + $0x14] sm:$0xf]
  %v1338 = vld [vmem:[%s1 + $0x18] sm:$0xf]
  %v1339 = vld [vmem:[%s1 + $0x1c] sm:$0xf]
  %v1340 = vld [vmem:[%s1 + $0x20] sm:$0xf]
  %v1341 = vld [vmem:[%s1 + $0x24] sm:$0xf]
  %v1342 = vld [vmem:[%s1 + $0x28] sm:$0xf]
  %v1343 = vld [vmem:[%s1 + $0x2c] sm:$0xf]
  %v1344 = vld [vmem:[%s1 + $0x30] sm:$0xf]
  %v1345 = vld [vmem:[%s1 + $0x34] sm:$0xf]
  %v1346 = vld [vmem:[%s1 + $0x38] sm:$0xf]
  %v1347 = vld [vmem:[%s1 + $0x3c] sm:$0xf]
  %v1348 = vld [vmem:[%s1 + $0x40] sm:$0xf]
  %v1349 = vld [vmem:[%s1 + $0x44] sm:$0xf]
  %v1350 = vld [vmem:[%s1 + $0x48] sm:$0xf]
  %v1351 = vld [vmem:[%s1 + $0x4c] sm:$0xf]
  %v1352 = vld [vmem:[%s1 + $0x50] sm:$0xf]
  %v1353 = vld [vmem:[%s1 + $0x54] sm:$0xf]
  %v1354 = vld [vmem:[%s1 + $0x58] sm:$0xf]
  %v1355 = vld [vmem:[%s1 + $0x5c] sm:$0xf]
  %v1356 = vld [vmem:[%s1 + $0x60] sm:$0xf]
  %v1357 = vld [vmem:[%s1 + $0x64] sm:$0xf]
  %v1358 = vld [vmem:[%s1 + $0x68] sm:$0xf]
  %v1359 = vld [vmem:[%s1 + $0x6c] sm:$0xf]
  %v1360 = vld [vmem:[%s1 + $0x70] sm:$0xf]
  %v1361 = vld [vmem:[%s1 + $0x74] sm:$0xf]
  %v1362 = vld [vmem:[%s1 + $0x78] sm:$0xf]
  %v1363 = vld [vmem:[%s1 + $0x7c] sm:$0xf]
  %v1364 = vld [vmem:[%s1 + $0x80] sm:$0xf]
  %v1365 = vld [vmem:[%s1 + $0x84] sm:$0xf]
  %v1366 = vld [vmem:[%s1 + $0x88] sm:$0xf]
  %v1367 = vld [vmem:[%s1 + $0x8c] sm:$0xf]
  %v1368 = vld [vmem:[%s1 + $0x90] sm:$0xf]
  %v1369 = vld [vmem:[%s1 + $0x94] sm:$0xf]
  %v1370 = vld [vmem:[%s1 + $0x98] sm:$0xf]
  %v1371 = vld [vmem:[%s1 + $0x9c] sm:$0xf]
  %v1372 = vld [vmem:[%s1 + $0xa0] sm:$0xf]
  %v1373 = vld [vmem:[%s1 + $0xa4] sm:$0xf]
  %v1374 = vld [vmem:[%s1 + $0xa8] sm:$0xf]
  %v1375 = vld [vmem:[%s1 + $0xac] sm:$0xf]
  %v1376 = vld [vmem:[%s1 + $0xb0] sm:$0xf]
  %v1377 = vld [vmem:[%s1 + $0xb4] sm:$0xf]
  %v1378 = vld [vmem:[%s1 + $0xb8] sm:$0xf]
  %v1379 = vld [vmem:[%s1 + $0xbc] sm:$0xf]
  %v1380 = vld [vmem:[%s1 + $0xc0] sm:$0xf]
  %v1381 = vld [vmem:[%s1 + $0xc4] sm:$0xf]
  %v1382 = vld [vmem:[%s1 + $0xc8] sm:$0xf]
  %v1383 = vld [vmem:[%s1 + $0xcc] sm:$0xf]
  %v1384 = vld [vmem:[%s1 + $0xd0] sm:$0xf]
  %v1385 = vld [vmem:[%s1 + $0xd4] sm:$0xf]
  %v1386 = vld [vmem:[%s1 + $0xd8] sm:$0xf]
  %v1387 = vld [vmem:[%s1 + $0xdc] sm:$0xf]
  %v1388 = vld [vmem:[%s1 + $0xe0] sm:$0xf]
  %v1389 = vld [vmem:[%s1 + $0xe4] sm:$0xf]
  %v1390 = vld [vmem:[%s1 + $0xe8] sm:$0xf]
  %v1391 = vld [vmem:[%s1 + $0xec] sm:$0xf]
  %v1392 = vld [vmem:[%s1 + $0xf0] sm:$0xf]
  %v1393 = vld [vmem:[%s1 + $0xf4] sm:$0xf]
  %v1394 = vld [vmem:[%s1 + $0xf8] sm:$0xf]
  %v1395 = vld [vmem:[%s1 + $0xfc] sm:$0xf]
  %v1396 = vld [vmem:[%s1 + $0x100] sm:$0xf]
  %v1397 = vld [vmem:[%s1 + $0x104] sm:$0xf]
  %v1398 = vld [vmem:[%s1 + $0x108] sm:$0xf]
  %v1399 = vld [vmem:[%s1 + $0x10c] sm:$0xf]
  %v1400 = vld [vmem:[%s1 + $0x110] sm:$0xf]
  %v1401 = vld [vmem:[%s1 + $0x114] sm:$0xf]
  %v1402 = vld [vmem:[%s1 + $0x118] sm:$0xf]
  %v1403 = vld [vmem:[%s1 + $0x11c] sm:$0xf]
  %v1404 = vld [vmem:[%s1 + $0x120] sm:$0xf]
  %v1405 = vld [vmem:[%s1 + $0x124] sm:$0xf]
  %v1406 = vld [vmem:[%s1 + $0x128] sm:$0xf]
  %v1407 = vld [vmem:[%s1 + $0x12c] sm:$0xf]
  %v1408 = vld [vmem:[%s1 + $0x130] sm:$0xf]
  %v1409 = vld [vmem:[%s1 + $0x134] sm:$0xf]
  %v1410 = vld [vmem:[%s1 + $0x138] sm:$0xf]
  %v1411 = vld [vmem:[%s1 + $0x13c] sm:$0xf]
  %v1412 = vld [vmem:[%s1 + $0x140] sm:$0xf]
  %v1413 = vld [vmem:[%s1 + $0x144] sm:$0xf]
  %v1414 = vld [vmem:[%s1 + $0x148] sm:$0xf]
  %v1415 = vld [vmem:[%s1 + $0x14c] sm:$0xf]
  %v1416 = vld [vmem:[%s1 + $0x150] sm:$0xf]
  %v1417 = vld [vmem:[%s1 + $0x154] sm:$0xf]
  %v1418 = vld [vmem:[%s1 + $0x158] sm:$0xf]
  %v1419 = vld [vmem:[%s1 + $0x15c] sm:$0xf]
  %v1420 = vld [vmem:[%s1 + $0x160] sm:$0xf]
  %v1421 = vld [vmem:[%s1 + $0x164] sm:$0xf]
  %v1422 = vld [vmem:[%s1 + $0x168] sm:$0xf]
  %v1423 = vld [vmem:[%s1 + $0x16c] sm:$0xf]
  %v1424 = vld [vmem:[%s1 + $0x170] sm:$0xf]
  %v1425 = vld [vmem:[%s1 + $0x174] sm:$0xf]
  %v1426 = vld [vmem:[%s1 + $0x178] sm:$0xf]
  %v1427 = vld [vmem:[%s1 + $0x17c] sm:$0xf]
  %v1428 = vld [vmem:[%s1 + $0x180] sm:$0xf]
  %v1429 = vld [vmem:[%s1 + $0x184] sm:$0xf]
  %v1430 = vld [vmem:[%s1 + $0x188] sm:$0xf]
  %v1431 = vld [vmem:[%s1 + $0x18c] sm:$0xf]
  %v1432 = vld [vmem:[%s1 + $0x190] sm:$0xf]
  %v1433 = vld [vmem:[%s1 + $0x194] sm:$0xf]
  %v1434 = vld [vmem:[%s1 + $0x198] sm:$0xf]
  %v1435 = vld [vmem:[%s1 + $0x19c] sm:$0xf]
  %v1436 = vld [vmem:[%s1 + $0x1a0] sm:$0xf]
  %v1437 = vld [vmem:[%s1 + $0x1a4] sm:$0xf]
  %v1438 = vld [vmem:[%s1 + $0x1a8] sm:$0xf]
  %v1439 = vld [vmem:[%s1 + $0x1ac] sm:$0xf]
  %v1440 = vld [vmem:[%s1 + $0x1b0] sm:$0xf]
  %v1441 = vld [vmem:[%s1 + $0x1b4] sm:$0xf]
  %v1442 = vld [vmem:[%s1 + $0x1b8] sm:$0xf]
  %v1443 = vld [vmem:[%s1 + $0x1bc] sm:$0xf]
  %v1444 = vld [vmem:[%s1 + $0x1c0] sm:$0xf]
  %v1445 = vld [vmem:[%s1 + $0x1c4] sm:$0xf]
  %v1446 = vld [vmem:[%s1 + $0x1c8] sm:$0xf]
  %v1447 = vld [vmem:[%s1 + $0x1cc] sm:$0xf]
  %v1448 = vld [vmem:[%s1 + $0x1d0] sm:$0xf]
  %v1449 = vld [vmem:[%s1 + $0x1d4] sm:$0xf]
  %v1450 = vld [vmem:[%s1 + $0x1d8] sm:$0xf]
  %v1451 = vld [vmem:[%s1 + $0x1dc] sm:$0xf]
  %v1452 = vld [vmem:[%s1 + $0x1e0] sm:$0xf]
  %v1453 = vld [vmem:[%s1 + $0x1e4] sm:$0xf]
  %v1454 = vld [vmem:[%s1 + $0x1e8] sm:$0xf]
  %v1455 = vld [vmem:[%s1 + $0x1ec] sm:$0xf]
  %v1456 = vld [vmem:[%s1 + $0x1f0] sm:$0xf]
  %v1457 = vld [vmem:[%s1 + $0x1f4] sm:$0xf]
  %v1458 = vld [vmem:[%s1 + $0x1f8] sm:$0xf]
  %v1459 = vld [vmem:[%s1 + $0x1fc] sm:$0xf]
  %v1460 = vld [vmem:[%s1 + $0x200] sm:$0xf]
  %v1461 = vld [vmem:[%s1 + $0x204] sm:$0xf]
  %v1462 = vld [vmem:[%s1 + $0x208] sm:$0xf]
  %v1463 = vld [vmem:[%s1 + $0x20c] sm:$0xf]
  %v1464 = vld [vmem:[%s1 + $0x210] sm:$0xf]
  %v1465 = vld [vmem:[%s1 + $0x214] sm:$0xf]
  %v1466 = vld [vmem:[%s1 + $0x218] sm:$0xf]
  %v1467 = vld [vmem:[%s1 + $0x21c] sm:$0xf]
  %v1468 = vld [vmem:[%s1 + $0x220] sm:$0xf]
  %v1469 = vld [vmem:[%s1 + $0x224] sm:$0xf]
  %v1470 = vld [vmem:[%s1 + $0x228] sm:$0xf]
  %v1471 = vld [vmem:[%s1 + $0x22c] sm:$0xf]
  %v1472 = vld [vmem:[%s1 + $0x230] sm:$0xf]
  %v1473 = vld [vmem:[%s1 + $0x234] sm:$0xf]
  %v1474 = vld [vmem:[%s1 + $0x238] sm:$0xf]
  %v1475 = vld [vmem:[%s1 + $0x23c] sm:$0xf]
  %v1620 = vunpack.c.l.b16 %v1332
  %v1621 = vunpack.c.l.b16 %v1333
  %v1622 = vunpack.c.l.b16 %v1334
  %v1623 = vunpack.c.l.b16 %v1335
  %v1624 = vunpack.c.l.b16 %v1336
  %v1625 = vunpack.c.l.b16 %v1337
  %v1626 = vunpack.c.l.b16 %v1338
  %v1627 = vunpack.c.l.b16 %v1339
  %v1628 = vunpack.c.l.b16 %v1340
  %v1629 = vunpack.c.l.b16 %v1341
  %v1630 = vunpack.c.l.b16 %v1342
  %v1631 = vunpack.c.l.b16 %v1343
  %v1632 = vunpack.c.l.b16 %v1344
  %v1633 = vunpack.c.l.b16 %v1345
  %v1634 = vunpack.c.l.b16 %v1346
  %v1635 = vunpack.c.l.b16 %v1347
  %v1636 = vunpack.c.l.b16 %v1348
  %v1637 = vunpack.c.l.b16 %v1349
  %v1638 = vunpack.c.l.b16 %v1350
  %v1639 = vunpack.c.l.b16 %v1351
  %v1640 = vunpack.c.l.b16 %v1352
  %v1641 = vunpack.c.l.b16 %v1353
  %v1642 = vunpack.c.l.b16 %v1354
  %v1643 = vunpack.c.l.b16 %v1355
  %v1644 = vunpack.c.l.b16 %v1356
  %v1645 = vunpack.c.l.b16 %v1357
  %v1646 = vunpack.c.l.b16 %v1358
  %v1647 = vunpack.c.l.b16 %v1359
  %v1648 = vunpack.c.l.b16 %v1360
  %v1649 = vunpack.c.l.b16 %v1361
  %v1650 = vunpack.c.l.b16 %v1362
  %v1651 = vunpack.c.l.b16 %v1363
  %v1652 = vunpack.c.l.b16 %v1364
  %v1653 = vunpack.c.l.b16 %v1365
  %v1654 = vunpack.c.l.b16 %v1366
  %v1655 = vunpack.c.l.b16 %v1367
  %v1656 = vunpack.c.l.b16 %v1368
  %v1657 = vunpack.c.l.b16 %v1369
  %v1658 = vunpack.c.l.b16 %v1370
  %v1659 = vunpack.c.l.b16 %v1371
  %v1660 = vunpack.c.l.b16 %v1372
  %v1661 = vunpack.c.l.b16 %v1373
  %v1662 = vunpack.c.l.b16 %v1374
  %v1663 = vunpack.c.l.b16 %v1375
  %v1664 = vunpack.c.l.b16 %v1376
  %v1665 = vunpack.c.l.b16 %v1377
  %v1666 = vunpack.c.l.b16 %v1378
  %v1667 = vunpack.c.l.b16 %v1379
  %v1668 = vunpack.c.l.b16 %v1380
  %v1669 = vunpack.c.l.b16 %v1381
  %v1670 = vunpack.c.l.b16 %v1382
  %v1671 = vunpack.c.l.b16 %v1383
  %v1672 = vunpack.c.l.b16 %v1384
  %v1673 = vunpack.c.l.b16 %v1385
  %v1674 = vunpack.c.l.b16 %v1386
  %v1675 = vunpack.c.l.b16 %v1387
  %v1676 = vunpack.c.l.b16 %v1388
  %v1677 = vunpack.c.l.b16 %v1389
  %v1678 = vunpack.c.l.b16 %v1390
  %v1679 = vunpack.c.l.b16 %v1391
  %v1680 = vunpack.c.l.b16 %v1392
  %v1681 = vunpack.c.l.b16 %v1393
  %v1682 = vunpack.c.l.b16 %v1394
  %v1683 = vunpack.c.l.b16 %v1395
  %v1684 = vunpack.c.l.b16 %v1396
  %v1685 = vunpack.c.l.b16 %v1397
  %v1686 = vunpack.c.l.b16 %v1398
  %v1687 = vunpack.c.l.b16 %v1399
  %v1688 = vunpack.c.l.b16 %v1400
  %v1689 = vunpack.c.l.b16 %v1401
  %v1690 = vunpack.c.l.b16 %v1402
  %v1691 = vunpack.c.l.b16 %v1403
  %v1692 = vunpack.c.l.b16 %v1404
  %v1693 = vunpack.c.l.b16 %v1405
  %v1694 = vunpack.c.l.b16 %v1406
  %v1695 = vunpack.c.l.b16 %v1407
  %v1696 = vunpack.c.l.b16 %v1408
  %v1697 = vunpack.c.l.b16 %v1409
  %v1698 = vunpack.c.l.b16 %v1410
  %v1699 = vunpack.c.l.b16 %v1411
  %v1700 = vunpack.c.l.b16 %v1412
  %v1701 = vunpack.c.l.b16 %v1413
  %v1702 = vunpack.c.l.b16 %v1414
  %v1703 = vunpack.c.l.b16 %v1415
  %v1704 = vunpack.c.l.b16 %v1416
  %v1705 = vunpack.c.l.b16 %v1417
  %v1706 = vunpack.c.l.b16 %v1418
  %v1707 = vunpack.c.l.b16 %v1419
  %v1708 = vunpack.c.l.b16 %v1420
  %v1709 = vunpack.c.l.b16 %v1421
  %v1710 = vunpack.c.l.b16 %v1422
  %v1711 = vunpack.c.l.b16 %v1423
  %v1712 = vunpack.c.l.b16 %v1424
  %v1713 = vunpack.c.l.b16 %v1425
  %v1714 = vunpack.c.l.b16 %v1426
  %v1715 = vunpack.c.l.b16 %v1427
  %v1716 = vunpack.c.l.b16 %v1428
  %v1717 = vunpack.c.l.b16 %v1429
  %v1718 = vunpack.c.l.b16 %v1430
  %v1719 = vunpack.c.l.b16 %v1431
  %v1720 = vunpack.c.l.b16 %v1432
  %v1721 = vunpack.c.l.b16 %v1433
  %v1722 = vunpack.c.l.b16 %v1434
  %v1723 = vunpack.c.l.b16 %v1435
  %v1724 = vunpack.c.l.b16 %v1436
  %v1725 = vunpack.c.l.b16 %v1437
  %v1726 = vunpack.c.l.b16 %v1438
  %v1727 = vunpack.c.l.b16 %v1439
  %v1728 = vunpack.c.l.b16 %v1440
  %v1729 = vunpack.c.l.b16 %v1441
  %v1730 = vunpack.c.l.b16 %v1442
  %v1731 = vunpack.c.l.b16 %v1443
  %v1732 = vunpack.c.l.b16 %v1444
  %v1733 = vunpack.c.l.b16 %v1445
  %v1734 = vunpack.c.l.b16 %v1446
  %v1735 = vunpack.c.l.b16 %v1447
  %v1736 = vunpack.c.l.b16 %v1448
  %v1737 = vunpack.c.l.b16 %v1449
  %v1738 = vunpack.c.l.b16 %v1450
  %v1739 = vunpack.c.l.b16 %v1451
  %v1740 = vunpack.c.l.b16 %v1452
  %v1741 = vunpack.c.l.b16 %v1453
  %v1742 = vunpack.c.l.b16 %v1454
  %v1743 = vunpack.c.l.b16 %v1455
  %v1744 = vunpack.c.l.b16 %v1456
  %v1745 = vunpack.c.l.b16 %v1457
  %v1746 = vunpack.c.l.b16 %v1458
  %v1747 = vunpack.c.l.b16 %v1459
  %v1748 = vunpack.c.l.b16 %v1460
  %v1749 = vunpack.c.l.b16 %v1461
  %v1750 = vunpack.c.l.b16 %v1462
  %v1751 = vunpack.c.l.b16 %v1463
  %v1752 = vunpack.c.l.b16 %v1464
  %v1753 = vunpack.c.l.b16 %v1465
  %v1754 = vunpack.c.l.b16 %v1466
  %v1755 = vunpack.c.l.b16 %v1467
  %v1756 = vunpack.c.l.b16 %v1468
  %v1757 = vunpack.c.l.b16 %v1469
  %v1758 = vunpack.c.l.b16 %v1470
  %v1759 = vunpack.c.l.b16 %v1471
  %v1760 = vunpack.c.l.b16 %v1472
  %v1761 = vunpack.c.l.b16 %v1473
  %v1762 = vunpack.c.l.b16 %v1474
  %v1763 = vunpack.c.l.b16 %v1475
  %v1764 = vpack.c.b16 %v1621, %v1620
  %v1765 = vpack.c.b16 %v1623, %v1622
  %v1766 = vpack.c.b16 %v1625, %v1624
  %v1767 = vpack.c.b16 %v1627, %v1626
  %v1768 = vpack.c.b16 %v1629, %v1628
  %v1769 = vpack.c.b16 %v1631, %v1630
  %v1770 = vpack.c.b16 %v1633, %v1632
  %v1771 = vpack.c.b16 %v1635, %v1634
  %v1772 = vpack.c.b16 %v1637, %v1636
  %v1773 = vpack.c.b16 %v1639, %v1638
  %v1774 = vpack.c.b16 %v1641, %v1640
  %v1775 = vpack.c.b16 %v1643, %v1642
  %v1776 = vpack.c.b16 %v1645, %v1644
  %v1777 = vpack.c.b16 %v1647, %v1646
  %v1778 = vpack.c.b16 %v1649, %v1648
  %v1779 = vpack.c.b16 %v1651, %v1650
  %v1780 = vpack.c.b16 %v1653, %v1652
  %v1781 = vpack.c.b16 %v1655, %v1654
  %v1782 = vpack.c.b16 %v1657, %v1656
  %v1783 = vpack.c.b16 %v1659, %v1658
  %v1784 = vpack.c.b16 %v1661, %v1660
  %v1785 = vpack.c.b16 %v1663, %v1662
  %v1786 = vpack.c.b16 %v1665, %v1664
  %v1787 = vpack.c.b16 %v1667, %v1666
  %v1788 = vpack.c.b16 %v1669, %v1668
  %v1789 = vpack.c.b16 %v1671, %v1670
  %v1790 = vpack.c.b16 %v1673, %v1672
  %v1791 = vpack.c.b16 %v1675, %v1674
  %v1792 = vpack.c.b16 %v1677, %v1676
  %v1793 = vpack.c.b16 %v1679, %v1678
  %v1794 = vpack.c.b16 %v1681, %v1680
  %v1795 = vpack.c.b16 %v1683, %v1682
  %v1796 = vpack.c.b16 %v1685, %v1684
  %v1797 = vpack.c.b16 %v1687, %v1686
  %v1798 = vpack.c.b16 %v1689, %v1688
  %v1799 = vpack.c.b16 %v1691, %v1690
  %v1800 = vpack.c.b16 %v1693, %v1692
  %v1801 = vpack.c.b16 %v1695, %v1694
  %v1802 = vpack.c.b16 %v1697, %v1696
  %v1803 = vpack.c.b16 %v1699, %v1698
  %v1804 = vpack.c.b16 %v1701, %v1700
  %v1805 = vpack.c.b16 %v1703, %v1702
  %v1806 = vpack.c.b16 %v1705, %v1704
  %v1807 = vpack.c.b16 %v1707, %v1706
  %v1808 = vpack.c.b16 %v1709, %v1708
  %v1809 = vpack.c.b16 %v1711, %v1710
  %v1810 = vpack.c.b16 %v1713, %v1712
  %v1811 = vpack.c.b16 %v1715, %v1714
  %v1812 = vpack.c.b16 %v1717, %v1716
  %v1813 = vpack.c.b16 %v1719, %v1718
  %v1814 = vpack.c.b16 %v1721, %v1720
  %v1815 = vpack.c.b16 %v1723, %v1722
  %v1816 = vpack.c.b16 %v1725, %v1724
  %v1817 = vpack.c.b16 %v1727, %v1726
  %v1818 = vpack.c.b16 %v1729, %v1728
  %v1819 = vpack.c.b16 %v1731, %v1730
  %v1820 = vpack.c.b16 %v1733, %v1732
  %v1821 = vpack.c.b16 %v1735, %v1734
  %v1822 = vpack.c.b16 %v1737, %v1736
  %v1823 = vpack.c.b16 %v1739, %v1738
  %v1824 = vpack.c.b16 %v1741, %v1740
  %v1825 = vpack.c.b16 %v1743, %v1742
  %v1826 = vpack.c.b16 %v1745, %v1744
  %v1827 = vpack.c.b16 %v1747, %v1746
  %v1828 = vpack.c.b16 %v1749, %v1748
  %v1829 = vpack.c.b16 %v1751, %v1750
  %v1830 = vpack.c.b16 %v1753, %v1752
  %v1831 = vpack.c.b16 %v1755, %v1754
  %v1832 = vpack.c.b16 %v1757, %v1756
  %v1833 = vpack.c.b16 %v1759, %v1758
  %v1834 = vpack.c.b16 %v1761, %v1760
  %v1835 = vpack.c.b16 %v1763, %v1762
  %1908 = vmatprep.subr.bf16.mxu0 0
  %1909 = vmatpush1.bf16.msra.mxu0 %v1764
  %1910 = vmatprep.subr.bf16.mxu0 0
  %1911 = vmatpush1.bf16.msra.mxu0 %v1765
  %1912 = vmatprep.subr.bf16.mxu0 0
  %1913 = vmatpush1.bf16.msra.mxu0 %v1766
  %1914 = vmatprep.subr.bf16.mxu0 0
  %1915 = vmatpush1.bf16.msra.mxu0 %v1767
  %1916 = vmatprep.subr.bf16.mxu0 0
  %1917 = vmatpush1.bf16.msra.mxu0 %v1768
  %1918 = vmatprep.subr.bf16.mxu0 0
  %1919 = vmatpush1.bf16.msra.mxu0 %v1769
  %1920 = vmatprep.subr.bf16.mxu0 0
  %1921 = vmatpush1.bf16.msra.mxu0 %v1770
  %1922 = vmatprep.subr.bf16.mxu0 0
  %1923 = vmatpush1.bf16.msra.mxu0 %v1771
  %1924 = vmatprep.subr.bf16.mxu0 0
  %1925 = vmatpush1.bf16.msra.mxu0 %v1772
  %1926 = vmatprep.subr.bf16.mxu0 0
  %1927 = vmatpush1.bf16.msra.mxu0 %v1773
  %1928 = vmatprep.subr.bf16.mxu0 0
  %1929 = vmatpush1.bf16.msra.mxu0 %v1774
  %1930 = vmatprep.subr.bf16.mxu0 0
  %1931 = vmatpush1.bf16.msra.mxu0 %v1775
  %1932 = vmatprep.subr.bf16.mxu0 0
  %1933 = vmatpush1.bf16.msra.mxu0 %v1776
  %1934 = vmatprep.subr.bf16.mxu0 0
  %1935 = vmatpush1.bf16.msra.mxu0 %v1777
  %1936 = vmatprep.subr.bf16.mxu0 0
  %1937 = vmatpush1.bf16.msra.mxu0 %v1778
  %1938 = vmatprep.subr.bf16.mxu0 0
  %1939 = vmatpush1.bf16.msra.mxu0 %v1779
  %1940 = vmatprep.mubr.bf16.mxu0 %v1261
  %1941 = vmatmul.mubr.bf16.gmra.mrb[0].mxu0 %v1260
  %v1942 = vpop.f32.mrb[0].mxu0
  %v1943 = vadd.f32 0.0, %v1942
  %v1944 = vpop.f32.mrb[0].mxu0
  %v1945 = vpop.f32.mrb[0].mxu0
  %v1946 = vadd.f32 0.0, %v1945
  %v1947 = vpop.f32.mrb[0].mxu0
  %1948 = vmatprep.mubr.bf16.mxu0 %v1270
  %1949 = vmatmul.mubr.bf16.gmra.mrb[0].mxu0 %v1269
  %v1950 = vpop.f32.mrb[0].mxu0
  %v1951 = vadd.f32 0.0, %v1950
  %v1952 = vpop.f32.mrb[0].mxu0
  %v1953 = vpop.f32.mrb[0].mxu0
  %v1954 = vadd.f32 0.0, %v1953
  %v1955 = vpop.f32.mrb[0].mxu0
  %1956 = vmatprep.mubr.bf16.mxu0 %v1279
  %1957 = vmatmul.mubr.bf16.gmra.mrb[0].mxu0 %v1278
  %v1958 = vpop.f32.mrb[0].mxu0
  %v1959 = vadd.f32 0.0, %v1958
  %v1960 = vpop.f32.mrb[0].mxu0
  %v1961 = vpop.f32.mrb[0].mxu0
  %v1962 = vadd.f32 0.0, %v1961
  %v1963 = vpop.f32.mrb[0].mxu0
  %1964 = vmatprep.mubr.bf16.mxu0 %v1288
  %1965 = vmatmul.mubr.bf16.gmra.mrb[0].mxu0 %v1287
  %v1966 = vpop.f32.mrb[0].mxu0
  %v1967 = vadd.f32 0.0, %v1966
  %v1968 = vpop.f32.mrb[0].mxu0
  %v1969 = vpop.f32.mrb[0].mxu0
  %v1970 = vadd.f32 0.0, %v1969
  %v1971 = vpop.f32.mrb[0].mxu0
  %1972 = vmatprep.mubr.bf16.mxu0 %v1297
  %1973 = vmatmul.mubr.bf16.gmra.mrb[0].mxu0 %v1296
  %v1974 = vpop.f32.mrb[0].mxu0
  %v1975 = vadd.f32 0.0, %v1974
  %v1976 = vpop.f32.mrb[0].mxu0
  %v1977 = vpop.f32.mrb[0].mxu0
  %v1978 = vadd.f32 0.0, %v1977
  %v1979 = vpop.f32.mrb[0].mxu0
  %1980 = vmatprep.mubr.bf16.mxu0 %v1306
  %1981 = vmatmul.mubr.bf16.gmra.mrb[0].mxu0 %v1305
  %v1982 = vpop.f32.mrb[0].mxu0
  %v1983 = vadd.f32 0.0, %v1982
  %v1984 = vpop.f32.mrb[0].mxu0
  %v1985 = vpop.f32.mrb[0].mxu0
  %v1986 = vadd.f32 0.0, %v1985
  %v1987 = vpop.f32.mrb[0].mxu0
  %1988 = vmatprep.mubr.bf16.mxu0 %v1315
  %1989 = vmatmul.mubr.bf16.gmra.mrb[0].mxu0 %v1314
  %v1990 = vpop.f32.mrb[0].mxu0
  %v1991 = vadd.f32 0.0, %v1990
  %v1992 = vpop.f32.mrb[0].mxu0
  %v1993 = vpop.f32.mrb[0].mxu0
  %v1994 = vadd.f32 0.0, %v1993
  %v1995 = vpop.f32.mrb[0].mxu0
  %1996 = vmatprep.mubr.bf16.mxu0 %v1324
  %1997 = vmatmul.mubr.bf16.gmra.mrb[0].mxu0 %v1323
  %v1998 = vpop.f32.mrb[0].mxu0
  %v1999 = vadd.f32 0.0, %v1998
  %v2000 = vpop.f32.mrb[0].mxu0
  %v2001 = vpop.f32.mrb[0].mxu0
  %v2002 = vadd.f32 0.0, %v2001
  %v2003 = vpop.f32.mrb[0].mxu0
  %2004 = vdwg.mxu0
  %2005 = vmatprep.subr.bf16.mxu0 0
  %2006 = vmatpush1.bf16.msra.mxu0 %v1780
  %2007 = vmatprep.subr.bf16.mxu0 0
  %2008 = vmatpush1.bf16.msra.mxu0 %v1781
  %2009 = vmatprep.subr.bf16.mxu0 0
  %2010 = vmatpush1.bf16.msra.mxu0 %v1782
  %2011 = vmatprep.subr.bf16.mxu0 0
  %2012 = vmatpush1.bf16.msra.mxu0 %v1783
  %2013 = vmatprep.subr.bf16.mxu0 0
  %2014 = vmatpush1.bf16.msra.mxu0 %v1784
  %2015 = vmatprep.subr.bf16.mxu0 0
  %2016 = vmatpush1.bf16.msra.mxu0 %v1785
  %2017 = vmatprep.subr.bf16.mxu0 0
  %2018 = vmatpush1.bf16.msra.mxu0 %v1786
  %2019 = vmatprep.subr.bf16.mxu0 0
  %2020 = vmatpush1.bf16.msra.mxu0 %v1787
  %2021 = vmatprep.subr.bf16.mxu0 0
  %2022 = vmatpush1.bf16.msra.mxu0 %v1788
  %2023 = vmatprep.subr.bf16.mxu0 0
  %2024 = vmatpush1.bf16.msra.mxu0 %v1789
  %2025 = vmatprep.subr.bf16.mxu0 0
  %2026 = vmatpush1.bf16.msra.mxu0 %v1790
  %2027 = vmatprep.subr.bf16.mxu0 0
  %2028 = vmatpush1.bf16.msra.mxu0 %v1791
  %2029 = vmatprep.subr.bf16.mxu0 0
  %2030 = vmatpush1.bf16.msra.mxu0 %v1792
  %2031 = vmatprep.subr.bf16.mxu0 0
  %2032 = vmatpush1.bf16.msra.mxu0 %v1793
  %2033 = vmatprep.subr.bf16.mxu0 0
  %2034 = vmatpush1.bf16.msra.mxu0 %v1794
  %2035 = vmatprep.subr.bf16.mxu0 0
  %2036 = vmatpush1.bf16.msra.mxu0 %v1795
  %2037 = vmatprep.mubr.bf16.mxu0 %v1263
  %2038 = vmatmul.mubr.bf16.gmra.mrb[0].mxu0 %v1262
  %v2039 = vpop.f32.mrb[0].mxu0
  %v2040 = vadd.f32 %v1943, %v2039
  %v2041 = vpop.f32.mrb[0].mxu0
  %v2042 = vpop.f32.mrb[0].mxu0
  %v2043 = vadd.f32 %v1946, %v2042
  %v2044 = vpop.f32.mrb[0].mxu0
  %2045 = vmatprep.mubr.bf16.mxu0 %v1272
  %2046 = vmatmul.mubr.bf16.gmra.mrb[0].mxu0 %v1271
  %v2047 = vpop.f32.mrb[0].mxu0
  %v2048 = vadd.f32 %v1951, %v2047
  %v2049 = vpop.f32.mrb[0].mxu0
  %v2050 = vpop.f32.mrb[0].mxu0
  %v2051 = vadd.f32 %v1954, %v2050
  %v2052 = vpop.f32.mrb[0].mxu0
  %2053 = vmatprep.mubr.bf16.mxu0 %v1281
  %2054 = vmatmul.mubr.bf16.gmra.mrb[0].mxu0 %v1280
  %v2055 = vpop.f32.mrb[0].mxu0
  %v2056 = vadd.f32 %v1959, %v2055
  %v2057 = vpop.f32.mrb[0].mxu0
  %v2058 = vpop.f32.mrb[0].mxu0
  %v2059 = vadd.f32 %v1962, %v2058
  %v2060 = vpop.f32.mrb[0].mxu0
  %2061 = vmatprep.mubr.bf16.mxu0 %v1290
  %2062 = vmatmul.mubr.bf16.gmra.mrb[0].mxu0 %v1289
  %v2063 = vpop.f32.mrb[0].mxu0
  %v2064 = vadd.f32 %v1967, %v2063
  %v2065 = vpop.f32.mrb[0].mxu0
  %v2066 = vpop.f32.mrb[0].mxu0
  %v2067 = vadd.f32 %v1970, %v2066
  %v2068 = vpop.f32.mrb[0].mxu0
  %2069 = vmatprep.mubr.bf16.mxu0 %v1299
  %2070 = vmatmul.mubr.bf16.gmra.mrb[0].mxu0 %v1298
  %v2071 = vpop.f32.mrb[0].mxu0
  %v2072 = vadd.f32 %v1975, %v2071
  %v2073 = vpop.f32.mrb[0].mxu0
  %v2074 = vpop.f32.mrb[0].mxu0
  %v2075 = vadd.f32 %v1978, %v2074
  %v2076 = vpop.f32.mrb[0].mxu0
  %2077 = vmatprep.mubr.bf16.mxu0 %v1308
  %2078 = vmatmul.mubr.bf16.gmra.mrb[0].mxu0 %v1307
  %v2079 = vpop.f32.mrb[0].mxu0
  %v2080 = vadd.f32 %v1983, %v2079
  %v2081 = vpop.f32.mrb[0].mxu0
  %v2082 = vpop.f32.mrb[0].mxu0
  %v2083 = vadd.f32 %v1986, %v2082
  %v2084 = vpop.f32.mrb[0].mxu0
  %2085 = vmatprep.mubr.bf16.mxu0 %v1317
  %2086 = vmatmul.mubr.bf16.gmra.mrb[0].mxu0 %v1316
  %v2087 = vpop.f32.mrb[0].mxu0
  %v2088 = vadd.f32 %v1991, %v2087
  %v2089 = vpop.f32.mrb[0].mxu0
  %v2090 = vpop.f32.mrb[0].mxu0
  %v2091 = vadd.f32 %v1994, %v2090
  %v2092 = vpop.f32.mrb[0].mxu0
  %2093 = vmatprep.mubr.bf16.mxu0 %v1326
  %2094 = vmatmul.mubr.bf16.gmra.mrb[0].mxu0 %v1325
  %v2095 = vpop.f32.mrb[0].mxu0
  %v2096 = vadd.f32 %v1999, %v2095
  %v2097 = vpop.f32.mrb[0].mxu0
  %v2098 = vpop.f32.mrb[0].mxu0
  %v2099 = vadd.f32 %v2002, %v2098
  %v2100 = vpop.f32.mrb[0].mxu0
  %2101 = vdwg.mxu0
  %2102 = vmatprep.subr.bf16.mxu0 0
  %2103 = vmatpush1.bf16.msra.mxu0 %v1796
  %2104 = vmatprep.subr.bf16.mxu0 0
  %2105 = vmatpush1.bf16.msra.mxu0 %v1797
  %2106 = vmatprep.subr.bf16.mxu0 0
  %2107 = vmatpush1.bf16.msra.mxu0 %v1798
  %2108 = vmatprep.subr.bf16.mxu0 0
  %2109 = vmatpush1.bf16.msra.mxu0 %v1799
  %2110 = vmatprep.subr.bf16.mxu0 0
  %2111 = vmatpush1.bf16.msra.mxu0 %v1800
  %2112 = vmatprep.subr.bf16.mxu0 0
  %2113 = vmatpush1.bf16.msra.mxu0 %v1801
  %2114 = vmatprep.subr.bf16.mxu0 0
  %2115 = vmatpush1.bf16.msra.mxu0 %v1802
  %2116 = vmatprep.subr.bf16.mxu0 0
  %2117 = vmatpush1.bf16.msra.mxu0 %v1803
  %2118 = vmatprep.subr.bf16.mxu0 0
  %2119 = vmatpush1.bf16.msra.mxu0 %v1804
  %2120 = vmatprep.subr.bf16.mxu0 0
  %2121 = vmatpush1.bf16.msra.mxu0 %v1805
  %2122 = vmatprep.subr.bf16.mxu0 0
  %2123 = vmatpush1.bf16.msra.mxu0 %v1806
  %2124 = vmatprep.subr.bf16.mxu0 0
  %2125 = vmatpush1.bf16.msra.mxu0 %v1807
  %2126 = vmatprep.subr.bf16.mxu0 0
  %2127 = vmatpush1.bf16.msra.mxu0 %v1808
  %2128 = vmatprep.subr.bf16.mxu0 0
  %2129 = vmatpush1.bf16.msra.mxu0 %v1809
  %2130 = vmatprep.subr.bf16.mxu0 0
  %2131 = vmatpush1.bf16.msra.mxu0 %v1810
  %2132 = vmatprep.subr.bf16.mxu0 0
  %2133 = vmatpush1.bf16.msra.mxu0 %v1811
  %2134 = vmatprep.mubr.bf16.mxu0 %v1265
  %2135 = vmatmul.mubr.bf16.gmra.mrb[0].mxu0 %v1264
  %v2136 = vpop.f32.mrb[0].mxu0
  %v2137 = vadd.f32 %v2040, %v2136
  %v2138 = vpop.f32.mrb[0].mxu0
  %v2139 = vpop.f32.mrb[0].mxu0
  %v2140 = vadd.f32 %v2043, %v2139
  %v2141 = vpop.f32.mrb[0].mxu0
  %2142 = vmatprep.mubr.bf16.mxu0 %v1274
  %2143 = vmatmul.mubr.bf16.gmra.mrb[0].mxu0 %v1273
  %v2144 = vpop.f32.mrb[0].mxu0
  %v2145 = vadd.f32 %v2048, %v2144
  %v2146 = vpop.f32.mrb[0].mxu0
  %v2147 = vpop.f32.mrb[0].mxu0
  %v2148 = vadd.f32 %v2051, %v2147
  %v2149 = vpop.f32.mrb[0].mxu0
  %2150 = vmatprep.mubr.bf16.mxu0 %v1283
  %2151 = vmatmul.mubr.bf16.gmra.mrb[0].mxu0 %v1282
  %v2152 = vpop.f32.mrb[0].mxu0
  %v2153 = vadd.f32 %v2056, %v2152
  %v2154 = vpop.f32.mrb[0].mxu0
  %v2155 = vpop.f32.mrb[0].mxu0
  %v2156 = vadd.f32 %v2059, %v2155
  %v2157 = vpop.f32.mrb[0].mxu0
  %2158 = vmatprep.mubr.bf16.mxu0 %v1292
  %2159 = vmatmul.mubr.bf16.gmra.mrb[0].mxu0 %v1291
  %v2160 = vpop.f32.mrb[0].mxu0
  %v2161 = vadd.f32 %v2064, %v2160
  %v2162 = vpop.f32.mrb[0].mxu0
  %v2163 = vpop.f32.mrb[0].mxu0
  %v2164 = vadd.f32 %v2067, %v2163
  %v2165 = vpop.f32.mrb[0].mxu0
  %2166 = vmatprep.mubr.bf16.mxu0 %v1301
  %2167 = vmatmul.mubr.bf16.gmra.mrb[0].mxu0 %v1300
  %v2168 = vpop.f32.mrb[0].mxu0
  %v2169 = vadd.f32 %v2072, %v2168
  %v2170 = vpop.f32.mrb[0].mxu0
  %v2171 = vpop.f32.mrb[0].mxu0
  %v2172 = vadd.f32 %v2075, %v2171
  %v2173 = vpop.f32.mrb[0].mxu0
  %2174 = vmatprep.mubr.bf16.mxu0 %v1310
  %2175 = vmatmul.mubr.bf16.gmra.mrb[0].mxu0 %v1309
  %v2176 = vpop.f32.mrb[0].mxu0
  %v2177 = vadd.f32 %v2080, %v2176
  %v2178 = vpop.f32.mrb[0].mxu0
  %v2179 = vpop.f32.mrb[0].mxu0
  %v2180 = vadd.f32 %v2083, %v2179
  %v2181 = vpop.f32.mrb[0].mxu0
  %2182 = vmatprep.mubr.bf16.mxu0 %v1319
  %2183 = vmatmul.mubr.bf16.gmra.mrb[0].mxu0 %v1318
  %v2184 = vpop.f32.mrb[0].mxu0
  %v2185 = vadd.f32 %v2088, %v2184
  %v2186 = vpop.f32.mrb[0].mxu0
  %v2187 = vpop.f32.mrb[0].mxu0
  %v2188 = vadd.f32 %v2091, %v2187
  %v2189 = vpop.f32.mrb[0].mxu0
  %2190 = vmatprep.mubr.bf16.mxu0 %v1328
  %2191 = vmatmul.mubr.bf16.gmra.mrb[0].mxu0 %v1327
  %v2192 = vpop.f32.mrb[0].mxu0
  %v2193 = vadd.f32 %v2096, %v2192
  %v2194 = vpop.f32.mrb[0].mxu0
  %v2195 = vpop.f32.mrb[0].mxu0
  %v2196 = vadd.f32 %v2099, %v2195
  %v2197 = vpop.f32.mrb[0].mxu0
  %2198 = vdwg.mxu0
  %2199 = vmatprep.subr.bf16.mxu0 0
  %2200 = vmatpush1.bf16.msra.mxu0 %v1812
  %2201 = vmatprep.subr.bf16.mxu0 0
  %2202 = vmatpush1.bf16.msra.mxu0 %v1813
  %2203 = vmatprep.subr.bf16.mxu0 0
  %2204 = vmatpush1.bf16.msra.mxu0 %v1814
  %2205 = vmatprep.subr.bf16.mxu0 0
  %2206 = vmatpush1.bf16.msra.mxu0 %v1815
  %2207 = vmatprep.subr.bf16.mxu0 0
  %2208 = vmatpush1.bf16.msra.mxu0 %v1816
  %2209 = vmatprep.subr.bf16.mxu0 0
  %2210 = vmatpush1.bf16.msra.mxu0 %v1817
  %2211 = vmatprep.subr.bf16.mxu0 0
  %2212 = vmatpush1.bf16.msra.mxu0 %v1818
  %2213 = vmatprep.subr.bf16.mxu0 0
  %2214 = vmatpush1.bf16.msra.mxu0 %v1819
  %2215 = vmatprep.subr.bf16.mxu0 0
  %2216 = vmatpush1.bf16.msra.mxu0 %v1820
  %2217 = vmatprep.subr.bf16.mxu0 0
  %2218 = vmatpush1.bf16.msra.mxu0 %v1821
  %2219 = vmatprep.subr.bf16.mxu0 0
  %2220 = vmatpush1.bf16.msra.mxu0 %v1822
  %2221 = vmatprep.subr.bf16.mxu0 0
  %2222 = vmatpush1.bf16.msra.mxu0 %v1823
  %2223 = vmatprep.subr.bf16.mxu0 0
  %2224 = vmatpush1.bf16.msra.mxu0 %v1824
  %2225 = vmatprep.subr.bf16.mxu0 0
  %2226 = vmatpush1.bf16.msra.mxu0 %v1825
  %2227 = vmatprep.subr.bf16.mxu0 0
  %2228 = vmatpush1.bf16.msra.mxu0 %v1826
  %2229 = vmatprep.subr.bf16.mxu0 0
  %2230 = vmatpush1.bf16.msra.mxu0 %v1827
  %2231 = vmatprep.mubr.bf16.mxu0 %v1267
  %2232 = vmatmul.mubr.bf16.gmra.mrb[0].mxu0 %v1266
  %v2233 = vpop.f32.mrb[0].mxu0
  %v2234 = vadd.f32 %v2137, %v2233
  %v2235 = vpop.f32.mrb[0].mxu0
  %v2236 = vpop.f32.mrb[0].mxu0
  %v2237 = vadd.f32 %v2140, %v2236
  %v2238 = vpop.f32.mrb[0].mxu0
  %2239 = vmatprep.mubr.bf16.mxu0 %v1276
  %2240 = vmatmul.mubr.bf16.gmra.mrb[0].mxu0 %v1275
  %v2241 = vpop.f32.mrb[0].mxu0
  %v2242 = vadd.f32 %v2145, %v2241
  %v2243 = vpop.f32.mrb[0].mxu0
  %v2244 = vpop.f32.mrb[0].mxu0
  %v2245 = vadd.f32 %v2148, %v2244
  %v2246 = vpop.f32.mrb[0].mxu0
  %2247 = vmatprep.mubr.bf16.mxu0 %v1285
  %2248 = vmatmul.mubr.bf16.gmra.mrb[0].mxu0 %v1284
  %v2249 = vpop.f32.mrb[0].mxu0
  %v2250 = vadd.f32 %v2153, %v2249
  %v2251 = vpop.f32.mrb[0].mxu0
  %v2252 = vpop.f32.mrb[0].mxu0
  %v2253 = vadd.f32 %v2156, %v2252
  %v2254 = vpop.f32.mrb[0].mxu0
  %2255 = vmatprep.mubr.bf16.mxu0 %v1294
  %2256 = vmatmul.mubr.bf16.gmra.mrb[0].mxu0 %v1293
  %v2257 = vpop.f32.mrb[0].mxu0
  %v2258 = vadd.f32 %v2161, %v2257
  %v2259 = vpop.f32.mrb[0].mxu0
  %v2260 = vpop.f32.mrb[0].mxu0
  %v2261 = vadd.f32 %v2164, %v2260
  %v2262 = vpop.f32.mrb[0].mxu0
  %2263 = vmatprep.mubr.bf16.mxu0 %v1303
  %2264 = vmatmul.mubr.bf16.gmra.mrb[0].mxu0 %v1302
  %v2265 = vpop.f32.mrb[0].mxu0
  %v2266 = vadd.f32 %v2169, %v2265
  %v2267 = vpop.f32.mrb[0].mxu0
  %v2268 = vpop.f32.mrb[0].mxu0
  %v2269 = vadd.f32 %v2172, %v2268
  %v2270 = vpop.f32.mrb[0].mxu0
  %2271 = vmatprep.mubr.bf16.mxu0 %v1312
  %2272 = vmatmul.mubr.bf16.gmra.mrb[0].mxu0 %v1311
  %v2273 = vpop.f32.mrb[0].mxu0
  %v2274 = vadd.f32 %v2177, %v2273
  %v2275 = vpop.f32.mrb[0].mxu0
  %v2276 = vpop.f32.mrb[0].mxu0
  %v2277 = vadd.f32 %v2180, %v2276
  %v2278 = vpop.f32.mrb[0].mxu0
  %2279 = vmatprep.mubr.bf16.mxu0 %v1321
  %2280 = vmatmul.mubr.bf16.gmra.mrb[0].mxu0 %v1320
  %v2281 = vpop.f32.mrb[0].mxu0
  %v2282 = vadd.f32 %v2185, %v2281
  %v2283 = vpop.f32.mrb[0].mxu0
  %v2284 = vpop.f32.mrb[0].mxu0
  %v2285 = vadd.f32 %v2188, %v2284
  %v2286 = vpop.f32.mrb[0].mxu0
  %2287 = vmatprep.mubr.bf16.mxu0 %v1330
  %2288 = vmatmul.mubr.bf16.gmra.mrb[0].mxu0 %v1329
  %v2289 = vpop.f32.mrb[0].mxu0
  %v2290 = vadd.f32 %v2193, %v2289
  %v2291 = vpop.f32.mrb[0].mxu0
  %v2292 = vpop.f32.mrb[0].mxu0
  %v2293 = vadd.f32 %v2196, %v2292
  %v2294 = vpop.f32.mrb[0].mxu0
  %2295 = vdwg.mxu0
  %2296 = vmatprep.subr.bf16.mxu0 0
  %2297 = vmatpush1.bf16.msra.mxu0 %v1828
  %2298 = vmatprep.subr.bf16.mxu0 0
  %2299 = vmatpush1.bf16.msra.mxu0 %v1829
  %2300 = vmatprep.subr.bf16.mxu0 0
  %2301 = vmatpush1.bf16.msra.mxu0 %v1830
  %2302 = vmatprep.subr.bf16.mxu0 0
  %2303 = vmatpush1.bf16.msra.mxu0 %v1831
  %2304 = vmatprep.subr.bf16.mxu0 0
  %2305 = vmatpush1.bf16.msra.mxu0 %v1832
  %2306 = vmatprep.subr.bf16.mxu0 0
  %2307 = vmatpush1.bf16.msra.mxu0 %v1833
  %2308 = vmatprep.subr.bf16.mxu0 0
  %2309 = vmatpush1.bf16.msra.mxu0 %v1834
  %2310 = vmatprep.subr.bf16.mxu0 0
  %2311 = vmatpush1.bf16.msra.mxu0 %v1835
  %2312 = vmatprep.subr.bf16.mxu0 0
  %2313 = vmatpush1.bf16.msra.mxu0 0
  %2314 = vmatprep.subr.bf16.mxu0 0
  %2315 = vmatpush1.bf16.msra.mxu0 0
  %2316 = vmatprep.subr.bf16.mxu0 0
  %2317 = vmatpush1.bf16.msra.mxu0 0
  %2318 = vmatprep.subr.bf16.mxu0 0
  %2319 = vmatpush1.bf16.msra.mxu0 0
  %2320 = vmatprep.subr.bf16.mxu0 0
  %2321 = vmatpush1.bf16.msra.mxu0 0
  %2322 = vmatprep.subr.bf16.mxu0 0
  %2323 = vmatpush1.bf16.msra.mxu0 0
  %2324 = vmatprep.subr.bf16.mxu0 0
  %2325 = vmatpush1.bf16.msra.mxu0 0
  %2326 = vmatprep.subr.bf16.mxu0 0
  %2327 = vmatpush1.bf16.msra.mxu0 0
  %2328 = vmatprep.mubr.bf16.mxu0 0
  %2329 = vmatmul.mubr.bf16.gmra.mrb[0].mxu0 %v1268
  %v2330 = vpop.f32.mrb[0].mxu0
  %v2331 = vadd.f32 %v2234, %v2330
  %v2332 = vpop.f32.mrb[0].mxu0
  %v2333 = vpop.f32.mrb[0].mxu0
  %v2334 = vadd.f32 %v2237, %v2333
  %v2335 = vpop.f32.mrb[0].mxu0
  %2336 = vmatprep.mubr.bf16.mxu0 0
  %2337 = vmatmul.mubr.bf16.gmra.mrb[0].mxu0 %v1277
  %v2338 = vpop.f32.mrb[0].mxu0
  %v2339 = vadd.f32 %v2242, %v2338
  %v2340 = vpop.f32.mrb[0].mxu0
  %v2341 = vpop.f32.mrb[0].mxu0
  %v2342 = vadd.f32 %v2245, %v2341
  %v2343 = vpop.f32.mrb[0].mxu0
  %2344 = vmatprep.mubr.bf16.mxu0 0
  %2345 = vmatmul.mubr.bf16.gmra.mrb[0].mxu0 %v1286
  %v2346 = vpop.f32.mrb[0].mxu0
  %v2347 = vadd.f32 %v2250, %v2346
  %v2348 = vpop.f32.mrb[0].mxu0
  %v2349 = vpop.f32.mrb[0].mxu0
  %v2350 = vadd.f32 %v2253, %v2349
  %v2351 = vpop.f32.mrb[0].mxu0
  %2352 = vmatprep.mubr.bf16.mxu0 0
  %2353 = vmatmul.mubr.bf16.gmra.mrb[0].mxu0 %v1295
  %v2354 = vpop.f32.mrb[0].mxu0
  %v2355 = vadd.f32 %v2258, %v2354
  %v2356 = vpop.f32.mrb[0].mxu0
  %v2357 = vpop.f32.mrb[0].mxu0
  %v2358 = vadd.f32 %v2261, %v2357
  %v2359 = vpop.f32.mrb[0].mxu0
  %2360 = vmatprep.mubr.bf16.mxu0 0
  %2361 = vmatmul.mubr.bf16.gmra.mrb[0].mxu0 %v1304
  %v2362 = vpop.f32.mrb[0].mxu0
  %v2363 = vadd.f32 %v2266, %v2362
  %v2364 = vpop.f32.mrb[0].mxu0
  %v2365 = vpop.f32.mrb[0].mxu0
  %v2366 = vadd.f32 %v2269, %v2365
  %v2367 = vpop.f32.mrb[0].mxu0
  %2368 = vmatprep.mubr.bf16.mxu0 0
  %2369 = vmatmul.mubr.bf16.gmra.mrb[0].mxu0 %v1313
  %v2370 = vpop.f32.mrb[0].mxu0
  %v2371 = vadd.f32 %v2274, %v2370
  %v2372 = vpop.f32.mrb[0].mxu0
  %v2373 = vpop.f32.mrb[0].mxu0
  %v2374 = vadd.f32 %v2277, %v2373
  %v2375 = vpop.f32.mrb[0].mxu0
  %2376 = vmatprep.mubr.bf16.mxu0 0
  %2377 = vmatmul.mubr.bf16.gmra.mrb[0].mxu0 %v1322
  %v2378 = vpop.f32.mrb[0].mxu0
  %v2379 = vadd.f32 %v2282, %v2378
  %v2380 = vpop.f32.mrb[0].mxu0
  %v2381 = vpop.f32.mrb[0].mxu0
  %v2382 = vadd.f32 %v2285, %v2381
  %v2383 = vpop.f32.mrb[0].mxu0
  %2384 = vmatprep.mubr.bf16.mxu0 0
  %2385 = vmatmul.mubr.bf16.gmra.mrb[0].mxu0 %v1331
  %v2386 = vpop.f32.mrb[0].mxu0
  %v2387 = vadd.f32 %v2290, %v2386
  %v2388 = vpop.f32.mrb[0].mxu0
  %v2389 = vpop.f32.mrb[0].mxu0
  %v2390 = vadd.f32 %v2293, %v2389
  %v2391 = vpop.f32.mrb[0].mxu0
  %2392 = vdwg.mxu0
  %v2393 = vpack.c.bf16 %v2334, %v2331
  %v2394 = vpack.c.bf16 %v2342, %v2339
  %v2395 = vpack.c.bf16 %v2350, %v2347
  %v2396 = vpack.c.bf16 %v2358, %v2355
  %v2397 = vpack.c.bf16 %v2366, %v2363
  %v2398 = vpack.c.bf16 %v2374, %v2371
  %v2399 = vpack.c.bf16 %v2382, %v2379
  %v2400 = vpack.c.bf16 %v2390, %v2387
  %v2409 = vunpack.c.l.b16 %v2393
  %v2410 = vunpack.c.h.b16 %v2393
  %v2411 = vunpack.c.l.b16 %v2394
  %v2412 = vunpack.c.h.b16 %v2394
  %v2413 = vunpack.c.l.b16 %v2395
  %v2414 = vunpack.c.h.b16 %v2395
  %v2415 = vunpack.c.l.b16 %v2396
  %v2416 = vunpack.c.h.b16 %v2396
  %v2417 = vunpack.c.l.b16 %v2397
  %v2418 = vunpack.c.h.b16 %v2397
  %v2419 = vunpack.c.l.b16 %v2398
  %v2420 = vunpack.c.h.b16 %v2398
  %v2421 = vunpack.c.l.b16 %v2399
  %v2422 = vunpack.c.h.b16 %v2399
  %v2423 = vunpack.c.l.b16 %v2400
  %v2424 = vunpack.c.h.b16 %v2400
  %v2425 = vpack.c.b16 %v2409, %v2409
  %v2426 = vpack.c.b16 %v2410, %v2410
  %v2427 = vpack.c.b16 %v2411, %v2411
  %v2428 = vpack.c.b16 %v2412, %v2412
  %v2429 = vpack.c.b16 %v2413, %v2413
  %v2430 = vpack.c.b16 %v2414, %v2414
  %v2431 = vpack.c.b16 %v2415, %v2415
  %v2432 = vpack.c.b16 %v2416, %v2416
  %v2433 = vpack.c.b16 %v2417, %v2417
  %v2434 = vpack.c.b16 %v2418, %v2418
  %v2435 = vpack.c.b16 %v2419, %v2419
  %v2436 = vpack.c.b16 %v2420, %v2420
  %v2437 = vpack.c.b16 %v2421, %v2421
  %v2438 = vpack.c.b16 %v2422, %v2422
  %v2439 = vpack.c.b16 %v2423, %v2423
  %v2440 = vpack.c.b16 %v2424, %v2424
  %2457 = vst [vmem:[%s2] sm:$0xf] %v2425
  %2458 = vst [vmem:[%s2 + $0x4] sm:$0xf] %v2426
  %2459 = vst [vmem:[%s2 + $0x8] sm:$0xf] %v2427
  %2460 = vst [vmem:[%s2 + $0xc] sm:$0xf] %v2428
  %2461 = vst [vmem:[%s2 + $0x10] sm:$0xf] %v2429
  %2462 = vst [vmem:[%s2 + $0x14] sm:$0xf] %v2430
  %2463 = vst [vmem:[%s2 + $0x18] sm:$0xf] %v2431
  %2464 = vst [vmem:[%s2 + $0x1c] sm:$0xf] %v2432
  %2465 = vst [vmem:[%s2 + $0x20] sm:$0xf] %v2433
  %2466 = vst [vmem:[%s2 + $0x24] sm:$0xf] %v2434
  %2467 = vst [vmem:[%s2 + $0x28] sm:$0xf] %v2435
  %2468 = vst [vmem:[%s2 + $0x2c] sm:$0xf] %v2436
  %2469 = vst [vmem:[%s2 + $0x30] sm:$0xf] %v2437
  %2470 = vst [vmem:[%s2 + $0x34] sm:$0xf] %v2438
  %2471 = vst [vmem:[%s2 + $0x38] sm:$0xf] %v2439
  %2472 = vst [vmem:[%s2 + $0x3c] sm:$0xf] %v2440
  // Predicated region
  $region10: #{_lambda_.8} parent=0 // pred_check
    _
  $region11: #{_lambda_.8} parent=0 // pred_check_branch
    %2474 = sbr.rel (0) target = $region13
  $region12: #{_lambda_.8} parent=0 // pred_region
    _
  $region13: #{_lambda_.8} parent=0 // pred_fallthru
    _
  // Predicated region
  $region14: #{_lambda_.8} parent=0 // pred_check
    _
  $region15: #{_lambda_.8} parent=0 // pred_check_branch
    %2476 = sbr.rel (0) target = $region17
  $region16: #{_lambda_.8} parent=0 // pred_region
    _
  $region17: #{_lambda_.8} parent=0 // pred_fallthru
    _

</llo_original>
